<compile_context>
chip_gen: v5e
topology: v5e:2x2
jax: 0.10.0
libtpu: 0.0.40
codegen_flags: <defaults>
</compile_context>

<pallas_src>
import jax
import jax.numpy as jnp
from jax import lax
from jax.experimental import pallas as pl
from jax.experimental.pallas import tpu as pltpu

BN_EPS = 1e-5
KSIZE = 3
STRIDE = 2
PAD = 1
LANE = 128


def _round_up(x, m):
    return ((x + m - 1) // m) * m


def _pick_tile(total, candidates, cap):
    cap = max(int(cap), 1)
    for c in candidates:
        if c <= cap and total % c == 0:
            return c
    return total  # full-extent block: always a legal BlockSpec dim


def _vmem_budget_bytes():
    """Generation-aware VMEM budget: ~70% of physical, capped at 96 MiB."""
    cap = None
    try:
        info = pltpu.get_tpu_info()
        for name in ("vmem_capacity_bytes", "vmem_bytes", "vmem_size_bytes"):
            v = getattr(info, name, None)
            if v:
                cap = int(v)
                break
    except Exception:
        cap = None
    if not cap:
        cap = 64 * 1024 * 1024  # assume the smallest generation (v7x) if unknown
    return max(16 * 1024 * 1024, min(int(cap * 0.7), 96 * 1024 * 1024))


# --------------------- pass 1: depthwise 3x3 / stride 2 + BN1 stats ---------------------
def _dw_stats_kernel(xm_ref, xe_ref, wdw_ref, h_ref, st_ref):
    # xm_ref: (1, 2*Tho, Wp2, 2*Cin_p) even/odd-packed padded rows of this tile
    # xe_ref: (1, 1,     Wp2, 2*Cin_p) halo row (padded row 2*Tho*(t+1))
    # wdw_ref: (9, 1, Cin_p)           depthwise taps, index kh*3+kw
    # h_ref:  (1, Tho, Wo, Cin_p)      depthwise output (compute dtype)
    # st_ref: (1, 8, Cin_p) f32        row0 = sum(h), row1 = sum(h*h); resident over t
    t = pl.program_id(1)

    @pl.when(t == 0)
    def _init():
        st_ref[...] = jnp.zeros_like(st_ref)

    tho, wo, cinp = h_ref.shape[1], h_ref.shape[2], h_ref.shape[3]
    two_tho = xm_ref.shape[1]

    w = wdw_ref[...].astype(jnp.float32)  # (9, 1, Cin_p)

    def row_conv(r0, r1, r2):
        acc = jnp.zeros((wo, cinp), jnp.float32)
        for kh, row in enumerate((r0, r1, r2)):
            ev = row[:, :cinp]            # even padded cols (free view: Cin_p % 128 == 0)
            od = row[:, cinp:]            # odd padded cols
            acc = acc + ev[:wo, :] * w[kh * KSIZE + 0]        # kw = 0
            acc = acc + od[:wo, :] * w[kh * KSIZE + 1]        # kw = 1
            acc = acc + ev[1:wo + 1, :] * w[kh * KSIZE + 2]   # kw = 2
        return acc

    def emit_row(j, acc, psum, psq):
        h_ref[0, j] = acc.astype(h_ref.dtype)                 # stats from f32 acc, pre-cast
        psum = psum + jnp.sum(acc, axis=0, keepdims=True)
        psq = psq + jnp.sum(acc * acc, axis=0, keepdims=True)
        return psum, psq

    def body(j, carry):
        psum, psq = carry
        acc = row_conv(xm_ref[0, 2 * j].astype(jnp.float32),
                       xm_ref[0, 2 * j + 1].astype(jnp.float32),
                       xm_ref[0, 2 * j + 2].astype(jnp.float32))
        return emit_row(j, acc, psum, psq)

    zero = jnp.zeros((1, cinp), jnp.float32)
    psum, psq = lax.fori_loop(0, tho - 1, body, (zero, zero), unroll=True)

    # last output row of the tile: its bottom tap lives in the halo block
    acc = row_conv(xm_ref[0, two_tho - 2].astype(jnp.float32),
                   xm_ref[0, two_tho - 1].astype(jnp.float32),
                   xe_ref[0, 0].astype(jnp.float32))
    psum, psq = emit_row(tho - 1, acc, psum, psq)

    st_ref[0] += jnp.concatenate(
        [psum, psq, jnp.zeros((6, cinp), jnp.float32)], axis=0)


# ----------------- pass 2: folded BN1 + ReLU + 1x1 matmul + BN2 stats -----------------
def _pw_stats_kernel(h_ref, sc1_ref, sh1_ref, wpw_ref, y_ref, st_ref):
    # h_ref: (Tm, Cin_p) compute dtype; sc1/sh1: (1, Cin_p) f32
    # wpw_ref: (Cin_p, Cout_p) compute dtype; y_ref: (Tm, Cout_p) compute dtype
    # st_ref: (1, 8, Cout_p) f32 per-partition accumulator (row0=sum, row1=sumsq)
    i = pl.program_id(1)

    @pl.when(i == 0)
    def _init():
        st_ref[...] = jnp.zeros_like(st_ref)

    coutp = y_ref.shape[1]
    a = jnp.maximum(h_ref[...].astype(jnp.float32) * sc1_ref[...] + sh1_ref[...], 0.0)
    y = jnp.dot(a.astype(wpw_ref.dtype), wpw_ref[...],
                preferred_element_type=jnp.float32)   # MXU (bf16 operands on fast path)
    y_ref[...] = y.astype(y_ref.dtype)
    st_ref[0] += jnp.concatenate(
        [jnp.sum(y, axis=0, keepdims=True),
         jnp.sum(y * y, axis=0, keepdims=True),
         jnp.zeros((6, coutp), jnp.float32)], axis=0)


# ------------------- pass 3: folded BN2 + ReLU fused with NCHW writeback -------------------
def _bn_relu_nchw_kernel(y_ref, sc2_ref, sh2_ref, o_ref):
    # y_ref: (1, Tq, Cout_p) compute dtype; sc2/sh2: (1, Cout_p) f32
    # o_ref: (1, Cout, Tq) f32 -- in-kernel transpose; only real channels written
    cout = o_ref.shape[1]
    z = jnp.maximum(y_ref[0].astype(jnp.float32) * sc2_ref[...] + sh2_ref[...], 0.0)
    o_ref[0] = jnp.transpose(z, (1, 0))[:cout, :]


# --------------------------------------- wrapper ---------------------------------------
def dsc_forward(x_nchw, params, compute_dtype=jnp.bfloat16):
    """x_nchw: (N, Cin, H, W) f32.  Returns (N, Cout, Ho, Wo) f32."""
    w_dw, b1, g1, be1, w_pw, b2, g2, be2 = params
    del b1, b2  # exactly cancelled by batch-statistics BN mean subtraction

    N, Cin, H, W = x_nchw.shape
    Cout = w_pw.shape[0]
    Ho = (H + 2 * PAD - KSIZE) // STRIDE + 1
    Wo = (W + 2 * PAD - KSIZE) // STRIDE + 1
    HoWo = Ho * Wo
    M = N * HoWo
    Cin_p = _round_up(Cin, LANE)
    Cout_p = _round_up(Cout, LANE)
    eb = jnp.dtype(compute_dtype).itemsize
    budget = _vmem_budget_bytes()

    # ---- layout glue: NCHW -> NHWC, channel pad, spatial zero-pad, even/odd W pack ----
    x_nhwc = jnp.transpose(x_nchw, (0, 2, 3, 1)).astype(jnp.float32)
    Wp = W + 2 * PAD
    extra_w = Wp % 2
    x_pad = jnp.pad(x_nhwc, ((0, 0), (PAD, PAD), (PAD, PAD + extra_w), (0, Cin_p - Cin)))
    Hp = H + 2 * PAD
    Wp2 = (Wp + extra_w) // 2                       # == Wo + 1
    C2 = 2 * Cin_p
    x_pk = x_pad.reshape(N, Hp, Wp2, C2)            # [..., :Cin_p]=even cols, [Cin_p:]=odd

    w_dw_k = jnp.transpose(w_dw.reshape(Cin, KSIZE * KSIZE), (1, 0))
    w_dw_k = jnp.pad(w_dw_k, ((0, 0), (0, Cin_p - Cin))).reshape(KSIZE * KSIZE, 1, Cin_p)
    w_pw_k = jnp.transpose(w_pw.reshape(Cout, Cin), (1, 0))
    w_pw_k = jnp.pad(w_pw_k, ((0, Cin_p - Cin), (0, Cout_p - Cout))).astype(compute_dtype)

    # ---------------- pass 1: depthwise conv + BN1 sum / sumsq ----------------
    row_in = 2 * Wp2 * C2 * 4
    row_out = Wo * Cin_p * eb
    fixed1 = 2 * Wp2 * C2 * 4 + 2 * KSIZE * KSIZE * Cin_p * 4 + 2 * 8 * Cin_p * 4
    tho_cap = (budget - fixed1) // max(2 * (row_in + row_out), 1)
    Tho = _pick_tile(Ho, (64, 32, 16, 8, 4, 2, 1), tho_cap)
    T = Ho // Tho

    ce1 = pl.CostEstimate(
        flops=int(2 * KSIZE * KSIZE * M * Cin_p + 4 * M * Cin_p),
        transcendentals=0,
        bytes_accessed=int(x_pk.size * 4 + M * Cin_p * eb + N * 8 * Cin_p * 4))

    h, st1 = pl.pallas_call(
        _dw_stats_kernel,
        out_shape=(jax.ShapeDtypeStruct((N, Ho, Wo, Cin_p), compute_dtype),
                   jax.ShapeDtypeStruct((N, 8, Cin_p), jnp.float32)),
        grid=(N, T),
        in_specs=[
            pl.BlockSpec((1, 2 * Tho, Wp2, C2), lambda n, t: (n, t, 0, 0)),
            pl.BlockSpec((1, 1, Wp2, C2), lambda n, t: (n, 2 * Tho * (t + 1), 0, 0)),
            pl.BlockSpec((KSIZE * KSIZE, 1, Cin_p), lambda n, t: (0, 0, 0)),
        ],
        out_specs=(
            pl.BlockSpec((1, Tho, Wo, Cin_p), lambda n, t: (n, t, 0, 0)),
            pl.BlockSpec((1, 8, Cin_p), lambda n, t: (n, 0, 0)),  # per-n partial (megacore)
        ),
        compiler_params=pltpu.CompilerParams(
            dimension_semantics=("parallel", "arbitrary"),
            vmem_limit_bytes=budget),
        cost_estimate=ce1,
    )(x_pk, x_pk, w_dw_k)

    # fold BN1 into a single FMA (tiny per-channel math in f32)
    inv_m = 1.0 / float(M)
    s1 = jnp.sum(st1[:, 0, :], axis=0)
    q1 = jnp.sum(st1[:, 1, :], axis=0)
    mean1 = s1 * inv_m
    var1 = jnp.maximum(q1 * inv_m - mean1 * mean1, 0.0)
    g1_p = jnp.pad(g1, (0, Cin_p - Cin))
    be1_p = jnp.pad(be1, (0, Cin_p - Cin))
    scale1 = g1_p * lax.rsqrt(var1 + BN_EPS)
    shift1 = be1_p - mean1 * scale1
    scale1 = scale1.reshape(1, Cin_p).astype(jnp.float32)
    shift1 = shift1.reshape(1, Cin_p).astype(jnp.float32)

    # ---------------- pass 2: BN1+ReLU, 1x1 matmul, BN2 sum / sumsq ----------------
    h_flat = h.reshape(M, Cin_p)
    w2_bytes = Cin_p * Cout_p * eb
    tm_cap = (budget - 2 * w2_bytes - 4 * Cin_p * 4) // max(
        2 * (Cin_p + Cout_p) * eb + Cout_p * 4, 1)
    Tm = _pick_tile(M, (8192, 4096, 2048, 1024, 512, 256, 128, 64, 32, 16, 8), tm_cap)
    ntiles = M // Tm
    P = 2 if ntiles % 2 == 0 else 1   # megacore partitions for BN2 partials
    inner = ntiles // P

    ce2 = pl.CostEstimate(
        flops=int(2 * M * Cin_p * Cout_p + 8 * M * Cout_p),
        transcendentals=0,
        bytes_accessed=int(M * (Cin_p + Cout_p) * eb + w2_bytes + P * 8 * Cout_p * 4))

    y, st2 = pl.pallas_call(
        _pw_stats_kernel,
        out_shape=(jax.ShapeDtypeStruct((M, Cout_p), compute_dtype),
                   jax.ShapeDtypeStruct((P, 8, Cout_p), jnp.float32)),
        grid=(P, inner),
        in_specs=[
            pl.BlockSpec((Tm, Cin_p), lambda p, i: (p * inner + i, 0)),
            pl.BlockSpec((1, Cin_p), lambda p, i: (0, 0)),
            pl.BlockSpec((1, Cin_p), lambda p, i: (0, 0)),
            pl.BlockSpec((Cin_p, Cout_p), lambda p, i: (0, 0)),
        ],
        out_specs=(
            pl.BlockSpec((Tm, Cout_p), lambda p, i: (p * inner + i, 0)),
            pl.BlockSpec((1, 8, Cout_p), lambda p, i: (p, 0, 0)),  # per-core partial
        ),
        compiler_params=pltpu.CompilerParams(
            dimension_semantics=("parallel", "arbitrary"),
            vmem_limit_bytes=budget),
        cost_estimate=ce2,
    )(h_flat, scale1, shift1, w_pw_k)

    # fold BN2 (padded channels have sum=sumsq=0 -> no NaN; they are never written)
    s2 = jnp.sum(st2[:, 0, :], axis=0)
    q2 = jnp.sum(st2[:, 1, :], axis=0)
    mean2 = s2 * inv_m
    var2 = jnp.maximum(q2 * inv_m - mean2 * mean2, 0.0)
    g2_p = jnp.pad(g2, (0, Cout_p - Cout))
    be2_p = jnp.pad(be2, (0, Cout_p - Cout))
    scale2 = g2_p * lax.rsqrt(var2 + BN_EPS)
    shift2 = be2_p - mean2 * scale2
    scale2 = scale2.reshape(1, Cout_p).astype(jnp.float32)
    shift2 = shift2.reshape(1, Cout_p).astype(jnp.float32)

    # ---------------- pass 3: BN2 + ReLU fused with NCHW writeback ----------------
    y3 = y.reshape(N, HoWo, Cout_p)
    tq_cap = budget // max(2 * (Cout_p * eb + Cout * 4) + 2 * Cout_p * 4, 1)
    Tq = _pick_tile(HoWo, (8192, 4096, 2048, 1024, 512, 256, 128), tq_cap)
    S3 = HoWo // Tq

    ce3 = pl.CostEstimate(
        flops=int(3 * M * Cout_p),
        transcendentals=0,
        bytes_accessed=int(M * Cout_p * eb + M * Cout * 4))

    out_flat = pl.pallas_call(
        _bn_relu_nchw_kernel,
        out_shape=jax.ShapeDtypeStruct((N, Cout, HoWo), jnp.float32),
        grid=(N, S3),
        in_specs=[
            pl.BlockSpec((1, Tq, Cout_p), lambda n, i: (n, i, 0)),
            pl.BlockSpec((1, Cout_p), lambda n, i: (0, 0)),
            pl.BlockSpec((1, Cout_p), lambda n, i: (0, 0)),
        ],
        out_specs=pl.BlockSpec((1, Cout, Tq), lambda n, i: (n, 0, i)),
        compiler_params=pltpu.CompilerParams(
            dimension_semantics=("parallel", "parallel"),
            vmem_limit_bytes=budget),
        cost_estimate=ce3,
    )(y3, scale2, shift2)

    return out_flat.reshape(N, Cout, Ho, Wo)


# -------------- pure-JAX reference (PyTorch training-mode semantics, with biases) --------------
def dsc_reference(x, params):
    w_dw, b1, g1, be1, w_pw, b2, g2, be2 = params
    N, Cin, H, W = x.shape
    Cout = w_pw.shape[0]
    dn = ("NCHW", "OIHW", "NCHW")

    h = lax.conv_general_dilated(x, w_dw, window_strides=(STRIDE, STRIDE),
                                 padding=((PAD, PAD), (PAD, PAD)),
                                 feature_group_count=Cin, dimension_numbers=dn)
    h = h + b1.reshape(1, Cin, 1, 1)
    m = jnp.mean(h, axis=(0, 2, 3), keepdims=True)
    v = jnp.mean((h - m) ** 2, axis=(0, 2, 3), keepdims=True)
    h = (h - m) * lax.rsqrt(v + BN_EPS)
    h = jnp.maximum(h * g1.reshape(1, Cin, 1, 1) + be1.reshape(1, Cin, 1, 1), 0.0)

    y = lax.conv_general_dilated(h, w_pw, window_strides=(1, 1),
                                 padding="VALID", dimension_numbers=dn)
    y = y + b2.reshape(1, Cout, 1, 1)
    m2 = jnp.mean(y, axis=(0, 2, 3), keepdims=True)
    v2 = jnp.mean((y - m2) ** 2, axis=(0, 2, 3), keepdims=True)
    y = (y - m2) * lax.rsqrt(v2 + BN_EPS)
    y = jnp.maximum(y * g2.reshape(1, Cout, 1, 1) + be2.reshape(1, Cout, 1, 1), 0.0)
    return y


def init_params(key, in_channels, out_channels):
    k1, k2, k3, k4 = jax.random.split(key, 4)
    w_dw = 0.1 * jax.random.normal(k1, (in_channels, 1, KSIZE, KSIZE), jnp.float32)
    b1 = 0.1 * jax.random.normal(k2, (in_channels,), jnp.float32)
    g1 = jnp.ones((in_channels,), jnp.float32)
    be1 = jnp.zeros((in_channels,), jnp.float32)
    w_pw = 0.1 * jax.random.normal(k3, (out_channels, in_channels, 1, 1), jnp.float32)
    b2 = 0.1 * jax.random.normal(k4, (out_channels,), jnp.float32)
    g2 = jnp.ones((out_channels,), jnp.float32)
    be2 = jnp.zeros((out_channels,), jnp.float32)
    return (w_dw, b1, g1, be1, w_pw, b2, g2, be2)


if __name__ == "__main__":
    key = jax.random.PRNGKey(0)
    kx, kp = jax.random.split(key)

    N, Cin, H, W = 2, 4, 16, 16
    Cout = 8
    x = jax.random.normal(kx, (N, Cin, H, W), jnp.float32)
    params = init_params(kp, Cin, Cout)

    ref = jax.block_until_ready(dsc_reference(x, params))

    # exact path (f32 intermediates + f32 matmul): tight check
    fwd_f32 = jax.jit(lambda xx, pp: dsc_forward(xx, pp, compute_dtype=jnp.float32))
    out_f32 = jax.block_until_ready(fwd_f32(x, params))
    assert out_f32.shape == (N, Cout, H // 2, W // 2), out_f32.shape
    err32 = float(jnp.max(jnp.abs(out_f32 - ref)))
    assert jnp.allclose(out_f32, ref, rtol=2e-4, atol=2e-4), f"f32 max abs err = {err32}"

    # default fast path (bf16 intermediates + bf16 MXU matmul): BN renormalizes,
    # so check with a loose relative-L2 bound (small channel counts amplify the
    # per-element bf16 noise after the second normalization).
    fwd = jax.jit(dsc_forward)
    out = jax.block_until_ready(fwd(x, params))
    assert out.shape == (N, Cout, H // 2, W // 2), out.shape
    assert bool(jnp.all(jnp.isfinite(out)))
    rel_l2 = float(jnp.linalg.norm((out - ref).ravel()) /
                   (jnp.linalg.norm(ref.ravel()) + 1e-12))
    assert rel_l2 < 0.1, f"bf16 rel L2 err = {rel_l2}"

    print("KERNEL_OK")
</pallas_src>

<mosaic_0001>
module attributes {stable_mosaic.version = 11 : i64} {
  func.func @_bn_relu_nchw_kernel(%arg0: i32, %arg1: i32, %arg2: memref<1x64x128xf32, #tpu.memory_space<vmem>>, %arg3: memref<1x128xf32, #tpu.memory_space<vmem>>, %arg4: memref<1x128xf32, #tpu.memory_space<vmem>>, %arg5: memref<1x8x64xf32, #tpu.memory_space<vmem>>) attributes {dimension_semantics = [#tpu.dimension_semantics<parallel>, #tpu.dimension_semantics<parallel>], iteration_bounds = array<i64: 2, 1>, scalar_prefetch = 0 : i64, scratch_operands = 0 : i64, tpu.core_type = #tpu.core_type<tc>, window_params = [{transform_indices = @transform_0, window_bounds = array<i64: 1, 64, 128>}, {pipeline_mode = #tpu.pipeline_mode<synchronous>, transform_indices = @transform_1, window_bounds = array<i64: 1, 128>}, {pipeline_mode = #tpu.pipeline_mode<synchronous>, transform_indices = @transform_2, window_bounds = array<i64: 1, 128>}, {transform_indices = @transform_3, window_bounds = array<i64: 1, 8, 64>}]} {
    %c0 = arith.constant 0 : index
    %c0_0 = arith.constant 0 : index
    %c0_1 = arith.constant 0 : index
    %0 = vector.load %arg2[%c0, %c0_0, %c0_1] : memref<1x64x128xf32, #tpu.memory_space<vmem>>, vector<1x64x128xf32>
    %1 = vector.shape_cast %0 : vector<1x64x128xf32> to vector<64x128xf32>
    %c0_2 = arith.constant 0 : index
    %c0_3 = arith.constant 0 : index
    %2 = vector.load %arg3[%c0_2, %c0_3] : memref<1x128xf32, #tpu.memory_space<vmem>>, vector<1x128xf32>
    %3 = vector.broadcast %2 : vector<1x128xf32> to vector<64x128xf32>
    %4 = arith.mulf %1, %3 : vector<64x128xf32>
    %c0_4 = arith.constant 0 : index
    %c0_5 = arith.constant 0 : index
    %5 = vector.load %arg4[%c0_4, %c0_5] : memref<1x128xf32, #tpu.memory_space<vmem>>, vector<1x128xf32>
    %6 = vector.broadcast %5 : vector<1x128xf32> to vector<64x128xf32>
    %7 = arith.addf %4, %6 : vector<64x128xf32>
    %cst = arith.constant 0.000000e+00 : f32
    %8 = vector.broadcast %cst : f32 to vector<64x128xf32>
    %9 = arith.maximumf %7, %8 : vector<64x128xf32>
    %10 = tpu.transpose %9, [1, 0] : vector<64x128xf32> -> vector<128x64xf32>
    %11 = vector.extract_strided_slice %10 {offsets = [0, 0], sizes = [8, 64], strides = [1, 1]} : vector<128x64xf32> to vector<8x64xf32>
    %c0_6 = arith.constant 0 : index
    %c0_7 = arith.constant 0 : index
    %c0_8 = arith.constant 0 : index
    %12 = vector.load %arg5[%c0_6, %c0_7, %c0_8] : memref<1x8x64xf32, #tpu.memory_space<vmem>>, vector<1x8x64xf32>
    %13 = vector.shape_cast %12 : vector<1x8x64xf32> to vector<8x64xf32>
    %14 = vector.shape_cast %11 : vector<8x64xf32> to vector<1x8x64xf32>
    tpu.vector_store %arg5[%c0_6, %c0_7, %c0_8], %14 {strides = array<i32>} : memref<1x8x64xf32, #tpu.memory_space<vmem>>, vector<1x8x64xf32>,
    return
  }
  func.func @transform_0(%arg0: i32, %arg1: i32) -> (i32, i32, i32) {
    %c0_i32 = arith.constant 0 : i32
    %c0_i32_0 = arith.constant 0 : i32
    return %arg0, %arg1, %c0_i32 : i32, i32, i32
  }
  func.func @transform_1(%arg0: i32, %arg1: i32) -> (i32, i32) {
    %c0_i32 = arith.constant 0 : i32
    %c0_i32_0 = arith.constant 0 : i32
    %c0_i32_1 = arith.constant 0 : i32
    return %c0_i32, %c0_i32_0 : i32, i32
  }
  func.func @transform_2(%arg0: i32, %arg1: i32) -> (i32, i32) {
    %c0_i32 = arith.constant 0 : i32
    %c0_i32_0 = arith.constant 0 : i32
    %c0_i32_1 = arith.constant 0 : i32
    return %c0_i32, %c0_i32_0 : i32, i32
  }
  func.func @transform_3(%arg0: i32, %arg1: i32) -> (i32, i32, i32) {
    %c0_i32 = arith.constant 0 : i32
    %c0_i32_0 = arith.constant 0 : i32
    return %arg0, %c0_i32, %arg1 : i32, i32, i32
  }
}

module attributes {stable_mosaic.version = 11 : i64} {
  func.func @_pw_stats_kernel(%arg0: i32, %arg1: i32, %arg2: memref<128x128xf32, #tpu.memory_space<vmem>>, %arg3: memref<1x128xf32, #tpu.memory_space<vmem>>, %arg4: memref<1x128xf32, #tpu.memory_space<vmem>>, %arg5: memref<128x128xf32, #tpu.memory_space<vmem>>, %arg6: memref<128x128xf32, #tpu.memory_space<vmem>>, %arg7: memref<1x8x128xf32, #tpu.memory_space<vmem>>) attributes {dimension_semantics = [#tpu.dimension_semantics<parallel>, #tpu.dimension_semantics<arbitrary>], iteration_bounds = array<i64: 1, 1>, scalar_prefetch = 0 : i64, scratch_operands = 0 : i64, tpu.core_type = #tpu.core_type<tc>, window_params = [{transform_indices = @transform_0, window_bounds = array<i64: 128, 128>}, {pipeline_mode = #tpu.pipeline_mode<synchronous>, transform_indices = @transform_1, window_bounds = array<i64: 1, 128>}, {pipeline_mode = #tpu.pipeline_mode<synchronous>, transform_indices = @transform_2, window_bounds = array<i64: 1, 128>}, {pipeline_mode = #tpu.pipeline_mode<synchronous>, transform_indices = @transform_3, window_bounds = array<i64: 128, 128>}, {transform_indices = @transform_4, window_bounds = array<i64: 128, 128>}, {transform_indices = @transform_5, window_bounds = array<i64: 1, 8, 128>}]} {
    %c0_i32 = arith.constant 0 : i32
    %0 = arith.cmpi eq, %arg1, %c0_i32 : i32
    %1 = arith.extui %0 : i1 to i32
    %c0_i32_0 = arith.constant 0 : i32
    %2 = arith.cmpi ne, %1, %c0_i32_0 : i32
    scf.if %2 {
      %cst_20 = arith.constant 0.000000e+00 : f32
      %28 = vector.broadcast %cst_20 : f32 to vector<1x8x128xf32>
      %c0_21 = arith.constant 0 : index
      %c0_22 = arith.constant 0 : index
      %c0_23 = arith.constant 0 : index
      %29 = vector.load %arg7[%c0_21, %c0_22, %c0_23] : memref<1x8x128xf32, #tpu.memory_space<vmem>>, vector<1x8x128xf32>
      tpu.vector_store %arg7[%c0_21, %c0_22, %c0_23], %28 {strides = array<i32>} : memref<1x8x128xf32, #tpu.memory_space<vmem>>, vector<1x8x128xf32>,
    } else {
    }
    %c0 = arith.constant 0 : index
    %c0_1 = arith.constant 0 : index
    %3 = vector.load %arg2[%c0, %c0_1] : memref<128x128xf32, #tpu.memory_space<vmem>>, vector<128x128xf32>
    %c0_2 = arith.constant 0 : index
    %c0_3 = arith.constant 0 : index
    %4 = vector.load %arg3[%c0_2, %c0_3] : memref<1x128xf32, #tpu.memory_space<vmem>>, vector<1x128xf32>
    %5 = vector.broadcast %4 : vector<1x128xf32> to vector<128x128xf32>
    %6 = arith.mulf %3, %5 : vector<128x128xf32>
    %c0_4 = arith.constant 0 : index
    %c0_5 = arith.constant 0 : index
    %7 = vector.load %arg4[%c0_4, %c0_5] : memref<1x128xf32, #tpu.memory_space<vmem>>, vector<1x128xf32>
    %8 = vector.broadcast %7 : vector<1x128xf32> to vector<128x128xf32>
    %9 = arith.addf %6, %8 : vector<128x128xf32>
    %cst = arith.constant 0.000000e+00 : f32
    %10 = vector.broadcast %cst : f32 to vector<128x128xf32>
    %11 = arith.maximumf %9, %10 : vector<128x128xf32>
    %c0_6 = arith.constant 0 : index
    %c0_7 = arith.constant 0 : index
    %12 = vector.load %arg5[%c0_6, %c0_7] : memref<128x128xf32, #tpu.memory_space<vmem>>, vector<128x128xf32>
    %cst_8 = arith.constant dense<0.000000e+00> : vector<128x128xf32>
    %13 = tpu.matmul %11, %12, %cst_8 {dimension_numbers = #tpu.dot_dimension_numbers<[1], [0], [0], [1], [0, 0, 1, 1], [], []>} : vector<128x128xf32>, vector<128x128xf32>, vector<128x128xf32> -> vector<128x128xf32>
    %c0_9 = arith.constant 0 : index
    %c0_10 = arith.constant 0 : index
    %14 = vector.load %arg6[%c0_9, %c0_10] : memref<128x128xf32, #tpu.memory_space<vmem>>, vector<128x128xf32>
    tpu.vector_store %arg6[%c0_9, %c0_10], %13 {strides = array<i32>} : memref<128x128xf32, #tpu.memory_space<vmem>>, vector<128x128xf32>,
    %c0_11 = arith.constant 0 : index
    %c0_12 = arith.constant 0 : index
    %c0_13 = arith.constant 0 : index
    %15 = vector.load %arg7[%c0_11, %c0_12, %c0_13] : memref<1x8x128xf32, #tpu.memory_space<vmem>>, vector<1x8x128xf32>
    %16 = vector.shape_cast %15 : vector<1x8x128xf32> to vector<8x128xf32>
    %cst_14 = arith.constant dense<0.000000e+00> : vector<128xf32>
    %17 = vector.multi_reduction <add>, %13, %cst_14 [0] : vector<128x128xf32> to vector<128xf32>
    %18 = vector.shape_cast %17 : vector<128xf32> to vector<1x128xf32>
    %19 = arith.mulf %13, %13 : vector<128x128xf32>
    %cst_15 = arith.constant dense<0.000000e+00> : vector<128xf32>
    %20 = vector.multi_reduction <add>, %19, %cst_15 [0] : vector<128x128xf32> to vector<128xf32>
    %21 = vector.shape_cast %20 : vector<128xf32> to vector<1x128xf32>
    %cst_16 = arith.constant 0.000000e+00 : f32
    %22 = vector.broadcast %cst_16 : f32 to vector<6x128xf32>
    %23 = tpu.concatenate %18, %21, %22 in 0 : vector<1x128xf32>, vector<1x128xf32>, vector<6x128xf32> -> vector<8x128xf32>
    %24 = arith.addf %16, %23 : vector<8x128xf32>
    %c0_17 = arith.constant 0 : index
    %c0_18 = arith.constant 0 : index
    %c0_19 = arith.constant 0 : index
    %25 = vector.load %arg7[%c0_17, %c0_18, %c0_19] : memref<1x8x128xf32, #tpu.memory_space<vmem>>, vector<1x8x128xf32>
    %26 = vector.shape_cast %25 : vector<1x8x128xf32> to vector<8x128xf32>
    %27 = vector.shape_cast %24 : vector<8x128xf32> to vector<1x8x128xf32>
    tpu.vector_store %arg7[%c0_17, %c0_18, %c0_19], %27 {strides = array<i32>} : memref<1x8x128xf32, #tpu.memory_space<vmem>>, vector<1x8x128xf32>,
    return
  }
  func.func @transform_0(%arg0: i32, %arg1: i32) -> (i32, i32) {
    %c1_i32 = arith.constant 1 : i32
    %0 = arith.muli %arg0, %c1_i32 : i32
    %1 = arith.addi %0, %arg1 : i32
    %c0_i32 = arith.constant 0 : i32
    %c0_i32_0 = arith.constant 0 : i32
    return %1, %c0_i32 : i32, i32
  }
  func.func @transform_1(%arg0: i32, %arg1: i32) -> (i32, i32) {
    %c0_i32 = arith.constant 0 : i32
    %c0_i32_0 = arith.constant 0 : i32
    %c0_i32_1 = arith.constant 0 : i32
    return %c0_i32, %c0_i32_0 : i32, i32
  }
  func.func @transform_2(%arg0: i32, %arg1: i32) -> (i32, i32) {
    %c0_i32 = arith.constant 0 : i32
    %c0_i32_0 = arith.constant 0 : i32
    %c0_i32_1 = arith.constant 0 : i32
    return %c0_i32, %c0_i32_0 : i32, i32
  }
  func.func @transform_3(%arg0: i32, %arg1: i32) -> (i32, i32) {
    %c0_i32 = arith.constant 0 : i32
    %c0_i32_0 = arith.constant 0 : i32
    %c0_i32_1 = arith.constant 0 : i32
    return %c0_i32, %c0_i32_0 : i32, i32
  }
  func.func @transform_4(%arg0: i32, %arg1: i32) -> (i32, i32) {
    %c1_i32 = arith.constant 1 : i32
    %0 = arith.muli %arg0, %c1_i32 : i32
    %1 = arith.addi %0, %arg1 : i32
    %c0_i32 = arith.constant 0 : i32
    %c0_i32_0 = arith.constant 0 : i32
    return %1, %c0_i32 : i32, i32
  }
  func.func @transform_5(%arg0: i32, %arg1: i32) -> (i32, i32, i32) {
    %c0_i32 = arith.constant 0 : i32
    %c0_i32_0 = arith.constant 0 : i32
    %c0_i32_1 = arith.constant 0 : i32
    return %arg0, %c0_i32, %c0_i32_0 : i32, i32, i32
  }
}

module attributes {stable_mosaic.version = 11 : i64} {
  func.func @_dw_stats_kernel(%arg0: i32, %arg1: i32, %arg2: memref<1x16x9x256xf32, #tpu.memory_space<vmem>>, %arg3: memref<1x1x9x256xf32, #tpu.memory_space<vmem>>, %arg4: memref<9x1x128xf32, #tpu.memory_space<vmem>>, %arg5: memref<1x8x8x128xf32, #tpu.memory_space<vmem>>, %arg6: memref<1x8x128xf32, #tpu.memory_space<vmem>>) attributes {dimension_semantics = [#tpu.dimension_semantics<parallel>, #tpu.dimension_semantics<arbitrary>], iteration_bounds = array<i64: 2, 1>, scalar_prefetch = 0 : i64, scratch_operands = 0 : i64, tpu.core_type = #tpu.core_type<tc>, window_params = [{transform_indices = @transform_0, window_bounds = array<i64: 1, 16, 9, 256>}, {transform_indices = @transform_1, window_bounds = array<i64: 1, 1, 9, 256>}, {pipeline_mode = #tpu.pipeline_mode<synchronous>, transform_indices = @transform_2, window_bounds = array<i64: 9, 1, 128>}, {transform_indices = @transform_3, window_bounds = array<i64: 1, 8, 8, 128>}, {transform_indices = @transform_4, window_bounds = array<i64: 1, 8, 128>}]} {
    %c0_i32 = arith.constant 0 : i32
    %0 = arith.cmpi eq, %arg1, %c0_i32 : i32
    %1 = arith.extui %0 : i1 to i32
    %c0_i32_0 = arith.constant 0 : i32
    %2 = arith.cmpi ne, %1, %c0_i32_0 : i32
    scf.if %2 {
      %cst_167 = arith.constant 0.000000e+00 : f32
      %692 = vector.broadcast %cst_167 : f32 to vector<1x8x128xf32>
      %c0_168 = arith.constant 0 : index
      %c0_169 = arith.constant 0 : index
      %c0_170 = arith.constant 0 : index
      %693 = vector.load %arg6[%c0_168, %c0_169, %c0_170] : memref<1x8x128xf32, #tpu.memory_space<vmem>>, vector<1x8x128xf32>
      tpu.vector_store %arg6[%c0_168, %c0_169, %c0_170], %692 {strides = array<i32>} : memref<1x8x128xf32, #tpu.memory_space<vmem>>, vector<1x8x128xf32>,
    } else {
    }
    %c0 = arith.constant 0 : index
    %c0_1 = arith.constant 0 : index
    %c0_2 = arith.constant 0 : index
    %3 = vector.load %arg4[%c0, %c0_1, %c0_2] : memref<9x1x128xf32, #tpu.memory_space<vmem>>, vector<9x1x128xf32>
    %cst = arith.constant 0.000000e+00 : f32
    %4 = vector.broadcast %cst : f32 to vector<1x128xf32>
    %c0_i32_3 = arith.constant 0 : i32
    %c2_i32 = arith.constant 2 : i32
    %5 = arith.muli %c2_i32, %c0_i32_3 : i32
    %c0_4 = arith.constant 0 : index
    %6 = arith.index_cast %5 : i32 to index
    %c0_5 = arith.constant 0 : index
    %c0_6 = arith.constant 0 : index
    %7 = vector.load %arg2[%c0_4, %6, %c0_5, %c0_6] : memref<1x16x9x256xf32, #tpu.memory_space<vmem>>, vector<1x1x9x256xf32>
    %8 = vector.shape_cast %7 : vector<1x1x9x256xf32> to vector<9x256xf32>
    %c2_i32_7 = arith.constant 2 : i32
    %9 = arith.muli %c2_i32_7, %c0_i32_3 : i32
    %c1_i32 = arith.constant 1 : i32
    %10 = arith.addi %9, %c1_i32 : i32
    %c0_8 = arith.constant 0 : index
    %11 = arith.index_cast %10 : i32 to index
    %c0_9 = arith.constant 0 : index
    %c0_10 = arith.constant 0 : index
    %12 = vector.load %arg2[%c0_8, %11, %c0_9, %c0_10] : memref<1x16x9x256xf32, #tpu.memory_space<vmem>>, vector<1x1x9x256xf32>
    %13 = vector.shape_cast %12 : vector<1x1x9x256xf32> to vector<9x256xf32>
    %c2_i32_11 = arith.constant 2 : i32
    %14 = arith.muli %c2_i32_11, %c0_i32_3 : i32
    %c2_i32_12 = arith.constant 2 : i32
    %15 = arith.addi %14, %c2_i32_12 : i32
    %c0_13 = arith.constant 0 : index
    %16 = arith.index_cast %15 : i32 to index
    %c0_14 = arith.constant 0 : index
    %c0_15 = arith.constant 0 : index
    %17 = vector.load %arg2[%c0_13, %16, %c0_14, %c0_15] : memref<1x16x9x256xf32, #tpu.memory_space<vmem>>, vector<1x1x9x256xf32>
    %18 = vector.shape_cast %17 : vector<1x1x9x256xf32> to vector<9x256xf32>
    %cst_16 = arith.constant 0.000000e+00 : f32
    %19 = vector.broadcast %cst_16 : f32 to vector<8x128xf32>
    %20 = vector.extract_strided_slice %8 {offsets = [0, 0], sizes = [9, 128], strides = [1, 1]} : vector<9x256xf32> to vector<9x128xf32>
    %21 = vector.extract_strided_slice %8 {offsets = [0, 128], sizes = [9, 128], strides = [1, 1]} : vector<9x256xf32> to vector<9x128xf32>
    %22 = vector.extract_strided_slice %20 {offsets = [0, 0], sizes = [8, 128], strides = [1, 1]} : vector<9x128xf32> to vector<8x128xf32>
    %23 = vector.extract_strided_slice %3 {offsets = [0, 0, 0], sizes = [1, 1, 128], strides = [1, 1, 1]} : vector<9x1x128xf32> to vector<1x1x128xf32>
    %24 = vector.shape_cast %23 : vector<1x1x128xf32> to vector<1x128xf32>
    %25 = vector.broadcast %24 : vector<1x128xf32> to vector<8x128xf32>
    %26 = arith.mulf %22, %25 : vector<8x128xf32>
    %27 = arith.addf %19, %26 : vector<8x128xf32>
    %28 = vector.extract_strided_slice %21 {offsets = [0, 0], sizes = [8, 128], strides = [1, 1]} : vector<9x128xf32> to vector<8x128xf32>
    %29 = vector.extract_strided_slice %3 {offsets = [1, 0, 0], sizes = [1, 1, 128], strides = [1, 1, 1]} : vector<9x1x128xf32> to vector<1x1x128xf32>
    %30 = vector.shape_cast %29 : vector<1x1x128xf32> to vector<1x128xf32>
    %31 = vector.broadcast %30 : vector<1x128xf32> to vector<8x128xf32>
    %32 = arith.mulf %28, %31 : vector<8x128xf32>
    %33 = arith.addf %27, %32 : vector<8x128xf32>
    %34 = vector.extract_strided_slice %20 {offsets = [1, 0], sizes = [8, 128], strides = [1, 1]} : vector<9x128xf32> to vector<8x128xf32>
    %35 = vector.extract_strided_slice %3 {offsets = [2, 0, 0], sizes = [1, 1, 128], strides = [1, 1, 1]} : vector<9x1x128xf32> to vector<1x1x128xf32>
    %36 = vector.shape_cast %35 : vector<1x1x128xf32> to vector<1x128xf32>
    %37 = vector.broadcast %36 : vector<1x128xf32> to vector<8x128xf32>
    %38 = arith.mulf %34, %37 : vector<8x128xf32>
    %39 = arith.addf %33, %38 : vector<8x128xf32>
    %40 = vector.extract_strided_slice %13 {offsets = [0, 0], sizes = [9, 128], strides = [1, 1]} : vector<9x256xf32> to vector<9x128xf32>
    %41 = vector.extract_strided_slice %13 {offsets = [0, 128], sizes = [9, 128], strides = [1, 1]} : vector<9x256xf32> to vector<9x128xf32>
    %42 = vector.extract_strided_slice %40 {offsets = [0, 0], sizes = [8, 128], strides = [1, 1]} : vector<9x128xf32> to vector<8x128xf32>
    %43 = vector.extract_strided_slice %3 {offsets = [3, 0, 0], sizes = [1, 1, 128], strides = [1, 1, 1]} : vector<9x1x128xf32> to vector<1x1x128xf32>
    %44 = vector.shape_cast %43 : vector<1x1x128xf32> to vector<1x128xf32>
    %45 = vector.broadcast %44 : vector<1x128xf32> to vector<8x128xf32>
    %46 = arith.mulf %42, %45 : vector<8x128xf32>
    %47 = arith.addf %39, %46 : vector<8x128xf32>
    %48 = vector.extract_strided_slice %41 {offsets = [0, 0], sizes = [8, 128], strides = [1, 1]} : vector<9x128xf32> to vector<8x128xf32>
    %49 = vector.extract_strided_slice %3 {offsets = [4, 0, 0], sizes = [1, 1, 128], strides = [1, 1, 1]} : vector<9x1x128xf32> to vector<1x1x128xf32>
    %50 = vector.shape_cast %49 : vector<1x1x128xf32> to vector<1x128xf32>
    %51 = vector.broadcast %50 : vector<1x128xf32> to vector<8x128xf32>
    %52 = arith.mulf %48, %51 : vector<8x128xf32>
    %53 = arith.addf %47, %52 : vector<8x128xf32>
    %54 = vector.extract_strided_slice %40 {offsets = [1, 0], sizes = [8, 128], strides = [1, 1]} : vector<9x128xf32> to vector<8x128xf32>
    %55 = vector.extract_strided_slice %3 {offsets = [5, 0, 0], sizes = [1, 1, 128], strides = [1, 1, 1]} : vector<9x1x128xf32> to vector<1x1x128xf32>
    %56 = vector.shape_cast %55 : vector<1x1x128xf32> to vector<1x128xf32>
    %57 = vector.broadcast %56 : vector<1x128xf32> to vector<8x128xf32>
    %58 = arith.mulf %54, %57 : vector<8x128xf32>
    %59 = arith.addf %53, %58 : vector<8x128xf32>
    %60 = vector.extract_strided_slice %18 {offsets = [0, 0], sizes = [9, 128], strides = [1, 1]} : vector<9x256xf32> to vector<9x128xf32>
    %61 = vector.extract_strided_slice %18 {offsets = [0, 128], sizes = [9, 128], strides = [1, 1]} : vector<9x256xf32> to vector<9x128xf32>
    %62 = vector.extract_strided_slice %60 {offsets = [0, 0], sizes = [8, 128], strides = [1, 1]} : vector<9x128xf32> to vector<8x128xf32>
    %63 = vector.extract_strided_slice %3 {offsets = [6, 0, 0], sizes = [1, 1, 128], strides = [1, 1, 1]} : vector<9x1x128xf32> to vector<1x1x128xf32>
    %64 = vector.shape_cast %63 : vector<1x1x128xf32> to vector<1x128xf32>
    %65 = vector.broadcast %64 : vector<1x128xf32> to vector<8x128xf32>
    %66 = arith.mulf %62, %65 : vector<8x128xf32>
    %67 = arith.addf %59, %66 : vector<8x128xf32>
    %68 = vector.extract_strided_slice %61 {offsets = [0, 0], sizes = [8, 128], strides = [1, 1]} : vector<9x128xf32> to vector<8x128xf32>
    %69 = vector.extract_strided_slice %3 {offsets = [7, 0, 0], sizes = [1, 1, 128], strides = [1, 1, 1]} : vector<9x1x128xf32> to vector<1x1x128xf32>
    %70 = vector.shape_cast %69 : vector<1x1x128xf32> to vector<1x128xf32>
    %71 = vector.broadcast %70 : vector<1x128xf32> to vector<8x128xf32>
    %72 = arith.mulf %68, %71 : vector<8x128xf32>
    %73 = arith.addf %67, %72 : vector<8x128xf32>
    %74 = vector.extract_strided_slice %60 {offsets = [1, 0], sizes = [8, 128], strides = [1, 1]} : vector<9x128xf32> to vector<8x128xf32>
    %75 = vector.extract_strided_slice %3 {offsets = [8, 0, 0], sizes = [1, 1, 128], strides = [1, 1, 1]} : vector<9x1x128xf32> to vector<1x1x128xf32>
    %76 = vector.shape_cast %75 : vector<1x1x128xf32> to vector<1x128xf32>
    %77 = vector.broadcast %76 : vector<1x128xf32> to vector<8x128xf32>
    %78 = arith.mulf %74, %77 : vector<8x128xf32>
    %79 = arith.addf %73, %78 : vector<8x128xf32>
    %c0_17 = arith.constant 0 : index
    %80 = arith.index_cast %c0_i32_3 : i32 to index
    %c0_18 = arith.constant 0 : index
    %c0_19 = arith.constant 0 : index
    %81 = vector.load %arg5[%c0_17, %80, %c0_18, %c0_19] : memref<1x8x8x128xf32, #tpu.memory_space<vmem>>, vector<1x1x8x128xf32>
    %82 = vector.shape_cast %81 : vector<1x1x8x128xf32> to vector<8x128xf32>
    %83 = vector.shape_cast %79 : vector<8x128xf32> to vector<1x1x8x128xf32>
    tpu.vector_store %arg5[%c0_17, %80, %c0_18, %c0_19], %83 {strides = array<i32>} : memref<1x8x8x128xf32, #tpu.memory_space<vmem>>, vector<1x1x8x128xf32>,
    %cst_20 = arith.constant dense<0.000000e+00> : vector<128xf32>
    %84 = vector.multi_reduction <add>, %79, %cst_20 [0] : vector<8x128xf32> to vector<128xf32>
    %85 = vector.shape_cast %84 : vector<128xf32> to vector<1x128xf32>
    %86 = arith.addf %4, %85 : vector<1x128xf32>
    %87 = arith.mulf %79, %79 : vector<8x128xf32>
    %cst_21 = arith.constant dense<0.000000e+00> : vector<128xf32>
    %88 = vector.multi_reduction <add>, %87, %cst_21 [0] : vector<8x128xf32> to vector<128xf32>
    %89 = vector.shape_cast %88 : vector<128xf32> to vector<1x128xf32>
    %90 = arith.addf %4, %89 : vector<1x128xf32>
    %c1_i32_22 = arith.constant 1 : i32
    %c2_i32_23 = arith.constant 2 : i32
    %91 = arith.muli %c2_i32_23, %c1_i32_22 : i32
    %c0_24 = arith.constant 0 : index
    %92 = arith.index_cast %91 : i32 to index
    %c0_25 = arith.constant 0 : index
    %c0_26 = arith.constant 0 : index
    %93 = vector.load %arg2[%c0_24, %92, %c0_25, %c0_26] : memref<1x16x9x256xf32, #tpu.memory_space<vmem>>, vector<1x1x9x256xf32>
    %94 = vector.shape_cast %93 : vector<1x1x9x256xf32> to vector<9x256xf32>
    %c2_i32_27 = arith.constant 2 : i32
    %95 = arith.muli %c2_i32_27, %c1_i32_22 : i32
    %c1_i32_28 = arith.constant 1 : i32
    %96 = arith.addi %95, %c1_i32_28 : i32
    %c0_29 = arith.constant 0 : index
    %97 = arith.index_cast %96 : i32 to index
    %c0_30 = arith.constant 0 : index
    %c0_31 = arith.constant 0 : index
    %98 = vector.load %arg2[%c0_29, %97, %c0_30, %c0_31] : memref<1x16x9x256xf32, #tpu.memory_space<vmem>>, vector<1x1x9x256xf32>
    %99 = vector.shape_cast %98 : vector<1x1x9x256xf32> to vector<9x256xf32>
    %c2_i32_32 = arith.constant 2 : i32
    %100 = arith.muli %c2_i32_32, %c1_i32_22 : i32
    %c2_i32_33 = arith.constant 2 : i32
    %101 = arith.addi %100, %c2_i32_33 : i32
    %c0_34 = arith.constant 0 : index
    %102 = arith.index_cast %101 : i32 to index
    %c0_35 = arith.constant 0 : index
    %c0_36 = arith.constant 0 : index
    %103 = vector.load %arg2[%c0_34, %102, %c0_35, %c0_36] : memref<1x16x9x256xf32, #tpu.memory_space<vmem>>, vector<1x1x9x256xf32>
    %104 = vector.shape_cast %103 : vector<1x1x9x256xf32> to vector<9x256xf32>
    %cst_37 = arith.constant 0.000000e+00 : f32
    %105 = vector.broadcast %cst_37 : f32 to vector<8x128xf32>
    %106 = vector.extract_strided_slice %94 {offsets = [0, 0], sizes = [9, 128], strides = [1, 1]} : vector<9x256xf32> to vector<9x128xf32>
    %107 = vector.extract_strided_slice %94 {offsets = [0, 128], sizes = [9, 128], strides = [1, 1]} : vector<9x256xf32> to vector<9x128xf32>
    %108 = vector.extract_strided_slice %106 {offsets = [0, 0], sizes = [8, 128], strides = [1, 1]} : vector<9x128xf32> to vector<8x128xf32>
    %109 = vector.extract_strided_slice %3 {offsets = [0, 0, 0], sizes = [1, 1, 128], strides = [1, 1, 1]} : vector<9x1x128xf32> to vector<1x1x128xf32>
    %110 = vector.shape_cast %109 : vector<1x1x128xf32> to vector<1x128xf32>
    %111 = vector.broadcast %110 : vector<1x128xf32> to vector<8x128xf32>
    %112 = arith.mulf %108, %111 : vector<8x128xf32>
    %113 = arith.addf %105, %112 : vector<8x128xf32>
    %114 = vector.extract_strided_slice %107 {offsets = [0, 0], sizes = [8, 128], strides = [1, 1]} : vector<9x128xf32> to vector<8x128xf32>
    %115 = vector.extract_strided_slice %3 {offsets = [1, 0, 0], sizes = [1, 1, 128], strides = [1, 1, 1]} : vector<9x1x128xf32> to vector<1x1x128xf32>
    %116 = vector.shape_cast %115 : vector<1x1x128xf32> to vector<1x128xf32>
    %117 = vector.broadcast %116 : vector<1x128xf32> to vector<8x128xf32>
    %118 = arith.mulf %114, %117 : vector<8x128xf32>
    %119 = arith.addf %113, %118 : vector<8x128xf32>
    %120 = vector.extract_strided_slice %106 {offsets = [1, 0], sizes = [8, 128], strides = [1, 1]} : vector<9x128xf32> to vector<8x128xf32>
    %121 = vector.extract_strided_slice %3 {offsets = [2, 0, 0], sizes = [1, 1, 128], strides = [1, 1, 1]} : vector<9x1x128xf32> to vector<1x1x128xf32>
    %122 = vector.shape_cast %121 : vector<1x1x128xf32> to vector<1x128xf32>
    %123 = vector.broadcast %122 : vector<1x128xf32> to vector<8x128xf32>
    %124 = arith.mulf %120, %123 : vector<8x128xf32>
    %125 = arith.addf %119, %124 : vector<8x128xf32>
    %126 = vector.extract_strided_slice %99 {offsets = [0, 0], sizes = [9, 128], strides = [1, 1]} : vector<9x256xf32> to vector<9x128xf32>
    %127 = vector.extract_strided_slice %99 {offsets = [0, 128], sizes = [9, 128], strides = [1, 1]} : vector<9x256xf32> to vector<9x128xf32>
    %128 = vector.extract_strided_slice %126 {offsets = [0, 0], sizes = [8, 128], strides = [1, 1]} : vector<9x128xf32> to vector<8x128xf32>
    %129 = vector.extract_strided_slice %3 {offsets = [3, 0, 0], sizes = [1, 1, 128], strides = [1, 1, 1]} : vector<9x1x128xf32> to vector<1x1x128xf32>
    %130 = vector.shape_cast %129 : vector<1x1x128xf32> to vector<1x128xf32>
    %131 = vector.broadcast %130 : vector<1x128xf32> to vector<8x128xf32>
    %132 = arith.mulf %128, %131 : vector<8x128xf32>
    %133 = arith.addf %125, %132 : vector<8x128xf32>
    %134 = vector.extract_strided_slice %127 {offsets = [0, 0], sizes = [8, 128], strides = [1, 1]} : vector<9x128xf32> to vector<8x128xf32>
    %135 = vector.extract_strided_slice %3 {offsets = [4, 0, 0], sizes = [1, 1, 128], strides = [1, 1, 1]} : vector<9x1x128xf32> to vector<1x1x128xf32>
    %136 = vector.shape_cast %135 : vector<1x1x128xf32> to vector<1x128xf32>
    %137 = vector.broadcast %136 : vector<1x128xf32> to vector<8x128xf32>
    %138 = arith.mulf %134, %137 : vector<8x128xf32>
    %139 = arith.addf %133, %138 : vector<8x128xf32>
    %140 = vector.extract_strided_slice %126 {offsets = [1, 0], sizes = [8, 128], strides = [1, 1]} : vector<9x128xf32> to vector<8x128xf32>
    %141 = vector.extract_strided_slice %3 {offsets = [5, 0, 0], sizes = [1, 1, 128], strides = [1, 1, 1]} : vector<9x1x128xf32> to vector<1x1x128xf32>
    %142 = vector.shape_cast %141 : vector<1x1x128xf32> to vector<1x128xf32>
    %143 = vector.broadcast %142 : vector<1x128xf32> to vector<8x128xf32>
    %144 = arith.mulf %140, %143 : vector<8x128xf32>
    %145 = arith.addf %139, %144 : vector<8x128xf32>
    %146 = vector.extract_strided_slice %104 {offsets = [0, 0], sizes = [9, 128], strides = [1, 1]} : vector<9x256xf32> to vector<9x128xf32>
    %147 = vector.extract_strided_slice %104 {offsets = [0, 128], sizes = [9, 128], strides = [1, 1]} : vector<9x256xf32> to vector<9x128xf32>
    %148 = vector.extract_strided_slice %146 {offsets = [0, 0], sizes = [8, 128], strides = [1, 1]} : vector<9x128xf32> to vector<8x128xf32>
    %149 = vector.extract_strided_slice %3 {offsets = [6, 0, 0], sizes = [1, 1, 128], strides = [1, 1, 1]} : vector<9x1x128xf32> to vector<1x1x128xf32>
    %150 = vector.shape_cast %149 : vector<1x1x128xf32> to vector<1x128xf32>
    %151 = vector.broadcast %150 : vector<1x128xf32> to vector<8x128xf32>
    %152 = arith.mulf %148, %151 : vector<8x128xf32>
    %153 = arith.addf %145, %152 : vector<8x128xf32>
    %154 = vector.extract_strided_slice %147 {offsets = [0, 0], sizes = [8, 128], strides = [1, 1]} : vector<9x128xf32> to vector<8x128xf32>
    %155 = vector.extract_strided_slice %3 {offsets = [7, 0, 0], sizes = [1, 1, 128], strides = [1, 1, 1]} : vector<9x1x128xf32> to vector<1x1x128xf32>
    %156 = vector.shape_cast %155 : vector<1x1x128xf32> to vector<1x128xf32>
    %157 = vector.broadcast %156 : vector<1x128xf32> to vector<8x128xf32>
    %158 = arith.mulf %154, %157 : vector<8x128xf32>
    %159 = arith.addf %153, %158 : vector<8x128xf32>
    %160 = vector.extract_strided_slice %146 {offsets = [1, 0], sizes = [8, 128], strides = [1, 1]} : vector<9x128xf32> to vector<8x128xf32>
    %161 = vector.extract_strided_slice %3 {offsets = [8, 0, 0], sizes = [1, 1, 128], strides = [1, 1, 1]} : vector<9x1x128xf32> to vector<1x1x128xf32>
    %162 = vector.shape_cast %161 : vector<1x1x128xf32> to vector<1x128xf32>
    %163 = vector.broadcast %162 : vector<1x128xf32> to vector<8x128xf32>
    %164 = arith.mulf %160, %163 : vector<8x128xf32>
    %165 = arith.addf %159, %164 : vector<8x128xf32>
    %c0_38 = arith.constant 0 : index
    %166 = arith.index_cast %c1_i32_22 : i32 to index
    %c0_39 = arith.constant 0 : index
    %c0_40 = arith.constant 0 : index
    %167 = vector.load %arg5[%c0_38, %166, %c0_39, %c0_40] : memref<1x8x8x128xf32, #tpu.memory_space<vmem>>, vector<1x1x8x128xf32>
    %168 = vector.shape_cast %167 : vector<1x1x8x128xf32> to vector<8x128xf32>
    %169 = vector.shape_cast %165 : vector<8x128xf32> to vector<1x1x8x128xf32>
    tpu.vector_store %arg5[%c0_38, %166, %c0_39, %c0_40], %169 {strides = array<i32>} : memref<1x8x8x128xf32, #tpu.memory_space<vmem>>, vector<1x1x8x128xf32>,
    %cst_41 = arith.constant dense<0.000000e+00> : vector<128xf32>
    %170 = vector.multi_reduction <add>, %165, %cst_41 [0] : vector<8x128xf32> to vector<128xf32>
    %171 = vector.shape_cast %170 : vector<128xf32> to vector<1x128xf32>
    %172 = arith.addf %86, %171 : vector<1x128xf32>
    %173 = arith.mulf %165, %165 : vector<8x128xf32>
    %cst_42 = arith.constant dense<0.000000e+00> : vector<128xf32>
    %174 = vector.multi_reduction <add>, %173, %cst_42 [0] : vector<8x128xf32> to vector<128xf32>
    %175 = vector.shape_cast %174 : vector<128xf32> to vector<1x128xf32>
    %176 = arith.addf %90, %175 : vector<1x128xf32>
    %c2_i32_43 = arith.constant 2 : i32
    %c2_i32_44 = arith.constant 2 : i32
    %177 = arith.muli %c2_i32_44, %c2_i32_43 : i32
    %c0_45 = arith.constant 0 : index
    %178 = arith.index_cast %177 : i32 to index
    %c0_46 = arith.constant 0 : index
    %c0_47 = arith.constant 0 : index
    %179 = vector.load %arg2[%c0_45, %178, %c0_46, %c0_47] : memref<1x16x9x256xf32, #tpu.memory_space<vmem>>, vector<1x1x9x256xf32>
    %180 = vector.shape_cast %179 : vector<1x1x9x256xf32> to vector<9x256xf32>
    %c2_i32_48 = arith.constant 2 : i32
    %181 = arith.muli %c2_i32_48, %c2_i32_43 : i32
    %c1_i32_49 = arith.constant 1 : i32
    %182 = arith.addi %181, %c1_i32_49 : i32
    %c0_50 = arith.constant 0 : index
    %183 = arith.index_cast %182 : i32 to index
    %c0_51 = arith.constant 0 : index
    %c0_52 = arith.constant 0 : index
    %184 = vector.load %arg2[%c0_50, %183, %c0_51, %c0_52] : memref<1x16x9x256xf32, #tpu.memory_space<vmem>>, vector<1x1x9x256xf32>
    %185 = vector.shape_cast %184 : vector<1x1x9x256xf32> to vector<9x256xf32>
    %c2_i32_53 = arith.constant 2 : i32
    %186 = arith.muli %c2_i32_53, %c2_i32_43 : i32
    %c2_i32_54 = arith.constant 2 : i32
    %187 = arith.addi %186, %c2_i32_54 : i32
    %c0_55 = arith.constant 0 : index
    %188 = arith.index_cast %187 : i32 to index
    %c0_56 = arith.constant 0 : index
    %c0_57 = arith.constant 0 : index
    %189 = vector.load %arg2[%c0_55, %188, %c0_56, %c0_57] : memref<1x16x9x256xf32, #tpu.memory_space<vmem>>, vector<1x1x9x256xf32>
    %190 = vector.shape_cast %189 : vector<1x1x9x256xf32> to vector<9x256xf32>
    %cst_58 = arith.constant 0.000000e+00 : f32
    %191 = vector.broadcast %cst_58 : f32 to vector<8x128xf32>
    %192 = vector.extract_strided_slice %180 {offsets = [0, 0], sizes = [9, 128], strides = [1, 1]} : vector<9x256xf32> to vector<9x128xf32>
    %193 = vector.extract_strided_slice %180 {offsets = [0, 128], sizes = [9, 128], strides = [1, 1]} : vector<9x256xf32> to vector<9x128xf32>
    %194 = vector.extract_strided_slice %192 {offsets = [0, 0], sizes = [8, 128], strides = [1, 1]} : vector<9x128xf32> to vector<8x128xf32>
    %195 = vector.extract_strided_slice %3 {offsets = [0, 0, 0], sizes = [1, 1, 128], strides = [1, 1, 1]} : vector<9x1x128xf32> to vector<1x1x128xf32>
    %196 = vector.shape_cast %195 : vector<1x1x128xf32> to vector<1x128xf32>
    %197 = vector.broadcast %196 : vector<1x128xf32> to vector<8x128xf32>
    %198 = arith.mulf %194, %197 : vector<8x128xf32>
    %199 = arith.addf %191, %198 : vector<8x128xf32>
    %200 = vector.extract_strided_slice %193 {offsets = [0, 0], sizes = [8, 128], strides = [1, 1]} : vector<9x128xf32> to vector<8x128xf32>
    %201 = vector.extract_strided_slice %3 {offsets = [1, 0, 0], sizes = [1, 1, 128], strides = [1, 1, 1]} : vector<9x1x128xf32> to vector<1x1x128xf32>
    %202 = vector.shape_cast %201 : vector<1x1x128xf32> to vector<1x128xf32>
    %203 = vector.broadcast %202 : vector<1x128xf32> to vector<8x128xf32>
    %204 = arith.mulf %200, %203 : vector<8x128xf32>
    %205 = arith.addf %199, %204 : vector<8x128xf32>
    %206 = vector.extract_strided_slice %192 {offsets = [1, 0], sizes = [8, 128], strides = [1, 1]} : vector<9x128xf32> to vector<8x128xf32>
    %207 = vector.extract_strided_slice %3 {offsets = [2, 0, 0], sizes = [1, 1, 128], strides = [1, 1, 1]} : vector<9x1x128xf32> to vector<1x1x128xf32>
    %208 = vector.shape_cast %207 : vector<1x1x128xf32> to vector<1x128xf32>
    %209 = vector.broadcast %208 : vector<1x128xf32> to vector<8x128xf32>
    %210 = arith.mulf %206, %209 : vector<8x128xf32>
    %211 = arith.addf %205, %210 : vector<8x128xf32>
    %212 = vector.extract_strided_slice %185 {offsets = [0, 0], sizes = [9, 128], strides = [1, 1]} : vector<9x256xf32> to vector<9x128xf32>
    %213 = vector.extract_strided_slice %185 {offsets = [0, 128], sizes = [9, 128], strides = [1, 1]} : vector<9x256xf32> to vector<9x128xf32>
    %214 = vector.extract_strided_slice %212 {offsets = [0, 0], sizes = [8, 128], strides = [1, 1]} : vector<9x128xf32> to vector<8x128xf32>
    %215 = vector.extract_strided_slice %3 {offsets = [3, 0, 0], sizes = [1, 1, 128], strides = [1, 1, 1]} : vector<9x1x128xf32> to vector<1x1x128xf32>
    %216 = vector.shape_cast %215 : vector<1x1x128xf32> to vector<1x128xf32>
    %217 = vector.broadcast %216 : vector<1x128xf32> to vector<8x128xf32>
    %218 = arith.mulf %214, %217 : vector<8x128xf32>
    %219 = arith.addf %211, %218 : vector<8x128xf32>
    %220 = vector.extract_strided_slice %213 {offsets = [0, 0], sizes = [8, 128], strides = [1, 1]} : vector<9x128xf32> to vector<8x128xf32>
    %221 = vector.extract_strided_slice %3 {offsets = [4, 0, 0], sizes = [1, 1, 128], strides = [1, 1, 1]} : vector<9x1x128xf32> to vector<1x1x128xf32>
    %222 = vector.shape_cast %221 : vector<1x1x128xf32> to vector<1x128xf32>
    %223 = vector.broadcast %222 : vector<1x128xf32> to vector<8x128xf32>
    %224 = arith.mulf %220, %223 : vector<8x128xf32>
    %225 = arith.addf %219, %224 : vector<8x128xf32>
    %226 = vector.extract_strided_slice %212 {offsets = [1, 0], sizes = [8, 128], strides = [1, 1]} : vector<9x128xf32> to vector<8x128xf32>
    %227 = vector.extract_strided_slice %3 {offsets = [5, 0, 0], sizes = [1, 1, 128], strides = [1, 1, 1]} : vector<9x1x128xf32> to vector<1x1x128xf32>
    %228 = vector.shape_cast %227 : vector<1x1x128xf32> to vector<1x128xf32>
    %229 = vector.broadcast %228 : vector<1x128xf32> to vector<8x128xf32>
    %230 = arith.mulf %226, %229 : vector<8x128xf32>
    %231 = arith.addf %225, %230 : vector<8x128xf32>
    %232 = vector.extract_strided_slice %190 {offsets = [0, 0], sizes = [9, 128], strides = [1, 1]} : vector<9x256xf32> to vector<9x128xf32>
    %233 = vector.extract_strided_slice %190 {offsets = [0, 128], sizes = [9, 128], strides = [1, 1]} : vector<9x256xf32> to vector<9x128xf32>
    %234 = vector.extract_strided_slice %232 {offsets = [0, 0], sizes = [8, 128], strides = [1, 1]} : vector<9x128xf32> to vector<8x128xf32>
    %235 = vector.extract_strided_slice %3 {offsets = [6, 0, 0], sizes = [1, 1, 128], strides = [1, 1, 1]} : vector<9x1x128xf32> to vector<1x1x128xf32>
    %236 = vector.shape_cast %235 : vector<1x1x128xf32> to vector<1x128xf32>
    %237 = vector.broadcast %236 : vector<1x128xf32> to vector<8x128xf32>
    %238 = arith.mulf %234, %237 : vector<8x128xf32>
    %239 = arith.addf %231, %238 : vector<8x128xf32>
    %240 = vector.extract_strided_slice %233 {offsets = [0, 0], sizes = [8, 128], strides = [1, 1]} : vector<9x128xf32> to vector<8x128xf32>
    %241 = vector.extract_strided_slice %3 {offsets = [7, 0, 0], sizes = [1, 1, 128], strides = [1, 1, 1]} : vector<9x1x128xf32> to vector<1x1x128xf32>
    %242 = vector.shape_cast %241 : vector<1x1x128xf32> to vector<1x128xf32>
    %243 = vector.broadcast %242 : vector<1x128xf32> to vector<8x128xf32>
    %244 = arith.mulf %240, %243 : vector<8x128xf32>
    %245 = arith.addf %239, %244 : vector<8x128xf32>
    %246 = vector.extract_strided_slice %232 {offsets = [1, 0], sizes = [8, 128], strides = [1, 1]} : vector<9x128xf32> to vector<8x128xf32>
    %247 = vector.extract_strided_slice %3 {offsets = [8, 0, 0], sizes = [1, 1, 128], strides = [1, 1, 1]} : vector<9x1x128xf32> to vector<1x1x128xf32>
    %248 = vector.shape_cast %247 : vector<1x1x128xf32> to vector<1x128xf32>
    %249 = vector.broadcast %248 : vector<1x128xf32> to vector<8x128xf32>
    %250 = arith.mulf %246, %249 : vector<8x128xf32>
    %251 = arith.addf %245, %250 : vector<8x128xf32>
    %c0_59 = arith.constant 0 : index
    %252 = arith.index_cast %c2_i32_43 : i32 to index
    %c0_60 = arith.constant 0 : index
    %c0_61 = arith.constant 0 : index
    %253 = vector.load %arg5[%c0_59, %252, %c0_60, %c0_61] : memref<1x8x8x128xf32, #tpu.memory_space<vmem>>, vector<1x1x8x128xf32>
    %254 = vector.shape_cast %253 : vector<1x1x8x128xf32> to vector<8x128xf32>
    %255 = vector.shape_cast %251 : vector<8x128xf32> to vector<1x1x8x128xf32>
    tpu.vector_store %arg5[%c0_59, %252, %c0_60, %c0_61], %255 {strides = array<i32>} : memref<1x8x8x128xf32, #tpu.memory_space<vmem>>, vector<1x1x8x128xf32>,
    %cst_62 = arith.constant dense<0.000000e+00> : vector<128xf32>
    %256 = vector.multi_reduction <add>, %251, %cst_62 [0] : vector<8x128xf32> to vector<128xf32>
    %257 = vector.shape_cast %256 : vector<128xf32> to vector<1x128xf32>
    %258 = arith.addf %172, %257 : vector<1x128xf32>
    %259 = arith.mulf %251, %251 : vector<8x128xf32>
    %cst_63 = arith.constant dense<0.000000e+00> : vector<128xf32>
    %260 = vector.multi_reduction <add>, %259, %cst_63 [0] : vector<8x128xf32> to vector<128xf32>
    %261 = vector.shape_cast %260 : vector<128xf32> to vector<1x128xf32>
    %262 = arith.addf %176, %261 : vector<1x128xf32>
    %c3_i32 = arith.constant 3 : i32
    %c2_i32_64 = arith.constant 2 : i32
    %263 = arith.muli %c2_i32_64, %c3_i32 : i32
    %c0_65 = arith.constant 0 : index
    %264 = arith.index_cast %263 : i32 to index
    %c0_66 = arith.constant 0 : index
    %c0_67 = arith.constant 0 : index
    %265 = vector.load %arg2[%c0_65, %264, %c0_66, %c0_67] : memref<1x16x9x256xf32, #tpu.memory_space<vmem>>, vector<1x1x9x256xf32>
    %266 = vector.shape_cast %265 : vector<1x1x9x256xf32> to vector<9x256xf32>
    %c2_i32_68 = arith.constant 2 : i32
    %267 = arith.muli %c2_i32_68, %c3_i32 : i32
    %c1_i32_69 = arith.constant 1 : i32
    %268 = arith.addi %267, %c1_i32_69 : i32
    %c0_70 = arith.constant 0 : index
    %269 = arith.index_cast %268 : i32 to index
    %c0_71 = arith.constant 0 : index
    %c0_72 = arith.constant 0 : index
    %270 = vector.load %arg2[%c0_70, %269, %c0_71, %c0_72] : memref<1x16x9x256xf32, #tpu.memory_space<vmem>>, vector<1x1x9x256xf32>
    %271 = vector.shape_cast %270 : vector<1x1x9x256xf32> to vector<9x256xf32>
    %c2_i32_73 = arith.constant 2 : i32
    %272 = arith.muli %c2_i32_73, %c3_i32 : i32
    %c2_i32_74 = arith.constant 2 : i32
    %273 = arith.addi %272, %c2_i32_74 : i32
    %c0_75 = arith.constant 0 : index
    %274 = arith.index_cast %273 : i32 to index
    %c0_76 = arith.constant 0 : index
    %c0_77 = arith.constant 0 : index
    %275 = vector.load %arg2[%c0_75, %274, %c0_76, %c0_77] : memref<1x16x9x256xf32, #tpu.memory_space<vmem>>, vector<1x1x9x256xf32>
    %276 = vector.shape_cast %275 : vector<1x1x9x256xf32> to vector<9x256xf32>
    %cst_78 = arith.constant 0.000000e+00 : f32
    %277 = vector.broadcast %cst_78 : f32 to vector<8x128xf32>
    %278 = vector.extract_strided_slice %266 {offsets = [0, 0], sizes = [9, 128], strides = [1, 1]} : vector<9x256xf32> to vector<9x128xf32>
    %279 = vector.extract_strided_slice %266 {offsets = [0, 128], sizes = [9, 128], strides = [1, 1]} : vector<9x256xf32> to vector<9x128xf32>
    %280 = vector.extract_strided_slice %278 {offsets = [0, 0], sizes = [8, 128], strides = [1, 1]} : vector<9x128xf32> to vector<8x128xf32>
    %281 = vector.extract_strided_slice %3 {offsets = [0, 0, 0], sizes = [1, 1, 128], strides = [1, 1, 1]} : vector<9x1x128xf32> to vector<1x1x128xf32>
    %282 = vector.shape_cast %281 : vector<1x1x128xf32> to vector<1x128xf32>
    %283 = vector.broadcast %282 : vector<1x128xf32> to vector<8x128xf32>
    %284 = arith.mulf %280, %283 : vector<8x128xf32>
    %285 = arith.addf %277, %284 : vector<8x128xf32>
    %286 = vector.extract_strided_slice %279 {offsets = [0, 0], sizes = [8, 128], strides = [1, 1]} : vector<9x128xf32> to vector<8x128xf32>
    %287 = vector.extract_strided_slice %3 {offsets = [1, 0, 0], sizes = [1, 1, 128], strides = [1, 1, 1]} : vector<9x1x128xf32> to vector<1x1x128xf32>
    %288 = vector.shape_cast %287 : vector<1x1x128xf32> to vector<1x128xf32>
    %289 = vector.broadcast %288 : vector<1x128xf32> to vector<8x128xf32>
    %290 = arith.mulf %286, %289 : vector<8x128xf32>
    %291 = arith.addf %285, %290 : vector<8x128xf32>
    %292 = vector.extract_strided_slice %278 {offsets = [1, 0], sizes = [8, 128], strides = [1, 1]} : vector<9x128xf32> to vector<8x128xf32>
    %293 = vector.extract_strided_slice %3 {offsets = [2, 0, 0], sizes = [1, 1, 128], strides = [1, 1, 1]} : vector<9x1x128xf32> to vector<1x1x128xf32>
    %294 = vector.shape_cast %293 : vector<1x1x128xf32> to vector<1x128xf32>
    %295 = vector.broadcast %294 : vector<1x128xf32> to vector<8x128xf32>
    %296 = arith.mulf %292, %295 : vector<8x128xf32>
    %297 = arith.addf %291, %296 : vector<8x128xf32>
    %298 = vector.extract_strided_slice %271 {offsets = [0, 0], sizes = [9, 128], strides = [1, 1]} : vector<9x256xf32> to vector<9x128xf32>
    %299 = vector.extract_strided_slice %271 {offsets = [0, 128], sizes = [9, 128], strides = [1, 1]} : vector<9x256xf32> to vector<9x128xf32>
    %300 = vector.extract_strided_slice %298 {offsets = [0, 0], sizes = [8, 128], strides = [1, 1]} : vector<9x128xf32> to vector<8x128xf32>
    %301 = vector.extract_strided_slice %3 {offsets = [3, 0, 0], sizes = [1, 1, 128], strides = [1, 1, 1]} : vector<9x1x128xf32> to vector<1x1x128xf32>
    %302 = vector.shape_cast %301 : vector<1x1x128xf32> to vector<1x128xf32>
    %303 = vector.broadcast %302 : vector<1x128xf32> to vector<8x128xf32>
    %304 = arith.mulf %300, %303 : vector<8x128xf32>
    %305 = arith.addf %297, %304 : vector<8x128xf32>
    %306 = vector.extract_strided_slice %299 {offsets = [0, 0], sizes = [8, 128], strides = [1, 1]} : vector<9x128xf32> to vector<8x128xf32>
    %307 = vector.extract_strided_slice %3 {offsets = [4, 0, 0], sizes = [1, 1, 128], strides = [1, 1, 1]} : vector<9x1x128xf32> to vector<1x1x128xf32>
    %308 = vector.shape_cast %307 : vector<1x1x128xf32> to vector<1x128xf32>
    %309 = vector.broadcast %308 : vector<1x128xf32> to vector<8x128xf32>
    %310 = arith.mulf %306, %309 : vector<8x128xf32>
    %311 = arith.addf %305, %310 : vector<8x128xf32>
    %312 = vector.extract_strided_slice %298 {offsets = [1, 0], sizes = [8, 128], strides = [1, 1]} : vector<9x128xf32> to vector<8x128xf32>
    %313 = vector.extract_strided_slice %3 {offsets = [5, 0, 0], sizes = [1, 1, 128], strides = [1, 1, 1]} : vector<9x1x128xf32> to vector<1x1x128xf32>
    %314 = vector.shape_cast %313 : vector<1x1x128xf32> to vector<1x128xf32>
    %315 = vector.broadcast %314 : vector<1x128xf32> to vector<8x128xf32>
    %316 = arith.mulf %312, %315 : vector<8x128xf32>
    %317 = arith.addf %311, %316 : vector<8x128xf32>
    %318 = vector.extract_strided_slice %276 {offsets = [0, 0], sizes = [9, 128], strides = [1, 1]} : vector<9x256xf32> to vector<9x128xf32>
    %319 = vector.extract_strided_slice %276 {offsets = [0, 128], sizes = [9, 128], strides = [1, 1]} : vector<9x256xf32> to vector<9x128xf32>
    %320 = vector.extract_strided_slice %318 {offsets = [0, 0], sizes = [8, 128], strides = [1, 1]} : vector<9x128xf32> to vector<8x128xf32>
    %321 = vector.extract_strided_slice %3 {offsets = [6, 0, 0], sizes = [1, 1, 128], strides = [1, 1, 1]} : vector<9x1x128xf32> to vector<1x1x128xf32>
    %322 = vector.shape_cast %321 : vector<1x1x128xf32> to vector<1x128xf32>
    %323 = vector.broadcast %322 : vector<1x128xf32> to vector<8x128xf32>
    %324 = arith.mulf %320, %323 : vector<8x128xf32>
    %325 = arith.addf %317, %324 : vector<8x128xf32>
    %326 = vector.extract_strided_slice %319 {offsets = [0, 0], sizes = [8, 128], strides = [1, 1]} : vector<9x128xf32> to vector<8x128xf32>
    %327 = vector.extract_strided_slice %3 {offsets = [7, 0, 0], sizes = [1, 1, 128], strides = [1, 1, 1]} : vector<9x1x128xf32> to vector<1x1x128xf32>
    %328 = vector.shape_cast %327 : vector<1x1x128xf32> to vector<1x128xf32>
    %329 = vector.broadcast %328 : vector<1x128xf32> to vector<8x128xf32>
    %330 = arith.mulf %326, %329 : vector<8x128xf32>
    %331 = arith.addf %325, %330 : vector<8x128xf32>
    %332 = vector.extract_strided_slice %318 {offsets = [1, 0], sizes = [8, 128], strides = [1, 1]} : vector<9x128xf32> to vector<8x128xf32>
    %333 = vector.extract_strided_slice %3 {offsets = [8, 0, 0], sizes = [1, 1, 128], strides = [1, 1, 1]} : vector<9x1x128xf32> to vector<1x1x128xf32>
    %334 = vector.shape_cast %333 : vector<1x1x128xf32> to vector<1x128xf32>
    %335 = vector.broadcast %334 : vector<1x128xf32> to vector<8x128xf32>
    %336 = arith.mulf %332, %335 : vector<8x128xf32>
    %337 = arith.addf %331, %336 : vector<8x128xf32>
    %c0_79 = arith.constant 0 : index
    %338 = arith.index_cast %c3_i32 : i32 to index
    %c0_80 = arith.constant 0 : index
    %c0_81 = arith.constant 0 : index
    %339 = vector.load %arg5[%c0_79, %338, %c0_80, %c0_81] : memref<1x8x8x128xf32, #tpu.memory_space<vmem>>, vector<1x1x8x128xf32>
    %340 = vector.shape_cast %339 : vector<1x1x8x128xf32> to vector<8x128xf32>
    %341 = vector.shape_cast %337 : vector<8x128xf32> to vector<1x1x8x128xf32>
    tpu.vector_store %arg5[%c0_79, %338, %c0_80, %c0_81], %341 {strides = array<i32>} : memref<1x8x8x128xf32, #tpu.memory_space<vmem>>, vector<1x1x8x128xf32>,
    %cst_82 = arith.constant dense<0.000000e+00> : vector<128xf32>
    %342 = vector.multi_reduction <add>, %337, %cst_82 [0] : vector<8x128xf32> to vector<128xf32>
    %343 = vector.shape_cast %342 : vector<128xf32> to vector<1x128xf32>
    %344 = arith.addf %258, %343 : vector<1x128xf32>
    %345 = arith.mulf %337, %337 : vector<8x128xf32>
    %cst_83 = arith.constant dense<0.000000e+00> : vector<128xf32>
    %346 = vector.multi_reduction <add>, %345, %cst_83 [0] : vector<8x128xf32> to vector<128xf32>
    %347 = vector.shape_cast %346 : vector<128xf32> to vector<1x128xf32>
    %348 = arith.addf %262, %347 : vector<1x128xf32>
    %c4_i32 = arith.constant 4 : i32
    %c2_i32_84 = arith.constant 2 : i32
    %349 = arith.muli %c2_i32_84, %c4_i32 : i32
    %c0_85 = arith.constant 0 : index
    %350 = arith.index_cast %349 : i32 to index
    %c0_86 = arith.constant 0 : index
    %c0_87 = arith.constant 0 : index
    %351 = vector.load %arg2[%c0_85, %350, %c0_86, %c0_87] : memref<1x16x9x256xf32, #tpu.memory_space<vmem>>, vector<1x1x9x256xf32>
    %352 = vector.shape_cast %351 : vector<1x1x9x256xf32> to vector<9x256xf32>
    %c2_i32_88 = arith.constant 2 : i32
    %353 = arith.muli %c2_i32_88, %c4_i32 : i32
    %c1_i32_89 = arith.constant 1 : i32
    %354 = arith.addi %353, %c1_i32_89 : i32
    %c0_90 = arith.constant 0 : index
    %355 = arith.index_cast %354 : i32 to index
    %c0_91 = arith.constant 0 : index
    %c0_92 = arith.constant 0 : index
    %356 = vector.load %arg2[%c0_90, %355, %c0_91, %c0_92] : memref<1x16x9x256xf32, #tpu.memory_space<vmem>>, vector<1x1x9x256xf32>
    %357 = vector.shape_cast %356 : vector<1x1x9x256xf32> to vector<9x256xf32>
    %c2_i32_93 = arith.constant 2 : i32
    %358 = arith.muli %c2_i32_93, %c4_i32 : i32
    %c2_i32_94 = arith.constant 2 : i32
    %359 = arith.addi %358, %c2_i32_94 : i32
    %c0_95 = arith.constant 0 : index
    %360 = arith.index_cast %359 : i32 to index
    %c0_96 = arith.constant 0 : index
    %c0_97 = arith.constant 0 : index
    %361 = vector.load %arg2[%c0_95, %360, %c0_96, %c0_97] : memref<1x16x9x256xf32, #tpu.memory_space<vmem>>, vector<1x1x9x256xf32>
    %362 = vector.shape_cast %361 : vector<1x1x9x256xf32> to vector<9x256xf32>
    %cst_98 = arith.constant 0.000000e+00 : f32
    %363 = vector.broadcast %cst_98 : f32 to vector<8x128xf32>
    %364 = vector.extract_strided_slice %352 {offsets = [0, 0], sizes = [9, 128], strides = [1, 1]} : vector<9x256xf32> to vector<9x128xf32>
    %365 = vector.extract_strided_slice %352 {offsets = [0, 128], sizes = [9, 128], strides = [1, 1]} : vector<9x256xf32> to vector<9x128xf32>
    %366 = vector.extract_strided_slice %364 {offsets = [0, 0], sizes = [8, 128], strides = [1, 1]} : vector<9x128xf32> to vector<8x128xf32>
    %367 = vector.extract_strided_slice %3 {offsets = [0, 0, 0], sizes = [1, 1, 128], strides = [1, 1, 1]} : vector<9x1x128xf32> to vector<1x1x128xf32>
    %368 = vector.shape_cast %367 : vector<1x1x128xf32> to vector<1x128xf32>
    %369 = vector.broadcast %368 : vector<1x128xf32> to vector<8x128xf32>
    %370 = arith.mulf %366, %369 : vector<8x128xf32>
    %371 = arith.addf %363, %370 : vector<8x128xf32>
    %372 = vector.extract_strided_slice %365 {offsets = [0, 0], sizes = [8, 128], strides = [1, 1]} : vector<9x128xf32> to vector<8x128xf32>
    %373 = vector.extract_strided_slice %3 {offsets = [1, 0, 0], sizes = [1, 1, 128], strides = [1, 1, 1]} : vector<9x1x128xf32> to vector<1x1x128xf32>
    %374 = vector.shape_cast %373 : vector<1x1x128xf32> to vector<1x128xf32>
    %375 = vector.broadcast %374 : vector<1x128xf32> to vector<8x128xf32>
    %376 = arith.mulf %372, %375 : vector<8x128xf32>
    %377 = arith.addf %371, %376 : vector<8x128xf32>
    %378 = vector.extract_strided_slice %364 {offsets = [1, 0], sizes = [8, 128], strides = [1, 1]} : vector<9x128xf32> to vector<8x128xf32>
    %379 = vector.extract_strided_slice %3 {offsets = [2, 0, 0], sizes = [1, 1, 128], strides = [1, 1, 1]} : vector<9x1x128xf32> to vector<1x1x128xf32>
    %380 = vector.shape_cast %379 : vector<1x1x128xf32> to vector<1x128xf32>
    %381 = vector.broadcast %380 : vector<1x128xf32> to vector<8x128xf32>
    %382 = arith.mulf %378, %381 : vector<8x128xf32>
    %383 = arith.addf %377, %382 : vector<8x128xf32>
    %384 = vector.extract_strided_slice %357 {offsets = [0, 0], sizes = [9, 128], strides = [1, 1]} : vector<9x256xf32> to vector<9x128xf32>
    %385 = vector.extract_strided_slice %357 {offsets = [0, 128], sizes = [9, 128], strides = [1, 1]} : vector<9x256xf32> to vector<9x128xf32>
    %386 = vector.extract_strided_slice %384 {offsets = [0, 0], sizes = [8, 128], strides = [1, 1]} : vector<9x128xf32> to vector<8x128xf32>
    %387 = vector.extract_strided_slice %3 {offsets = [3, 0, 0], sizes = [1, 1, 128], strides = [1, 1, 1]} : vector<9x1x128xf32> to vector<1x1x128xf32>
    %388 = vector.shape_cast %387 : vector<1x1x128xf32> to vector<1x128xf32>
    %389 = vector.broadcast %388 : vector<1x128xf32> to vector<8x128xf32>
    %390 = arith.mulf %386, %389 : vector<8x128xf32>
    %391 = arith.addf %383, %390 : vector<8x128xf32>
    %392 = vector.extract_strided_slice %385 {offsets = [0, 0], sizes = [8, 128], strides = [1, 1]} : vector<9x128xf32> to vector<8x128xf32>
    %393 = vector.extract_strided_slice %3 {offsets = [4, 0, 0], sizes = [1, 1, 128], strides = [1, 1, 1]} : vector<9x1x128xf32> to vector<1x1x128xf32>
    %394 = vector.shape_cast %393 : vector<1x1x128xf32> to vector<1x128xf32>
    %395 = vector.broadcast %394 : vector<1x128xf32> to vector<8x128xf32>
    %396 = arith.mulf %392, %395 : vector<8x128xf32>
    %397 = arith.addf %391, %396 : vector<8x128xf32>
    %398 = vector.extract_strided_slice %384 {offsets = [1, 0], sizes = [8, 128], strides = [1, 1]} : vector<9x128xf32> to vector<8x128xf32>
    %399 = vector.extract_strided_slice %3 {offsets = [5, 0, 0], sizes = [1, 1, 128], strides = [1, 1, 1]} : vector<9x1x128xf32> to vector<1x1x128xf32>
    %400 = vector.shape_cast %399 : vector<1x1x128xf32> to vector<1x128xf32>
    %401 = vector.broadcast %400 : vector<1x128xf32> to vector<8x128xf32>
    %402 = arith.mulf %398, %401 : vector<8x128xf32>
    %403 = arith.addf %397, %402 : vector<8x128xf32>
    %404 = vector.extract_strided_slice %362 {offsets = [0, 0], sizes = [9, 128], strides = [1, 1]} : vector<9x256xf32> to vector<9x128xf32>
    %405 = vector.extract_strided_slice %362 {offsets = [0, 128], sizes = [9, 128], strides = [1, 1]} : vector<9x256xf32> to vector<9x128xf32>
    %406 = vector.extract_strided_slice %404 {offsets = [0, 0], sizes = [8, 128], strides = [1, 1]} : vector<9x128xf32> to vector<8x128xf32>
    %407 = vector.extract_strided_slice %3 {offsets = [6, 0, 0], sizes = [1, 1, 128], strides = [1, 1, 1]} : vector<9x1x128xf32> to vector<1x1x128xf32>
    %408 = vector.shape_cast %407 : vector<1x1x128xf32> to vector<1x128xf32>
    %409 = vector.broadcast %408 : vector<1x128xf32> to vector<8x128xf32>
    %410 = arith.mulf %406, %409 : vector<8x128xf32>
    %411 = arith.addf %403, %410 : vector<8x128xf32>
    %412 = vector.extract_strided_slice %405 {offsets = [0, 0], sizes = [8, 128], strides = [1, 1]} : vector<9x128xf32> to vector<8x128xf32>
    %413 = vector.extract_strided_slice %3 {offsets = [7, 0, 0], sizes = [1, 1, 128], strides = [1, 1, 1]} : vector<9x1x128xf32> to vector<1x1x128xf32>
    %414 = vector.shape_cast %413 : vector<1x1x128xf32> to vector<1x128xf32>
    %415 = vector.broadcast %414 : vector<1x128xf32> to vector<8x128xf32>
    %416 = arith.mulf %412, %415 : vector<8x128xf32>
    %417 = arith.addf %411, %416 : vector<8x128xf32>
    %418 = vector.extract_strided_slice %404 {offsets = [1, 0], sizes = [8, 128], strides = [1, 1]} : vector<9x128xf32> to vector<8x128xf32>
    %419 = vector.extract_strided_slice %3 {offsets = [8, 0, 0], sizes = [1, 1, 128], strides = [1, 1, 1]} : vector<9x1x128xf32> to vector<1x1x128xf32>
    %420 = vector.shape_cast %419 : vector<1x1x128xf32> to vector<1x128xf32>
    %421 = vector.broadcast %420 : vector<1x128xf32> to vector<8x128xf32>
    %422 = arith.mulf %418, %421 : vector<8x128xf32>
    %423 = arith.addf %417, %422 : vector<8x128xf32>
    %c0_99 = arith.constant 0 : index
    %424 = arith.index_cast %c4_i32 : i32 to index
    %c0_100 = arith.constant 0 : index
    %c0_101 = arith.constant 0 : index
    %425 = vector.load %arg5[%c0_99, %424, %c0_100, %c0_101] : memref<1x8x8x128xf32, #tpu.memory_space<vmem>>, vector<1x1x8x128xf32>
    %426 = vector.shape_cast %425 : vector<1x1x8x128xf32> to vector<8x128xf32>
    %427 = vector.shape_cast %423 : vector<8x128xf32> to vector<1x1x8x128xf32>
    tpu.vector_store %arg5[%c0_99, %424, %c0_100, %c0_101], %427 {strides = array<i32>} : memref<1x8x8x128xf32, #tpu.memory_space<vmem>>, vector<1x1x8x128xf32>,
    %cst_102 = arith.constant dense<0.000000e+00> : vector<128xf32>
    %428 = vector.multi_reduction <add>, %423, %cst_102 [0] : vector<8x128xf32> to vector<128xf32>
    %429 = vector.shape_cast %428 : vector<128xf32> to vector<1x128xf32>
    %430 = arith.addf %344, %429 : vector<1x128xf32>
    %431 = arith.mulf %423, %423 : vector<8x128xf32>
    %cst_103 = arith.constant dense<0.000000e+00> : vector<128xf32>
    %432 = vector.multi_reduction <add>, %431, %cst_103 [0] : vector<8x128xf32> to vector<128xf32>
    %433 = vector.shape_cast %432 : vector<128xf32> to vector<1x128xf32>
    %434 = arith.addf %348, %433 : vector<1x128xf32>
    %c5_i32 = arith.constant 5 : i32
    %c2_i32_104 = arith.constant 2 : i32
    %435 = arith.muli %c2_i32_104, %c5_i32 : i32
    %c0_105 = arith.constant 0 : index
    %436 = arith.index_cast %435 : i32 to index
    %c0_106 = arith.constant 0 : index
    %c0_107 = arith.constant 0 : index
    %437 = vector.load %arg2[%c0_105, %436, %c0_106, %c0_107] : memref<1x16x9x256xf32, #tpu.memory_space<vmem>>, vector<1x1x9x256xf32>
    %438 = vector.shape_cast %437 : vector<1x1x9x256xf32> to vector<9x256xf32>
    %c2_i32_108 = arith.constant 2 : i32
    %439 = arith.muli %c2_i32_108, %c5_i32 : i32
    %c1_i32_109 = arith.constant 1 : i32
    %440 = arith.addi %439, %c1_i32_109 : i32
    %c0_110 = arith.constant 0 : index
    %441 = arith.index_cast %440 : i32 to index
    %c0_111 = arith.constant 0 : index
    %c0_112 = arith.constant 0 : index
    %442 = vector.load %arg2[%c0_110, %441, %c0_111, %c0_112] : memref<1x16x9x256xf32, #tpu.memory_space<vmem>>, vector<1x1x9x256xf32>
    %443 = vector.shape_cast %442 : vector<1x1x9x256xf32> to vector<9x256xf32>
    %c2_i32_113 = arith.constant 2 : i32
    %444 = arith.muli %c2_i32_113, %c5_i32 : i32
    %c2_i32_114 = arith.constant 2 : i32
    %445 = arith.addi %444, %c2_i32_114 : i32
    %c0_115 = arith.constant 0 : index
    %446 = arith.index_cast %445 : i32 to index
    %c0_116 = arith.constant 0 : index
    %c0_117 = arith.constant 0 : index
    %447 = vector.load %arg2[%c0_115, %446, %c0_116, %c0_117] : memref<1x16x9x256xf32, #tpu.memory_space<vmem>>, vector<1x1x9x256xf32>
    %448 = vector.shape_cast %447 : vector<1x1x9x256xf32> to vector<9x256xf32>
    %cst_118 = arith.constant 0.000000e+00 : f32
    %449 = vector.broadcast %cst_118 : f32 to vector<8x128xf32>
    %450 = vector.extract_strided_slice %438 {offsets = [0, 0], sizes = [9, 128], strides = [1, 1]} : vector<9x256xf32> to vector<9x128xf32>
    %451 = vector.extract_strided_slice %438 {offsets = [0, 128], sizes = [9, 128], strides = [1, 1]} : vector<9x256xf32> to vector<9x128xf32>
    %452 = vector.extract_strided_slice %450 {offsets = [0, 0], sizes = [8, 128], strides = [1, 1]} : vector<9x128xf32> to vector<8x128xf32>
    %453 = vector.extract_strided_slice %3 {offsets = [0, 0, 0], sizes = [1, 1, 128], strides = [1, 1, 1]} : vector<9x1x128xf32> to vector<1x1x128xf32>
    %454 = vector.shape_cast %453 : vector<1x1x128xf32> to vector<1x128xf32>
    %455 = vector.broadcast %454 : vector<1x128xf32> to vector<8x128xf32>
    %456 = arith.mulf %452, %455 : vector<8x128xf32>
    %457 = arith.addf %449, %456 : vector<8x128xf32>
    %458 = vector.extract_strided_slice %451 {offsets = [0, 0], sizes = [8, 128], strides = [1, 1]} : vector<9x128xf32> to vector<8x128xf32>
    %459 = vector.extract_strided_slice %3 {offsets = [1, 0, 0], sizes = [1, 1, 128], strides = [1, 1, 1]} : vector<9x1x128xf32> to vector<1x1x128xf32>
    %460 = vector.shape_cast %459 : vector<1x1x128xf32> to vector<1x128xf32>
    %461 = vector.broadcast %460 : vector<1x128xf32> to vector<8x128xf32>
    %462 = arith.mulf %458, %461 : vector<8x128xf32>
    %463 = arith.addf %457, %462 : vector<8x128xf32>
    %464 = vector.extract_strided_slice %450 {offsets = [1, 0], sizes = [8, 128], strides = [1, 1]} : vector<9x128xf32> to vector<8x128xf32>
    %465 = vector.extract_strided_slice %3 {offsets = [2, 0, 0], sizes = [1, 1, 128], strides = [1, 1, 1]} : vector<9x1x128xf32> to vector<1x1x128xf32>
    %466 = vector.shape_cast %465 : vector<1x1x128xf32> to vector<1x128xf32>
    %467 = vector.broadcast %466 : vector<1x128xf32> to vector<8x128xf32>
    %468 = arith.mulf %464, %467 : vector<8x128xf32>
    %469 = arith.addf %463, %468 : vector<8x128xf32>
    %470 = vector.extract_strided_slice %443 {offsets = [0, 0], sizes = [9, 128], strides = [1, 1]} : vector<9x256xf32> to vector<9x128xf32>
    %471 = vector.extract_strided_slice %443 {offsets = [0, 128], sizes = [9, 128], strides = [1, 1]} : vector<9x256xf32> to vector<9x128xf32>
    %472 = vector.extract_strided_slice %470 {offsets = [0, 0], sizes = [8, 128], strides = [1, 1]} : vector<9x128xf32> to vector<8x128xf32>
    %473 = vector.extract_strided_slice %3 {offsets = [3, 0, 0], sizes = [1, 1, 128], strides = [1, 1, 1]} : vector<9x1x128xf32> to vector<1x1x128xf32>
    %474 = vector.shape_cast %473 : vector<1x1x128xf32> to vector<1x128xf32>
    %475 = vector.broadcast %474 : vector<1x128xf32> to vector<8x128xf32>
    %476 = arith.mulf %472, %475 : vector<8x128xf32>
    %477 = arith.addf %469, %476 : vector<8x128xf32>
    %478 = vector.extract_strided_slice %471 {offsets = [0, 0], sizes = [8, 128], strides = [1, 1]} : vector<9x128xf32> to vector<8x128xf32>
    %479 = vector.extract_strided_slice %3 {offsets = [4, 0, 0], sizes = [1, 1, 128], strides = [1, 1, 1]} : vector<9x1x128xf32> to vector<1x1x128xf32>
    %480 = vector.shape_cast %479 : vector<1x1x128xf32> to vector<1x128xf32>
    %481 = vector.broadcast %480 : vector<1x128xf32> to vector<8x128xf32>
    %482 = arith.mulf %478, %481 : vector<8x128xf32>
    %483 = arith.addf %477, %482 : vector<8x128xf32>
    %484 = vector.extract_strided_slice %470 {offsets = [1, 0], sizes = [8, 128], strides = [1, 1]} : vector<9x128xf32> to vector<8x128xf32>
    %485 = vector.extract_strided_slice %3 {offsets = [5, 0, 0], sizes = [1, 1, 128], strides = [1, 1, 1]} : vector<9x1x128xf32> to vector<1x1x128xf32>
    %486 = vector.shape_cast %485 : vector<1x1x128xf32> to vector<1x128xf32>
    %487 = vector.broadcast %486 : vector<1x128xf32> to vector<8x128xf32>
    %488 = arith.mulf %484, %487 : vector<8x128xf32>
    %489 = arith.addf %483, %488 : vector<8x128xf32>
    %490 = vector.extract_strided_slice %448 {offsets = [0, 0], sizes = [9, 128], strides = [1, 1]} : vector<9x256xf32> to vector<9x128xf32>
    %491 = vector.extract_strided_slice %448 {offsets = [0, 128], sizes = [9, 128], strides = [1, 1]} : vector<9x256xf32> to vector<9x128xf32>
    %492 = vector.extract_strided_slice %490 {offsets = [0, 0], sizes = [8, 128], strides = [1, 1]} : vector<9x128xf32> to vector<8x128xf32>
    %493 = vector.extract_strided_slice %3 {offsets = [6, 0, 0], sizes = [1, 1, 128], strides = [1, 1, 1]} : vector<9x1x128xf32> to vector<1x1x128xf32>
    %494 = vector.shape_cast %493 : vector<1x1x128xf32> to vector<1x128xf32>
    %495 = vector.broadcast %494 : vector<1x128xf32> to vector<8x128xf32>
    %496 = arith.mulf %492, %495 : vector<8x128xf32>
    %497 = arith.addf %489, %496 : vector<8x128xf32>
    %498 = vector.extract_strided_slice %491 {offsets = [0, 0], sizes = [8, 128], strides = [1, 1]} : vector<9x128xf32> to vector<8x128xf32>
    %499 = vector.extract_strided_slice %3 {offsets = [7, 0, 0], sizes = [1, 1, 128], strides = [1, 1, 1]} : vector<9x1x128xf32> to vector<1x1x128xf32>
    %500 = vector.shape_cast %499 : vector<1x1x128xf32> to vector<1x128xf32>
    %501 = vector.broadcast %500 : vector<1x128xf32> to vector<8x128xf32>
    %502 = arith.mulf %498, %501 : vector<8x128xf32>
    %503 = arith.addf %497, %502 : vector<8x128xf32>
    %504 = vector.extract_strided_slice %490 {offsets = [1, 0], sizes = [8, 128], strides = [1, 1]} : vector<9x128xf32> to vector<8x128xf32>
    %505 = vector.extract_strided_slice %3 {offsets = [8, 0, 0], sizes = [1, 1, 128], strides = [1, 1, 1]} : vector<9x1x128xf32> to vector<1x1x128xf32>
    %506 = vector.shape_cast %505 : vector<1x1x128xf32> to vector<1x128xf32>
    %507 = vector.broadcast %506 : vector<1x128xf32> to vector<8x128xf32>
    %508 = arith.mulf %504, %507 : vector<8x128xf32>
    %509 = arith.addf %503, %508 : vector<8x128xf32>
    %c0_119 = arith.constant 0 : index
    %510 = arith.index_cast %c5_i32 : i32 to index
    %c0_120 = arith.constant 0 : index
    %c0_121 = arith.constant 0 : index
    %511 = vector.load %arg5[%c0_119, %510, %c0_120, %c0_121] : memref<1x8x8x128xf32, #tpu.memory_space<vmem>>, vector<1x1x8x128xf32>
    %512 = vector.shape_cast %511 : vector<1x1x8x128xf32> to vector<8x128xf32>
    %513 = vector.shape_cast %509 : vector<8x128xf32> to vector<1x1x8x128xf32>
    tpu.vector_store %arg5[%c0_119, %510, %c0_120, %c0_121], %513 {strides = array<i32>} : memref<1x8x8x128xf32, #tpu.memory_space<vmem>>, vector<1x1x8x128xf32>,
    %cst_122 = arith.constant dense<0.000000e+00> : vector<128xf32>
    %514 = vector.multi_reduction <add>, %509, %cst_122 [0] : vector<8x128xf32> to vector<128xf32>
    %515 = vector.shape_cast %514 : vector<128xf32> to vector<1x128xf32>
    %516 = arith.addf %430, %515 : vector<1x128xf32>
    %517 = arith.mulf %509, %509 : vector<8x128xf32>
    %cst_123 = arith.constant dense<0.000000e+00> : vector<128xf32>
    %518 = vector.multi_reduction <add>, %517, %cst_123 [0] : vector<8x128xf32> to vector<128xf32>
    %519 = vector.shape_cast %518 : vector<128xf32> to vector<1x128xf32>
    %520 = arith.addf %434, %519 : vector<1x128xf32>
    %c6_i32 = arith.constant 6 : i32
    %c2_i32_124 = arith.constant 2 : i32
    %521 = arith.muli %c2_i32_124, %c6_i32 : i32
    %c0_125 = arith.constant 0 : index
    %522 = arith.index_cast %521 : i32 to index
    %c0_126 = arith.constant 0 : index
    %c0_127 = arith.constant 0 : index
    %523 = vector.load %arg2[%c0_125, %522, %c0_126, %c0_127] : memref<1x16x9x256xf32, #tpu.memory_space<vmem>>, vector<1x1x9x256xf32>
    %524 = vector.shape_cast %523 : vector<1x1x9x256xf32> to vector<9x256xf32>
    %c2_i32_128 = arith.constant 2 : i32
    %525 = arith.muli %c2_i32_128, %c6_i32 : i32
    %c1_i32_129 = arith.constant 1 : i32
    %526 = arith.addi %525, %c1_i32_129 : i32
    %c0_130 = arith.constant 0 : index
    %527 = arith.index_cast %526 : i32 to index
    %c0_131 = arith.constant 0 : index
    %c0_132 = arith.constant 0 : index
    %528 = vector.load %arg2[%c0_130, %527, %c0_131, %c0_132] : memref<1x16x9x256xf32, #tpu.memory_space<vmem>>, vector<1x1x9x256xf32>
    %529 = vector.shape_cast %528 : vector<1x1x9x256xf32> to vector<9x256xf32>
    %c2_i32_133 = arith.constant 2 : i32
    %530 = arith.muli %c2_i32_133, %c6_i32 : i32
    %c2_i32_134 = arith.constant 2 : i32
    %531 = arith.addi %530, %c2_i32_134 : i32
    %c0_135 = arith.constant 0 : index
    %532 = arith.index_cast %531 : i32 to index
    %c0_136 = arith.constant 0 : index
    %c0_137 = arith.constant 0 : index
    %533 = vector.load %arg2[%c0_135, %532, %c0_136, %c0_137] : memref<1x16x9x256xf32, #tpu.memory_space<vmem>>, vector<1x1x9x256xf32>
    %534 = vector.shape_cast %533 : vector<1x1x9x256xf32> to vector<9x256xf32>
    %cst_138 = arith.constant 0.000000e+00 : f32
    %535 = vector.broadcast %cst_138 : f32 to vector<8x128xf32>
    %536 = vector.extract_strided_slice %524 {offsets = [0, 0], sizes = [9, 128], strides = [1, 1]} : vector<9x256xf32> to vector<9x128xf32>
    %537 = vector.extract_strided_slice %524 {offsets = [0, 128], sizes = [9, 128], strides = [1, 1]} : vector<9x256xf32> to vector<9x128xf32>
    %538 = vector.extract_strided_slice %536 {offsets = [0, 0], sizes = [8, 128], strides = [1, 1]} : vector<9x128xf32> to vector<8x128xf32>
    %539 = vector.extract_strided_slice %3 {offsets = [0, 0, 0], sizes = [1, 1, 128], strides = [1, 1, 1]} : vector<9x1x128xf32> to vector<1x1x128xf32>
    %540 = vector.shape_cast %539 : vector<1x1x128xf32> to vector<1x128xf32>
    %541 = vector.broadcast %540 : vector<1x128xf32> to vector<8x128xf32>
    %542 = arith.mulf %538, %541 : vector<8x128xf32>
    %543 = arith.addf %535, %542 : vector<8x128xf32>
    %544 = vector.extract_strided_slice %537 {offsets = [0, 0], sizes = [8, 128], strides = [1, 1]} : vector<9x128xf32> to vector<8x128xf32>
    %545 = vector.extract_strided_slice %3 {offsets = [1, 0, 0], sizes = [1, 1, 128], strides = [1, 1, 1]} : vector<9x1x128xf32> to vector<1x1x128xf32>
    %546 = vector.shape_cast %545 : vector<1x1x128xf32> to vector<1x128xf32>
    %547 = vector.broadcast %546 : vector<1x128xf32> to vector<8x128xf32>
    %548 = arith.mulf %544, %547 : vector<8x128xf32>
    %549 = arith.addf %543, %548 : vector<8x128xf32>
    %550 = vector.extract_strided_slice %536 {offsets = [1, 0], sizes = [8, 128], strides = [1, 1]} : vector<9x128xf32> to vector<8x128xf32>
    %551 = vector.extract_strided_slice %3 {offsets = [2, 0, 0], sizes = [1, 1, 128], strides = [1, 1, 1]} : vector<9x1x128xf32> to vector<1x1x128xf32>
    %552 = vector.shape_cast %551 : vector<1x1x128xf32> to vector<1x128xf32>
    %553 = vector.broadcast %552 : vector<1x128xf32> to vector<8x128xf32>
    %554 = arith.mulf %550, %553 : vector<8x128xf32>
    %555 = arith.addf %549, %554 : vector<8x128xf32>
    %556 = vector.extract_strided_slice %529 {offsets = [0, 0], sizes = [9, 128], strides = [1, 1]} : vector<9x256xf32> to vector<9x128xf32>
    %557 = vector.extract_strided_slice %529 {offsets = [0, 128], sizes = [9, 128], strides = [1, 1]} : vector<9x256xf32> to vector<9x128xf32>
    %558 = vector.extract_strided_slice %556 {offsets = [0, 0], sizes = [8, 128], strides = [1, 1]} : vector<9x128xf32> to vector<8x128xf32>
    %559 = vector.extract_strided_slice %3 {offsets = [3, 0, 0], sizes = [1, 1, 128], strides = [1, 1, 1]} : vector<9x1x128xf32> to vector<1x1x128xf32>
    %560 = vector.shape_cast %559 : vector<1x1x128xf32> to vector<1x128xf32>
    %561 = vector.broadcast %560 : vector<1x128xf32> to vector<8x128xf32>
    %562 = arith.mulf %558, %561 : vector<8x128xf32>
    %563 = arith.addf %555, %562 : vector<8x128xf32>
    %564 = vector.extract_strided_slice %557 {offsets = [0, 0], sizes = [8, 128], strides = [1, 1]} : vector<9x128xf32> to vector<8x128xf32>
    %565 = vector.extract_strided_slice %3 {offsets = [4, 0, 0], sizes = [1, 1, 128], strides = [1, 1, 1]} : vector<9x1x128xf32> to vector<1x1x128xf32>
    %566 = vector.shape_cast %565 : vector<1x1x128xf32> to vector<1x128xf32>
    %567 = vector.broadcast %566 : vector<1x128xf32> to vector<8x128xf32>
    %568 = arith.mulf %564, %567 : vector<8x128xf32>
    %569 = arith.addf %563, %568 : vector<8x128xf32>
    %570 = vector.extract_strided_slice %556 {offsets = [1, 0], sizes = [8, 128], strides = [1, 1]} : vector<9x128xf32> to vector<8x128xf32>
    %571 = vector.extract_strided_slice %3 {offsets = [5, 0, 0], sizes = [1, 1, 128], strides = [1, 1, 1]} : vector<9x1x128xf32> to vector<1x1x128xf32>
    %572 = vector.shape_cast %571 : vector<1x1x128xf32> to vector<1x128xf32>
    %573 = vector.broadcast %572 : vector<1x128xf32> to vector<8x128xf32>
    %574 = arith.mulf %570, %573 : vector<8x128xf32>
    %575 = arith.addf %569, %574 : vector<8x128xf32>
    %576 = vector.extract_strided_slice %534 {offsets = [0, 0], sizes = [9, 128], strides = [1, 1]} : vector<9x256xf32> to vector<9x128xf32>
    %577 = vector.extract_strided_slice %534 {offsets = [0, 128], sizes = [9, 128], strides = [1, 1]} : vector<9x256xf32> to vector<9x128xf32>
    %578 = vector.extract_strided_slice %576 {offsets = [0, 0], sizes = [8, 128], strides = [1, 1]} : vector<9x128xf32> to vector<8x128xf32>
    %579 = vector.extract_strided_slice %3 {offsets = [6, 0, 0], sizes = [1, 1, 128], strides = [1, 1, 1]} : vector<9x1x128xf32> to vector<1x1x128xf32>
    %580 = vector.shape_cast %579 : vector<1x1x128xf32> to vector<1x128xf32>
    %581 = vector.broadcast %580 : vector<1x128xf32> to vector<8x128xf32>
    %582 = arith.mulf %578, %581 : vector<8x128xf32>
    %583 = arith.addf %575, %582 : vector<8x128xf32>
    %584 = vector.extract_strided_slice %577 {offsets = [0, 0], sizes = [8, 128], strides = [1, 1]} : vector<9x128xf32> to vector<8x128xf32>
    %585 = vector.extract_strided_slice %3 {offsets = [7, 0, 0], sizes = [1, 1, 128], strides = [1, 1, 1]} : vector<9x1x128xf32> to vector<1x1x128xf32>
    %586 = vector.shape_cast %585 : vector<1x1x128xf32> to vector<1x128xf32>
    %587 = vector.broadcast %586 : vector<1x128xf32> to vector<8x128xf32>
    %588 = arith.mulf %584, %587 : vector<8x128xf32>
    %589 = arith.addf %583, %588 : vector<8x128xf32>
    %590 = vector.extract_strided_slice %576 {offsets = [1, 0], sizes = [8, 128], strides = [1, 1]} : vector<9x128xf32> to vector<8x128xf32>
    %591 = vector.extract_strided_slice %3 {offsets = [8, 0, 0], sizes = [1, 1, 128], strides = [1, 1, 1]} : vector<9x1x128xf32> to vector<1x1x128xf32>
    %592 = vector.shape_cast %591 : vector<1x1x128xf32> to vector<1x128xf32>
    %593 = vector.broadcast %592 : vector<1x128xf32> to vector<8x128xf32>
    %594 = arith.mulf %590, %593 : vector<8x128xf32>
    %595 = arith.addf %589, %594 : vector<8x128xf32>
    %c0_139 = arith.constant 0 : index
    %596 = arith.index_cast %c6_i32 : i32 to index
    %c0_140 = arith.constant 0 : index
    %c0_141 = arith.constant 0 : index
    %597 = vector.load %arg5[%c0_139, %596, %c0_140, %c0_141] : memref<1x8x8x128xf32, #tpu.memory_space<vmem>>, vector<1x1x8x128xf32>
    %598 = vector.shape_cast %597 : vector<1x1x8x128xf32> to vector<8x128xf32>
    %599 = vector.shape_cast %595 : vector<8x128xf32> to vector<1x1x8x128xf32>
    tpu.vector_store %arg5[%c0_139, %596, %c0_140, %c0_141], %599 {strides = array<i32>} : memref<1x8x8x128xf32, #tpu.memory_space<vmem>>, vector<1x1x8x128xf32>,
    %cst_142 = arith.constant dense<0.000000e+00> : vector<128xf32>
    %600 = vector.multi_reduction <add>, %595, %cst_142 [0] : vector<8x128xf32> to vector<128xf32>
    %601 = vector.shape_cast %600 : vector<128xf32> to vector<1x128xf32>
    %602 = arith.addf %516, %601 : vector<1x128xf32>
    %603 = arith.mulf %595, %595 : vector<8x128xf32>
    %cst_143 = arith.constant dense<0.000000e+00> : vector<128xf32>
    %604 = vector.multi_reduction <add>, %603, %cst_143 [0] : vector<8x128xf32> to vector<128xf32>
    %605 = vector.shape_cast %604 : vector<128xf32> to vector<1x128xf32>
    %606 = arith.addf %520, %605 : vector<1x128xf32>
    %c7_i32 = arith.constant 7 : i32
    %c0_144 = arith.constant 0 : index
    %c14 = arith.constant 14 : index
    %c0_145 = arith.constant 0 : index
    %c0_146 = arith.constant 0 : index
    %607 = vector.load %arg2[%c0_144, %c14, %c0_145, %c0_146] : memref<1x16x9x256xf32, #tpu.memory_space<vmem>>, vector<1x1x9x256xf32>
    %608 = vector.shape_cast %607 : vector<1x1x9x256xf32> to vector<9x256xf32>
    %c0_147 = arith.constant 0 : index
    %c15 = arith.constant 15 : index
    %c0_148 = arith.constant 0 : index
    %c0_149 = arith.constant 0 : index
    %609 = vector.load %arg2[%c0_147, %c15, %c0_148, %c0_149] : memref<1x16x9x256xf32, #tpu.memory_space<vmem>>, vector<1x1x9x256xf32>
    %610 = vector.shape_cast %609 : vector<1x1x9x256xf32> to vector<9x256xf32>
    %c0_150 = arith.constant 0 : index
    %c0_151 = arith.constant 0 : index
    %c0_152 = arith.constant 0 : index
    %c0_153 = arith.constant 0 : index
    %611 = vector.load %arg3[%c0_150, %c0_151, %c0_152, %c0_153] : memref<1x1x9x256xf32, #tpu.memory_space<vmem>>, vector<1x1x9x256xf32>
    %612 = vector.shape_cast %611 : vector<1x1x9x256xf32> to vector<9x256xf32>
    %cst_154 = arith.constant 0.000000e+00 : f32
    %613 = vector.broadcast %cst_154 : f32 to vector<8x128xf32>
    %614 = vector.extract_strided_slice %608 {offsets = [0, 0], sizes = [9, 128], strides = [1, 1]} : vector<9x256xf32> to vector<9x128xf32>
    %615 = vector.extract_strided_slice %608 {offsets = [0, 128], sizes = [9, 128], strides = [1, 1]} : vector<9x256xf32> to vector<9x128xf32>
    %616 = vector.extract_strided_slice %614 {offsets = [0, 0], sizes = [8, 128], strides = [1, 1]} : vector<9x128xf32> to vector<8x128xf32>
    %617 = vector.extract_strided_slice %3 {offsets = [0, 0, 0], sizes = [1, 1, 128], strides = [1, 1, 1]} : vector<9x1x128xf32> to vector<1x1x128xf32>
    %618 = vector.shape_cast %617 : vector<1x1x128xf32> to vector<1x128xf32>
    %619 = vector.broadcast %618 : vector<1x128xf32> to vector<8x128xf32>
    %620 = arith.mulf %616, %619 : vector<8x128xf32>
    %621 = arith.addf %613, %620 : vector<8x128xf32>
    %622 = vector.extract_strided_slice %615 {offsets = [0, 0], sizes = [8, 128], strides = [1, 1]} : vector<9x128xf32> to vector<8x128xf32>
    %623 = vector.extract_strided_slice %3 {offsets = [1, 0, 0], sizes = [1, 1, 128], strides = [1, 1, 1]} : vector<9x1x128xf32> to vector<1x1x128xf32>
    %624 = vector.shape_cast %623 : vector<1x1x128xf32> to vector<1x128xf32>
    %625 = vector.broadcast %624 : vector<1x128xf32> to vector<8x128xf32>
    %626 = arith.mulf %622, %625 : vector<8x128xf32>
    %627 = arith.addf %621, %626 : vector<8x128xf32>
    %628 = vector.extract_strided_slice %614 {offsets = [1, 0], sizes = [8, 128], strides = [1, 1]} : vector<9x128xf32> to vector<8x128xf32>
    %629 = vector.extract_strided_slice %3 {offsets = [2, 0, 0], sizes = [1, 1, 128], strides = [1, 1, 1]} : vector<9x1x128xf32> to vector<1x1x128xf32>
    %630 = vector.shape_cast %629 : vector<1x1x128xf32> to vector<1x128xf32>
    %631 = vector.broadcast %630 : vector<1x128xf32> to vector<8x128xf32>
    %632 = arith.mulf %628, %631 : vector<8x128xf32>
    %633 = arith.addf %627, %632 : vector<8x128xf32>
    %634 = vector.extract_strided_slice %610 {offsets = [0, 0], sizes = [9, 128], strides = [1, 1]} : vector<9x256xf32> to vector<9x128xf32>
    %635 = vector.extract_strided_slice %610 {offsets = [0, 128], sizes = [9, 128], strides = [1, 1]} : vector<9x256xf32> to vector<9x128xf32>
    %636 = vector.extract_strided_slice %634 {offsets = [0, 0], sizes = [8, 128], strides = [1, 1]} : vector<9x128xf32> to vector<8x128xf32>
    %637 = vector.extract_strided_slice %3 {offsets = [3, 0, 0], sizes = [1, 1, 128], strides = [1, 1, 1]} : vector<9x1x128xf32> to vector<1x1x128xf32>
    %638 = vector.shape_cast %637 : vector<1x1x128xf32> to vector<1x128xf32>
    %639 = vector.broadcast %638 : vector<1x128xf32> to vector<8x128xf32>
    %640 = arith.mulf %636, %639 : vector<8x128xf32>
    %641 = arith.addf %633, %640 : vector<8x128xf32>
    %642 = vector.extract_strided_slice %635 {offsets = [0, 0], sizes = [8, 128], strides = [1, 1]} : vector<9x128xf32> to vector<8x128xf32>
    %643 = vector.extract_strided_slice %3 {offsets = [4, 0, 0], sizes = [1, 1, 128], strides = [1, 1, 1]} : vector<9x1x128xf32> to vector<1x1x128xf32>
    %644 = vector.shape_cast %643 : vector<1x1x128xf32> to vector<1x128xf32>
    %645 = vector.broadcast %644 : vector<1x128xf32> to vector<8x128xf32>
    %646 = arith.mulf %642, %645 : vector<8x128xf32>
    %647 = arith.addf %641, %646 : vector<8x128xf32>
    %648 = vector.extract_strided_slice %634 {offsets = [1, 0], sizes = [8, 128], strides = [1, 1]} : vector<9x128xf32> to vector<8x128xf32>
    %649 = vector.extract_strided_slice %3 {offsets = [5, 0, 0], sizes = [1, 1, 128], strides = [1, 1, 1]} : vector<9x1x128xf32> to vector<1x1x128xf32>
    %650 = vector.shape_cast %649 : vector<1x1x128xf32> to vector<1x128xf32>
    %651 = vector.broadcast %650 : vector<1x128xf32> to vector<8x128xf32>
    %652 = arith.mulf %648, %651 : vector<8x128xf32>
    %653 = arith.addf %647, %652 : vector<8x128xf32>
    %654 = vector.extract_strided_slice %612 {offsets = [0, 0], sizes = [9, 128], strides = [1, 1]} : vector<9x256xf32> to vector<9x128xf32>
    %655 = vector.extract_strided_slice %612 {offsets = [0, 128], sizes = [9, 128], strides = [1, 1]} : vector<9x256xf32> to vector<9x128xf32>
    %656 = vector.extract_strided_slice %654 {offsets = [0, 0], sizes = [8, 128], strides = [1, 1]} : vector<9x128xf32> to vector<8x128xf32>
    %657 = vector.extract_strided_slice %3 {offsets = [6, 0, 0], sizes = [1, 1, 128], strides = [1, 1, 1]} : vector<9x1x128xf32> to vector<1x1x128xf32>
    %658 = vector.shape_cast %657 : vector<1x1x128xf32> to vector<1x128xf32>
    %659 = vector.broadcast %658 : vector<1x128xf32> to vector<8x128xf32>
    %660 = arith.mulf %656, %659 : vector<8x128xf32>
    %661 = arith.addf %653, %660 : vector<8x128xf32>
    %662 = vector.extract_strided_slice %655 {offsets = [0, 0], sizes = [8, 128], strides = [1, 1]} : vector<9x128xf32> to vector<8x128xf32>
    %663 = vector.extract_strided_slice %3 {offsets = [7, 0, 0], sizes = [1, 1, 128], strides = [1, 1, 1]} : vector<9x1x128xf32> to vector<1x1x128xf32>
    %664 = vector.shape_cast %663 : vector<1x1x128xf32> to vector<1x128xf32>
    %665 = vector.broadcast %664 : vector<1x128xf32> to vector<8x128xf32>
    %666 = arith.mulf %662, %665 : vector<8x128xf32>
    %667 = arith.addf %661, %666 : vector<8x128xf32>
    %668 = vector.extract_strided_slice %654 {offsets = [1, 0], sizes = [8, 128], strides = [1, 1]} : vector<9x128xf32> to vector<8x128xf32>
    %669 = vector.extract_strided_slice %3 {offsets = [8, 0, 0], sizes = [1, 1, 128], strides = [1, 1, 1]} : vector<9x1x128xf32> to vector<1x1x128xf32>
    %670 = vector.shape_cast %669 : vector<1x1x128xf32> to vector<1x128xf32>
    %671 = vector.broadcast %670 : vector<1x128xf32> to vector<8x128xf32>
    %672 = arith.mulf %668, %671 : vector<8x128xf32>
    %673 = arith.addf %667, %672 : vector<8x128xf32>
    %c0_155 = arith.constant 0 : index
    %c7 = arith.constant 7 : index
    %c0_156 = arith.constant 0 : index
    %c0_157 = arith.constant 0 : index
    %674 = vector.load %arg5[%c0_155, %c7, %c0_156, %c0_157] : memref<1x8x8x128xf32, #tpu.memory_space<vmem>>, vector<1x1x8x128xf32>
    %675 = vector.shape_cast %674 : vector<1x1x8x128xf32> to vector<8x128xf32>
    %676 = vector.shape_cast %673 : vector<8x128xf32> to vector<1x1x8x128xf32>
    tpu.vector_store %arg5[%c0_155, %c7, %c0_156, %c0_157], %676 {strides = array<i32>} : memref<1x8x8x128xf32, #tpu.memory_space<vmem>>, vector<1x1x8x128xf32>,
    %cst_158 = arith.constant dense<0.000000e+00> : vector<128xf32>
    %677 = vector.multi_reduction <add>, %673, %cst_158 [0] : vector<8x128xf32> to vector<128xf32>
    %678 = vector.shape_cast %677 : vector<128xf32> to vector<1x128xf32>
    %679 = arith.addf %602, %678 : vector<1x128xf32>
    %680 = arith.mulf %673, %673 : vector<8x128xf32>
    %cst_159 = arith.constant dense<0.000000e+00> : vector<128xf32>
    %681 = vector.multi_reduction <add>, %680, %cst_159 [0] : vector<8x128xf32> to vector<128xf32>
    %682 = vector.shape_cast %681 : vector<128xf32> to vector<1x128xf32>
    %683 = arith.addf %606, %682 : vector<1x128xf32>
    %c0_160 = arith.constant 0 : index
    %c0_161 = arith.constant 0 : index
    %c0_162 = arith.constant 0 : index
    %684 = vector.load %arg6[%c0_160, %c0_161, %c0_162] : memref<1x8x128xf32, #tpu.memory_space<vmem>>, vector<1x8x128xf32>
    %685 = vector.shape_cast %684 : vector<1x8x128xf32> to vector<8x128xf32>
    %cst_163 = arith.constant 0.000000e+00 : f32
    %686 = vector.broadcast %cst_163 : f32 to vector<6x128xf32>
    %687 = tpu.concatenate %679, %683, %686 in 0 : vector<1x128xf32>, vector<1x128xf32>, vector<6x128xf32> -> vector<8x128xf32>
    %688 = arith.addf %685, %687 : vector<8x128xf32>
    %c0_164 = arith.constant 0 : index
    %c0_165 = arith.constant 0 : index
    %c0_166 = arith.constant 0 : index
    %689 = vector.load %arg6[%c0_164, %c0_165, %c0_166] : memref<1x8x128xf32, #tpu.memory_space<vmem>>, vector<1x8x128xf32>
    %690 = vector.shape_cast %689 : vector<1x8x128xf32> to vector<8x128xf32>
    %691 = vector.shape_cast %688 : vector<8x128xf32> to vector<1x8x128xf32>
    tpu.vector_store %arg6[%c0_164, %c0_165, %c0_166], %691 {strides = array<i32>} : memref<1x8x128xf32, #tpu.memory_space<vmem>>, vector<1x8x128xf32>,
    return
  }
  func.func @transform_0(%arg0: i32, %arg1: i32) -> (i32, i32, i32, i32) {
    %c0_i32 = arith.constant 0 : i32
    %c0_i32_0 = arith.constant 0 : i32
    %c0_i32_1 = arith.constant 0 : i32
    return %arg0, %arg1, %c0_i32, %c0_i32_0 : i32, i32, i32, i32
  }
  func.func @transform_1(%arg0: i32, %arg1: i32) -> (i32, i32, i32, i32) {
    %c1_i32 = arith.constant 1 : i32
    %0 = arith.addi %arg1, %c1_i32 : i32
    %c16_i32 = arith.constant 16 : i32
    %1 = arith.muli %c16_i32, %0 : i32
    %c0_i32 = arith.constant 0 : i32
    %c0_i32_0 = arith.constant 0 : i32
    %c0_i32_1 = arith.constant 0 : i32
    return %arg0, %1, %c0_i32, %c0_i32_0 : i32, i32, i32, i32
  }
  func.func @transform_2(%arg0: i32, %arg1: i32) -> (i32, i32, i32) {
    %c0_i32 = arith.constant 0 : i32
    %c0_i32_0 = arith.constant 0 : i32
    %c0_i32_1 = arith.constant 0 : i32
    %c0_i32_2 = arith.constant 0 : i32
    return %c0_i32, %c0_i32_0, %c0_i32_1 : i32, i32, i32
  }
  func.func @transform_3(%arg0: i32, %arg1: i32) -> (i32, i32, i32, i32) {
    %c0_i32 = arith.constant 0 : i32
    %c0_i32_0 = arith.constant 0 : i32
    %c0_i32_1 = arith.constant 0 : i32
    return %arg0, %arg1, %c0_i32, %c0_i32_0 : i32, i32, i32, i32
  }
  func.func @transform_4(%arg0: i32, %arg1: i32) -> (i32, i32, i32) {
    %c0_i32 = arith.constant 0 : i32
    %c0_i32_0 = arith.constant 0 : i32
    %c0_i32_1 = arith.constant 0 : i32
    return %arg0, %c0_i32, %c0_i32_0 : i32, i32, i32
  }
}

</mosaic_0001>

<llo_original>
// kernel: _lambda_.4
$region0: #{_lambda_.4}
  #allocation0 [shape = 'u32[]', space=smem, size = 0x4, offset = 0x4, fixed_abs, tag = 'smem constant byte address 0x4 - core index']
  #allocation1 [shape = 'u32[72,128]{1,0:T(1,128)}', space=vmem, size = 0x9000, scoped, tag = 'internal scratch']
  %s0 = inlined_call_operand.vmem [shape: f32[128,128], index: 0, kind: input, shape index: {}]
  %s1 = inlined_call_operand.vmem [shape: f32[1,128], index: 1, kind: input, shape index: {}]
  %s2 = inlined_call_operand.vmem [shape: f32[1,128], index: 2, kind: input, shape index: {}]
  %s3 = inlined_call_operand.vmem [shape: f32[128,128], index: 3, kind: input, shape index: {}]
  %s4 = inlined_call_operand.vmem [shape: f32[128,128], index: 4, kind: output, shape index: {0}]
  %s5 = inlined_call_operand.vmem [shape: f32[1,8,128], index: 5, kind: output, shape index: {1}]
  %6 = xla_tuple %s4, %s5
  %s7 = sld [smem:[#allocation0]]
  $region38: #{_lambda_.4} parent=0
    _
  %s9 = ssub.s32 1, %s7
  %s10 = scalar_select 0, %s9, %s7
  // Predicated region
  $region2: #{_lambda_.4} parent=0 // pred_check
    _
  $region3: #{_lambda_.4} parent=0 // pred_check_branch
    %12 = sbr.rel (0) target = $region5
  $region4: #{_lambda_.4} parent=0 // pred_region
    %s13 = sadd.s32 0, 0
    %s14 = smul.u32 16, %s13
    %p15 = scmp.lt.s32.totalorder %s14, 15
    %s16 = scalar_select %p15, %s14, 15
    %s17 = smul.addr %s16, 8
    %s18 = scalar_lea.vmem %s0, %s17
    %s19 = sadd.s32 0, 0
    %s20 = smul.u32 16, %s19
  $region5: #{_lambda_.4} parent=0 // pred_fallthru
    _
  // Predicated region
  $region6: #{_lambda_.4} parent=0 // pred_check
    _
  $region7: #{_lambda_.4} parent=0 // pred_check_branch
    %22 = sbr.rel (0) target = $region9
  $region8: #{_lambda_.4} parent=0 // pred_region
    _
  $region9: #{_lambda_.4} parent=0 // pred_fallthru
    _
  // Predicated region
  $region10: #{_lambda_.4} parent=0 // pred_check
    _
  $region11: #{_lambda_.4} parent=0 // pred_check_branch
    %24 = sbr.rel (0) target = $region13
  $region12: #{_lambda_.4} parent=0 // pred_region
    _
  $region13: #{_lambda_.4} parent=0 // pred_fallthru
    _
  // Predicated region
  $region14: #{_lambda_.4} parent=0 // pred_check
    _
  $region15: #{_lambda_.4} parent=0 // pred_check_branch
    %26 = sbr.rel (0) target = $region17
  $region16: #{_lambda_.4} parent=0 // pred_region
    _
  $region17: #{_lambda_.4} parent=0 // pred_fallthru
    _
  %s27 = sadd.s32 0, 0
  %s28 = smul.u32 16, %s27
  %p29 = scmp.lt.s32.totalorder %s28, 15
  %s30 = scalar_select %p29, %s28, 15
  %s31 = smul.addr %s30, 8
  %s32 = scalar_lea.vmem %s0, %s31
  %s33 = sadd.s32 0, 0
  %s34 = smul.u32 16, %s33
  %p35 = scmp.lt.s32.totalorder %s34, 15
  %s36 = scalar_select %p35, %s34, 15
  %s37 = smul.addr %s36, 8
  %s38 = scalar_lea.vmem %s4, %s37
  %s39 = sadd.s32 0, 0
  %s40 = smul.u32 16, %s39
  %p41 = scmp.lt.s32.totalorder %s40, 15
  %s42 = scalar_select %p41, %s40, 15
  %s43 = smul.addr %s42, 8
  %s44 = scalar_lea.vmem %s0, %s43
  %s45 = sadd.s32 0, 0
  %s46 = smul.u32 16, %s45
  %s47 = sadd.s32 0, 0
  %s48 = smul.u32 16, %s47
  %p49 = scmp.lt.s32.totalorder %s48, 15
  %s50 = scalar_select %p49, %s48, 15
  %s51 = smul.addr %s50, 8
  %s52 = scalar_lea.vmem %s4, %s51
  %s53 = sadd.s32 0, 0
  %s54 = smul.u32 16, %s53
  %p55 = scmp.eq.s32.totalorder 0, 0
  // Predicated region
  $region18: #{_lambda_.4} parent=0 // pred_check
    %p56 = pneg %p55
  $region19: #{_lambda_.4} parent=0 // pred_check_branch
    %58 = sbr.rel (%p56) target = $region21
  $region20: #{_lambda_.4} parent=0 // pred_region
    %59 = vst [vmem:[%s5] sm:$0xff] 0.0
  $region21: #{_lambda_.4} parent=0 // pred_fallthru
    _
  %v60 = vld [vmem:[%s44] sm:$0xff]
  %v61 = vld [vmem:[%s44 + $0x8] sm:$0xff]
  %v62 = vld [vmem:[%s44 + $0x10] sm:$0xff]
  %v63 = vld [vmem:[%s44 + $0x18] sm:$0xff]
  %v64 = vld [vmem:[%s44 + $0x20] sm:$0xff]
  %v65 = vld [vmem:[%s44 + $0x28] sm:$0xff]
  %v66 = vld [vmem:[%s44 + $0x30] sm:$0xff]
  %v67 = vld [vmem:[%s44 + $0x38] sm:$0xff]
  %v68 = vld [vmem:[%s44 + $0x40] sm:$0xff]
  %v69 = vld [vmem:[%s44 + $0x48] sm:$0xff]
  %v70 = vld [vmem:[%s44 + $0x50] sm:$0xff]
  %v71 = vld [vmem:[%s44 + $0x58] sm:$0xff]
  %v72 = vld [vmem:[%s44 + $0x60] sm:$0xff]
  %v73 = vld [vmem:[%s44 + $0x68] sm:$0xff]
  %v74 = vld [vmem:[%s44 + $0x70] sm:$0xff]
  %v75 = vld [vmem:[%s44 + $0x78] sm:$0xff]
  %v76 = vld [vmem:[%s1] sm:$0x1]
  %v78 = vperm.slane %v76, 0
  %v80 = vmul.f32 %v60, %v78
  %v81 = vmul.f32 %v61, %v78
  %v82 = vmul.f32 %v62, %v78
  %v83 = vmul.f32 %v63, %v78
  %v84 = vmul.f32 %v64, %v78
  %v85 = vmul.f32 %v65, %v78
  %v86 = vmul.f32 %v66, %v78
  %v87 = vmul.f32 %v67, %v78
  %v88 = vmul.f32 %v68, %v78
  %v89 = vmul.f32 %v69, %v78
  %v90 = vmul.f32 %v70, %v78
  %v91 = vmul.f32 %v71, %v78
  %v92 = vmul.f32 %v72, %v78
  %v93 = vmul.f32 %v73, %v78
  %v94 = vmul.f32 %v74, %v78
  %v95 = vmul.f32 %v75, %v78
  %v96 = vld [vmem:[%s2] sm:$0x1]
  %v98 = vperm.slane %v96, 0
  %v100 = vadd.f32 %v80, %v98
  %v101 = vadd.f32 %v81, %v98
  %v102 = vadd.f32 %v82, %v98
  %v103 = vadd.f32 %v83, %v98
  %v104 = vadd.f32 %v84, %v98
  %v105 = vadd.f32 %v85, %v98
  %v106 = vadd.f32 %v86, %v98
  %v107 = vadd.f32 %v87, %v98
  %v108 = vadd.f32 %v88, %v98
  %v109 = vadd.f32 %v89, %v98
  %v110 = vadd.f32 %v90, %v98
  %v111 = vadd.f32 %v91, %v98
  %v112 = vadd.f32 %v92, %v98
  %v113 = vadd.f32 %v93, %v98
  %v114 = vadd.f32 %v94, %v98
  %v115 = vadd.f32 %v95, %v98
  %v116 = vmax.f32 %v100, 0.0
  %v117 = vmax.f32 %v101, 0.0
  %v118 = vmax.f32 %v102, 0.0
  %v119 = vmax.f32 %v103, 0.0
  %v120 = vmax.f32 %v104, 0.0
  %v121 = vmax.f32 %v105, 0.0
  %v122 = vmax.f32 %v106, 0.0
  %v123 = vmax.f32 %v107, 0.0
  %v124 = vmax.f32 %v108, 0.0
  %v125 = vmax.f32 %v109, 0.0
  %v126 = vmax.f32 %v110, 0.0
  %v127 = vmax.f32 %v111, 0.0
  %v128 = vmax.f32 %v112, 0.0
  %v129 = vmax.f32 %v113, 0.0
  %v130 = vmax.f32 %v114, 0.0
  %v131 = vmax.f32 %v115, 0.0
  %v132 = vld [vmem:[%s3] sm:$0xff]
  %v133 = vld [vmem:[%s3 + $0x8] sm:$0xff]
  %v134 = vld [vmem:[%s3 + $0x10] sm:$0xff]
  %v135 = vld [vmem:[%s3 + $0x18] sm:$0xff]
  %v136 = vld [vmem:[%s3 + $0x20] sm:$0xff]
  %v137 = vld [vmem:[%s3 + $0x28] sm:$0xff]
  %v138 = vld [vmem:[%s3 + $0x30] sm:$0xff]
  %v139 = vld [vmem:[%s3 + $0x38] sm:$0xff]
  %v140 = vld [vmem:[%s3 + $0x40] sm:$0xff]
  %v141 = vld [vmem:[%s3 + $0x48] sm:$0xff]
  %v142 = vld [vmem:[%s3 + $0x50] sm:$0xff]
  %v143 = vld [vmem:[%s3 + $0x58] sm:$0xff]
  %v144 = vld [vmem:[%s3 + $0x60] sm:$0xff]
  %v145 = vld [vmem:[%s3 + $0x68] sm:$0xff]
  %v146 = vld [vmem:[%s3 + $0x70] sm:$0xff]
  %v147 = vld [vmem:[%s3 + $0x78] sm:$0xff]
  %148 = vmatpush.msra.mxu0 %v147
  %149 = vmatpush.msra.mxu0 %v146
  %150 = vmatpush.msra.mxu0 %v145
  %151 = vmatpush.msra.mxu0 %v144
  %152 = vmatpush.msra.mxu0 %v143
  %153 = vmatpush.msra.mxu0 %v142
  %154 = vmatpush.msra.mxu0 %v141
  %155 = vmatpush.msra.mxu0 %v140
  %156 = vmatpush.msra.mxu0 %v139
  %157 = vmatpush.msra.mxu0 %v138
  %158 = vmatpush.msra.mxu0 %v137
  %159 = vmatpush.msra.mxu0 %v136
  %160 = vmatpush.msra.mxu0 %v135
  %161 = vmatpush.msra.mxu0 %v134
  %162 = vmatpush.msra.mxu0 %v133
  %163 = vmatpush.msra.mxu0 %v132
  %164 = vmatmul.f32.gmra.mxu0 %v116
  %v165 = vpop.f32.mrf.mxu0
  %v166 = vadd.f32 0.0, %v165
  %167 = vmatmul.f32.gmra.mxu0 %v117
  %v168 = vpop.f32.mrf.mxu0
  %v169 = vadd.f32 0.0, %v168
  %170 = vmatmul.f32.gmra.mxu0 %v118
  %v171 = vpop.f32.mrf.mxu0
  %v172 = vadd.f32 0.0, %v171
  %173 = vmatmul.f32.gmra.mxu0 %v119
  %v174 = vpop.f32.mrf.mxu0
  %v175 = vadd.f32 0.0, %v174
  %176 = vmatmul.f32.gmra.mxu0 %v120
  %v177 = vpop.f32.mrf.mxu0
  %v178 = vadd.f32 0.0, %v177
  %179 = vmatmul.f32.gmra.mxu0 %v121
  %v180 = vpop.f32.mrf.mxu0
  %v181 = vadd.f32 0.0, %v180
  %182 = vmatmul.f32.gmra.mxu0 %v122
  %v183 = vpop.f32.mrf.mxu0
  %v184 = vadd.f32 0.0, %v183
  %185 = vmatmul.f32.gmra.mxu0 %v123
  %v186 = vpop.f32.mrf.mxu0
  %v187 = vadd.f32 0.0, %v186
  %188 = vmatmul.f32.gmra.mxu0 %v124
  %v189 = vpop.f32.mrf.mxu0
  %v190 = vadd.f32 0.0, %v189
  %191 = vmatmul.f32.gmra.mxu0 %v125
  %v192 = vpop.f32.mrf.mxu0
  %v193 = vadd.f32 0.0, %v192
  %194 = vmatmul.f32.gmra.mxu0 %v126
  %v195 = vpop.f32.mrf.mxu0
  %v196 = vadd.f32 0.0, %v195
  %197 = vmatmul.f32.gmra.mxu0 %v127
  %v198 = vpop.f32.mrf.mxu0
  %v199 = vadd.f32 0.0, %v198
  %200 = vmatmul.f32.gmra.mxu0 %v128
  %v201 = vpop.f32.mrf.mxu0
  %v202 = vadd.f32 0.0, %v201
  %203 = vmatmul.f32.gmra.mxu0 %v129
  %v204 = vpop.f32.mrf.mxu0
  %v205 = vadd.f32 0.0, %v204
  %206 = vmatmul.f32.gmra.mxu0 %v130
  %v207 = vpop.f32.mrf.mxu0
  %v208 = vadd.f32 0.0, %v207
  %209 = vmatmul.f32.gmra.mxu0 %v131
  %v210 = vpop.f32.mrf.mxu0
  %v211 = vadd.f32 0.0, %v210
  %212 = vdwg.mxu0
  %213 = vst [vmem:[%s52] sm:$0xff] %v166
  %214 = vst [vmem:[%s52 + $0x8] sm:$0xff] %v169
  %215 = vst [vmem:[%s52 + $0x10] sm:$0xff] %v172
  %216 = vst [vmem:[%s52 + $0x18] sm:$0xff] %v175
  %217 = vst [vmem:[%s52 + $0x20] sm:$0xff] %v178
  %218 = vst [vmem:[%s52 + $0x28] sm:$0xff] %v181
  %219 = vst [vmem:[%s52 + $0x30] sm:$0xff] %v184
  %220 = vst [vmem:[%s52 + $0x38] sm:$0xff] %v187
  %221 = vst [vmem:[%s52 + $0x40] sm:$0xff] %v190
  %222 = vst [vmem:[%s52 + $0x48] sm:$0xff] %v193
  %223 = vst [vmem:[%s52 + $0x50] sm:$0xff] %v196
  %224 = vst [vmem:[%s52 + $0x58] sm:$0xff] %v199
  %225 = vst [vmem:[%s52 + $0x60] sm:$0xff] %v202
  %226 = vst [vmem:[%s52 + $0x68] sm:$0xff] %v205
  %227 = vst [vmem:[%s52 + $0x70] sm:$0xff] %v208
  %228 = vst [vmem:[%s52 + $0x78] sm:$0xff] %v211
  %v229 = vld [vmem:[%s5] sm:$0xff]
  %v230 = vadd.f32 %v166, %v169
  %v231 = vadd.f32 %v230, %v172
  %v232 = vadd.f32 %v231, %v175
  %v233 = vadd.f32 %v232, %v178
  %v234 = vadd.f32 %v233, %v181
  %v235 = vadd.f32 %v234, %v184
  %v236 = vadd.f32 %v235, %v187
  %v237 = vadd.f32 %v236, %v190
  %v238 = vadd.f32 %v237, %v193
  %v239 = vadd.f32 %v238, %v196
  %v240 = vadd.f32 %v239, %v199
  %v241 = vadd.f32 %v240, %v202
  %v242 = vadd.f32 %v241, %v205
  %v243 = vadd.f32 %v242, %v208
  %v244 = vadd.f32 %v243, %v211
  %v245 = vrot.slane %v244, 4
  %v246 = vadd.f32 %v244, %v245
  %v247 = vrot.slane %v246, 2
  %v248 = vadd.f32 %v246, %v247
  %v249 = vrot.slane %v248, 1
  %v250 = vadd.f32 %v248, %v249
  %v251 = vmul.f32 %v166, %v166
  %v252 = vmul.f32 %v169, %v169
  %v253 = vmul.f32 %v172, %v172
  %v254 = vmul.f32 %v175, %v175
  %v255 = vmul.f32 %v178, %v178
  %v256 = vmul.f32 %v181, %v181
  %v257 = vmul.f32 %v184, %v184
  %v258 = vmul.f32 %v187, %v187
  %v259 = vmul.f32 %v190, %v190
  %v260 = vmul.f32 %v193, %v193
  %v261 = vmul.f32 %v196, %v196
  %v262 = vmul.f32 %v199, %v199
  %v263 = vmul.f32 %v202, %v202
  %v264 = vmul.f32 %v205, %v205
  %v265 = vmul.f32 %v208, %v208
  %v266 = vmul.f32 %v211, %v211
  %v267 = vadd.f32 %v251, %v252
  %v268 = vadd.f32 %v267, %v253
  %v269 = vadd.f32 %v268, %v254
  %v270 = vadd.f32 %v269, %v255
  %v271 = vadd.f32 %v270, %v256
  %v272 = vadd.f32 %v271, %v257
  %v273 = vadd.f32 %v272, %v258
  %v274 = vadd.f32 %v273, %v259
  %v275 = vadd.f32 %v274, %v260
  %v276 = vadd.f32 %v275, %v261
  %v277 = vadd.f32 %v276, %v262
  %v278 = vadd.f32 %v277, %v263
  %v279 = vadd.f32 %v278, %v264
  %v280 = vadd.f32 %v279, %v265
  %v281 = vadd.f32 %v280, %v266
  %v282 = vrot.slane %v281, 4
  %v283 = vadd.f32 %v281, %v282
  %v284 = vrot.slane %v283, 2
  %v285 = vadd.f32 %v283, %v284
  %v286 = vrot.slane %v285, 1
  %v287 = vadd.f32 %v285, %v286
  %vm288 = vcmask 1040384
  %v289 = vsel %vm288, %v250, %v287
  %vm290 = vcmask 1041408
  %v291 = vsel %vm290, %v289, 0.0
  %v292 = vadd.f32 %v229, %v291
  %293 = vst [vmem:[%s5] sm:$0xff] %v292
  %s294 = sadd.s32 0, 0
  %s295 = smul.u32 16, %s294
  %p296 = scmp.lt.s32.totalorder %s295, 15
  %s297 = scalar_select %p296, %s295, 15
  %s298 = smul.addr %s297, 8
  %s299 = scalar_lea.vmem %s4, %s298
  // Predicated region
  $region22: #{_lambda_.4} parent=0 // pred_check
    _
  $region23: #{_lambda_.4} parent=0 // pred_check_branch
    %301 = sbr.rel (0) target = $region25
  $region24: #{_lambda_.4} parent=0 // pred_region
    %s302 = sadd.s32 0, 0
    %s303 = smul.u32 16, %s302
  $region25: #{_lambda_.4} parent=0 // pred_fallthru
    _
  // Predicated region
  $region26: #{_lambda_.4} parent=0 // pred_check
    _
  $region27: #{_lambda_.4} parent=0 // pred_check_branch
    %305 = sbr.rel (0) target = $region29
  $region28: #{_lambda_.4} parent=0 // pred_region
    _
  $region29: #{_lambda_.4} parent=0 // pred_fallthru
    _
  // Predicated region
  $region30: #{_lambda_.4} parent=0 // pred_check
    _
  $region31: #{_lambda_.4} parent=0 // pred_check_branch
    %307 = sbr.rel (0) target = $region33
  $region32: #{_lambda_.4} parent=0 // pred_region
    %s308 = sadd.s32 0, 0
    %s309 = smul.u32 16, %s308
    %p310 = scmp.lt.s32.totalorder %s309, 15
    %s311 = scalar_select %p310, %s309, 15
    %s312 = smul.addr %s311, 8
    %s313 = scalar_lea.vmem %s4, %s312
  $region33: #{_lambda_.4} parent=0 // pred_fallthru
    _
  // Predicated region
  $region34: #{_lambda_.4} parent=0 // pred_check
    _
  $region35: #{_lambda_.4} parent=0 // pred_check_branch
    %315 = sbr.rel (0) target = $region37
  $region36: #{_lambda_.4} parent=0 // pred_region
    _
  $region37: #{_lambda_.4} parent=0 // pred_fallthru
    _

// kernel: _lambda_.5
$region0: #{_lambda_.5}
  #allocation0 [shape = 'u32[]', space=smem, size = 0x4, offset = 0x4, fixed_abs, tag = 'smem constant byte address 0x4 - core index']
  #allocation1 [shape = 'u32[72,128]{1,0:T(1,128)}', space=vmem, size = 0x9000, scoped, tag = 'internal scratch']
  %s0 = inlined_call_operand.vmem [shape: f32[2,64,128], index: 0, kind: input, shape index: {}]
  %s1 = inlined_call_operand.vmem [shape: f32[1,128], index: 1, kind: input, shape index: {}]
  %s2 = inlined_call_operand.vmem [shape: f32[1,128], index: 2, kind: input, shape index: {}]
  %s3 = inlined_call_operand.vmem [shape: f32[2,8,64], index: 3, kind: output, shape index: {}]
  %s4 = sld [smem:[#allocation0]]
  $region45: #{_lambda_.5} parent=0
    _
  %s6 = ssub.s32 1, %s4
  %s7 = scalar_select 0, %s6, %s4
  loop: start=0, step=1, limit=4
  $region2: #{_lambda_.5} parent=0 // loop_pre_header
    _
  $region3: #{_lambda_.5} parent=0 // loop_header
    %s9 = sphi 0, %s13
    %p10 = scmp.ge.s32.totalorder %s9, 4
    %s16 = sphi 0, %s28
    %s17 = sphi 0, %s24
    %s18 = sphi 0, %s16
    %s19 = sphi 0, %s17
    %s20 = sphi 0, %s18
    %s21 = sphi 0, %s19
    %s33 = sphi 0, %s35
    %s36 = sphi 0, %s33
    %s37 = sphi 0, %s36
    %s53 = sphi 0, %s37
    %s57 = sphi 0, %s57
    %s59 = sphi 0, %s57
    %s60 = sphi 0, %s59
    %s74 = sphi 0, %s60
    %s78 = sphi 0, %s78
    %s80 = sphi 0, %s78
    %s81 = sphi 0, %s80
    %s95 = sphi 0, %s81
    %s103 = sphi 0, %s105
    %s106 = sphi 0, %s103
    %s107 = sphi 0, %s106
    %s123 = sphi 0, %s107
  $region4: #{_lambda_.5} parent=0 // loop_header_branch
    %12 = sbr.rel (%p10) target = $region8
  $region5: #{_lambda_.5} parent=0 // loop_body
    %s14 = ssub.s32 %s9, 1
    %s15 = ssub.s32 %s9, 2
    %s22 = sadd.s32 1, %s17
    %p23 = scmp.ge.s32.totalorder %s22, 1
    %s24 = scalar_select %p23, 0, %s22
    %s25 = sadd.s32 1, %s16
    %s26 = scalar_select %p23, %s25, %s16
    %p27 = scmp.ge.s32.totalorder %s26, 2
    %s28 = scalar_select %p27, 0, %s26
    %s29 = ssub.s32 %s16, %s28
    %s30 = ssub.s32 %s17, %s24
    %s31 = sor.u32 %s29, %s30
    %p32 = scmp.eq.s32.totalorder %s31, 0
    %s34 = sadd.s32 %s33, 1
    %s35 = scalar_select %p32, %s33, %s34
    %p38 = pneg %p32
    %p39 = scmp.eq.s32.totalorder %s9, 1
    %p40 = por %p38, %p39
    %p41 = scmp.ne.s32.totalorder %s33, %s36
    %p42 = scmp.eq.s32.totalorder %s9, 0
    %p43 = por %p41, %p42
    %p44 = scmp.ne.s32.totalorder %s33, %s36
    %p45 = scmp.eq.s32.totalorder %s14, 1
    %p46 = por %p44, %p45
    %p47 = scmp.ne.s32.totalorder %s36, %s37
    %p48 = scmp.eq.s32.totalorder %s14, 0
    %p49 = por %p47, %p48
    %p50 = scmp.ne.s32.totalorder %s36, %s37
    %p51 = scmp.eq.s32.totalorder %s15, 1
    %p52 = por %p50, %p51
    %p54 = scmp.ne.s32.totalorder %s37, %s53
    %p55 = scmp.eq.s32.totalorder %s15, 0
    %p56 = por %p54, %p55
    %s58 = sadd.s32 %s57, 1
    %p61 = scmp.eq.s32.totalorder %s9, 1
    %p62 = scmp.ne.s32.totalorder %s57, %s59
    %p63 = scmp.eq.s32.totalorder %s9, 0
    %p64 = por %p62, %p63
    %p65 = scmp.ne.s32.totalorder %s57, %s59
    %p66 = scmp.eq.s32.totalorder %s14, 1
    %p67 = por %p65, %p66
    %p68 = scmp.ne.s32.totalorder %s59, %s60
    %p69 = scmp.eq.s32.totalorder %s14, 0
    %p70 = por %p68, %p69
    %p71 = scmp.ne.s32.totalorder %s59, %s60
    %p72 = scmp.eq.s32.totalorder %s15, 1
    %p73 = por %p71, %p72
    %p75 = scmp.ne.s32.totalorder %s60, %s74
    %p76 = scmp.eq.s32.totalorder %s15, 0
    %p77 = por %p75, %p76
    %s79 = sadd.s32 %s78, 1
    %p82 = scmp.eq.s32.totalorder %s9, 1
    %p83 = scmp.ne.s32.totalorder %s78, %s80
    %p84 = scmp.eq.s32.totalorder %s9, 0
    %p85 = por %p83, %p84
    %p86 = scmp.ne.s32.totalorder %s78, %s80
    %p87 = scmp.eq.s32.totalorder %s14, 1
    %p88 = por %p86, %p87
    %p89 = scmp.ne.s32.totalorder %s80, %s81
    %p90 = scmp.eq.s32.totalorder %s14, 0
    %p91 = por %p89, %p90
    %p92 = scmp.ne.s32.totalorder %s80, %s81
    %p93 = scmp.eq.s32.totalorder %s15, 1
    %p94 = por %p92, %p93
    %p96 = scmp.ne.s32.totalorder %s81, %s95
    %p97 = scmp.eq.s32.totalorder %s15, 0
    %p98 = por %p96, %p97
    %s99 = ssub.s32 %s16, %s28
    %s100 = ssub.s32 %s17, %s24
    %s101 = sor.u32 %s99, %s100
    %p102 = scmp.eq.s32.totalorder %s101, 0
    %s104 = sadd.s32 %s103, 1
    %s105 = scalar_select %p102, %s103, %s104
    %p108 = pneg %p102
    %p109 = scmp.eq.s32.totalorder %s9, 1
    %p110 = por %p108, %p109
    %p111 = scmp.ne.s32.totalorder %s103, %s106
    %p112 = scmp.eq.s32.totalorder %s9, 0
    %p113 = por %p111, %p112
    %p114 = scmp.ne.s32.totalorder %s103, %s106
    %p115 = scmp.eq.s32.totalorder %s14, 1
    %p116 = por %p114, %p115
    %p117 = scmp.ne.s32.totalorder %s106, %s107
    %p118 = scmp.eq.s32.totalorder %s14, 0
    %p119 = por %p117, %p118
    %p120 = scmp.ne.s32.totalorder %s106, %s107
    %p121 = scmp.eq.s32.totalorder %s15, 1
    %p122 = por %p120, %p121
    %p124 = scmp.ne.s32.totalorder %s107, %s123
    %p125 = scmp.eq.s32.totalorder %s15, 0
    %p126 = por %p124, %p125
    %p127 = scmp.le.s32.totalorder 1, %s9
    %p128 = scmp.lt.s32.totalorder %s9, 3
    %p129 = pnand %p127, %p128
    %p130 = pneg %p129
    // Predicated region
    $region9: #{_lambda_.5} parent=5 // pred_check
      _
    $region10: #{_lambda_.5} parent=5 // pred_check_branch
      %132 = sbr.rel (%p129) target = $region12
    $region11: #{_lambda_.5} parent=5 // pred_region
      %s133 = ssub.s32 %s9, 1
      // Predicated region
      $region13: #{_lambda_.5} parent=11 // pred_check
        %p134 = pneg %p70
      $region14: #{_lambda_.5} parent=11 // pred_check_branch
        %136 = sbr.rel (%p134) target = $region16
      $region15: #{_lambda_.5} parent=11 // pred_region
        _
      $region16: #{_lambda_.5} parent=11 // pred_fallthru
        _
      // Predicated region
      $region17: #{_lambda_.5} parent=11 // pred_check
        %p137 = pneg %p91
      $region18: #{_lambda_.5} parent=11 // pred_check_branch
        %139 = sbr.rel (%p137) target = $region20
      $region19: #{_lambda_.5} parent=11 // pred_region
        _
      $region20: #{_lambda_.5} parent=11 // pred_fallthru
        _
    $region12: #{_lambda_.5} parent=5 // pred_fallthru
      _
    %p140 = scmp.lt.s32.totalorder %s9, 2
    // Predicated region
    $region21: #{_lambda_.5} parent=5 // pred_check
      %p141 = pneg %p140
    $region22: #{_lambda_.5} parent=5 // pred_check_branch
      %143 = sbr.rel (%p141) target = $region24
    $region23: #{_lambda_.5} parent=5 // pred_region
      // Predicated region
      $region25: #{_lambda_.5} parent=23 // pred_check
        %p144 = pneg %p43
      $region26: #{_lambda_.5} parent=23 // pred_check_branch
        %146 = sbr.rel (%p144) target = $region28
      $region27: #{_lambda_.5} parent=23 // pred_region
        %s147 = smul.u32 8, %s17
        %p148 = scmp.lt.s32.totalorder %s16, 1
        %s149 = scalar_select %p148, %s16, 1
        %p150 = scmp.lt.s32.totalorder %s147, 7
        %s151 = scalar_select %p150, %s147, 7
        %s152 = smul.addr %s149, 8
        %s153 = sadd.s32 %s151, %s152
        %s154 = smul.addr %s153, 8
        %s155 = scalar_lea.vmem %s0, %s154
        %s156 = smul.u32 8, %s17
      $region28: #{_lambda_.5} parent=23 // pred_fallthru
        _
    $region24: #{_lambda_.5} parent=5 // pred_fallthru
      _
    %p157 = scmp.le.s32.totalorder 1, %s9
    %p158 = scmp.lt.s32.totalorder %s9, 3
    %p159 = pnand %p157, %p158
    %p160 = pneg %p159
    // Predicated region
    $region29: #{_lambda_.5} parent=5 // pred_check
      _
    $region30: #{_lambda_.5} parent=5 // pred_check_branch
      %162 = sbr.rel (%p159) target = $region32
    $region31: #{_lambda_.5} parent=5 // pred_region
      %s163 = ssub.s32 %s9, 1
      %s164 = smul.u32 8, %s19
      %p165 = scmp.lt.s32.totalorder %s18, 1
      %s166 = scalar_select %p165, %s18, 1
      %p167 = scmp.lt.s32.totalorder %s164, 7
      %s168 = scalar_select %p167, %s164, 7
      %s169 = smul.addr %s166, 8
      %s170 = sadd.s32 %s168, %s169
      %s171 = smul.addr %s170, 8
      %s172 = scalar_lea.vmem %s0, %s171
      %p173 = pneg %p49
      %p174 = pneg %p46
      %p175 = pneg %p70
      %p176 = pneg %p67
      %p177 = pneg %p91
      %p178 = pneg %p88
      %p179 = pneg %p119
      %p180 = pneg %p116
      %p181 = scmp.lt.s32.totalorder %s18, 1
      %s182 = scalar_select %p181, %s18, 1
      %p183 = scmp.lt.s32.totalorder %s19, 0
      %s184 = scalar_select %p183, %s19, 0
      %s185 = sadd.s32 %s184, %s182
      %s186 = smul.addr %s185, 8
      %s187 = scalar_lea.vmem %s3, %s186
      %s188 = smul.u32 8, %s19
      %p189 = scmp.lt.s32.totalorder %s18, 1
      %s190 = scalar_select %p189, %s18, 1
      %p191 = scmp.lt.s32.totalorder %s188, 7
      %s192 = scalar_select %p191, %s188, 7
      %s193 = smul.addr %s190, 8
      %s194 = sadd.s32 %s192, %s193
      %s195 = smul.addr %s194, 8
      %s196 = scalar_lea.vmem %s0, %s195
      %s197 = smul.u32 8, %s19
      %p198 = scmp.lt.s32.totalorder %s18, 1
      %s199 = scalar_select %p198, %s18, 1
      %p200 = scmp.lt.s32.totalorder %s19, 0
      %s201 = scalar_select %p200, %s19, 0
      %s202 = sadd.s32 %s201, %s199
      %s203 = smul.addr %s202, 8
      %s204 = scalar_lea.vmem %s3, %s203
      %v205 = vld [vmem:[%s196] sm:$0xff]
      %v206 = vld [vmem:[%s196 + $0x8] sm:$0xff]
      %v207 = vld [vmem:[%s196 + $0x10] sm:$0xff]
      %v208 = vld [vmem:[%s196 + $0x18] sm:$0xff]
      %v209 = vld [vmem:[%s196 + $0x20] sm:$0xff]
      %v210 = vld [vmem:[%s196 + $0x28] sm:$0xff]
      %v211 = vld [vmem:[%s196 + $0x30] sm:$0xff]
      %v212 = vld [vmem:[%s196 + $0x38] sm:$0xff]
      %v213 = vld [vmem:[%s1] sm:$0x1]
      %v215 = vperm.slane %v213, 0
      %v217 = vmul.f32 %v205, %v215
      %v218 = vmul.f32 %v206, %v215
      %v219 = vmul.f32 %v207, %v215
      %v220 = vmul.f32 %v208, %v215
      %v221 = vmul.f32 %v209, %v215
      %v222 = vmul.f32 %v210, %v215
      %v223 = vmul.f32 %v211, %v215
      %v224 = vmul.f32 %v212, %v215
      %v225 = vld [vmem:[%s2] sm:$0x1]
      %v227 = vperm.slane %v225, 0
      %v229 = vadd.f32 %v217, %v227
      %v230 = vadd.f32 %v218, %v227
      %v231 = vadd.f32 %v219, %v227
      %v232 = vadd.f32 %v220, %v227
      %v233 = vadd.f32 %v221, %v227
      %v234 = vadd.f32 %v222, %v227
      %v235 = vadd.f32 %v223, %v227
      %v236 = vadd.f32 %v224, %v227
      %v237 = vmax.f32 %v229, 0.0
      %v238 = vmax.f32 %v230, 0.0
      %v239 = vmax.f32 %v231, 0.0
      %v240 = vmax.f32 %v232, 0.0
      %v241 = vmax.f32 %v233, 0.0
      %v242 = vmax.f32 %v234, 0.0
      %v243 = vmax.f32 %v235, 0.0
      %v244 = vmax.f32 %v236, 0.0
      %245 = vxpose.xlu0.b32.start [1/16] %v237, 128
      %246 = vxpose.xlu0.b32.cont [2/16] %v238, 128
      %247 = vxpose.xlu0.b32.cont [3/16] %v239, 128
      %248 = vxpose.xlu0.b32.cont [4/16] %v240, 128
      %249 = vxpose.xlu0.b32.cont [5/16] %v241, 128
      %250 = vxpose.xlu0.b32.cont [6/16] %v242, 128
      %251 = vxpose.xlu0.b32.cont [7/16] %v243, 128
      %252 = vxpose.xlu0.b32.cont [8/16] %v244, 128
      %253 = vxpose.xlu0.b32.cont [9/16] 0.0, 128
      %254 = vxpose.xlu0.b32.cont [10/16] 0.0, 128
      %255 = vxpose.xlu0.b32.cont [11/16] 0.0, 128
      %256 = vxpose.xlu0.b32.cont [12/16] 0.0, 128
      %257 = vxpose.xlu0.b32.cont [13/16] 0.0, 128
      %258 = vxpose.xlu0.b32.cont [14/16] 0.0, 128
      %259 = vxpose.xlu0.b32.cont [15/16] 0.0, 128
      %260 = vxpose.xlu0.b32.end [16/16] 0.0, 128
      %v261 = vpop.trf.xlu0
      %v262 = vpop.trf.xlu0
      %v263 = vpop.trf.xlu0
      %v264 = vpop.trf.xlu0
      %v265 = vpop.trf.xlu0
      %v266 = vpop.trf.xlu0
      %v267 = vpop.trf.xlu0
      %v268 = vpop.trf.xlu0
      %v269 = vpop.trf.xlu0
      %v270 = vpop.trf.xlu0
      %v271 = vpop.trf.xlu0
      %v272 = vpop.trf.xlu0
      %v273 = vpop.trf.xlu0
      %v274 = vpop.trf.xlu0
      %v275 = vpop.trf.xlu0
      %v276 = vpop.trf.xlu0
      %vm277 = vcmask 523264
      %278 = vst.msk [vmem:[%s204] sm:$0xff] %vm277, %v261
      %p279 = scmp.lt.s32.totalorder %s18, 1
      %s280 = scalar_select %p279, %s18, 1
      %p281 = scmp.lt.s32.totalorder %s19, 0
      %s282 = scalar_select %p281, %s19, 0
      %s283 = sadd.s32 %s282, %s280
      %s284 = smul.addr %s283, 8
      %s285 = scalar_lea.vmem %s3, %s284
      // Predicated region
      $region33: #{_lambda_.5} parent=31 // pred_check
        %p286 = pneg %p116
      $region34: #{_lambda_.5} parent=31 // pred_check_branch
        %288 = sbr.rel (%p286) target = $region36
      $region35: #{_lambda_.5} parent=31 // pred_region
        _
      $region36: #{_lambda_.5} parent=31 // pred_fallthru
        _
    $region32: #{_lambda_.5} parent=5 // pred_fallthru
      _
    %p289 = scmp.le.s32.totalorder 2, %s9
    // Predicated region
    $region37: #{_lambda_.5} parent=5 // pred_check
      %p290 = pneg %p289
    $region38: #{_lambda_.5} parent=5 // pred_check_branch
      %292 = sbr.rel (%p290) target = $region40
    $region39: #{_lambda_.5} parent=5 // pred_region
      %s293 = ssub.s32 %s9, 2
      // Predicated region
      $region41: #{_lambda_.5} parent=39 // pred_check
        %p294 = pneg %p122
      $region42: #{_lambda_.5} parent=39 // pred_check_branch
        %296 = sbr.rel (%p294) target = $region44
      $region43: #{_lambda_.5} parent=39 // pred_region
        %p297 = scmp.lt.s32.totalorder %s20, 1
        %s298 = scalar_select %p297, %s20, 1
        %p299 = scmp.lt.s32.totalorder %s21, 0
        %s300 = scalar_select %p299, %s21, 0
        %s301 = sadd.s32 %s300, %s298
        %s302 = smul.addr %s301, 8
        %s303 = scalar_lea.vmem %s3, %s302
      $region44: #{_lambda_.5} parent=39 // pred_fallthru
        _
    $region40: #{_lambda_.5} parent=5 // pred_fallthru
      _
  $region6: #{_lambda_.5} parent=0 // loop_footer
    %s13 = sadd.s32 1, %s9
  $region7: #{_lambda_.5} parent=0 // loop_footer_branch
    %8 = sbr.rel target = $region3
  $region8: #{_lambda_.5} parent=0 // loop_exit
    _

// kernel: _lambda_.3
$region0: #{_lambda_.3}
  #allocation0 [shape = 'u32[]', space=smem, size = 0x4, offset = 0x4, fixed_abs, tag = 'smem constant byte address 0x4 - core index']
  #allocation1 [shape = 'u32[72,128]{1,0:T(1,128)}', space=vmem, size = 0x9000, scoped, tag = 'internal scratch']
  %s0 = inlined_call_operand.vmem [shape: f32[2,18,9,256], index: 0, kind: input, shape index: {}, may-alias: {0,1}]
  %s1 = inlined_call_operand.vmem [shape: f32[2,18,9,256], index: 1, kind: input, shape index: {}, may-alias: {0,1}]
  %s2 = inlined_call_operand.vmem [shape: f32[9,1,128], index: 2, kind: input, shape index: {}]
  %s3 = inlined_call_operand.vmem [shape: f32[2,8,8,128], index: 3, kind: output, shape index: {0}]
  %s4 = inlined_call_operand.vmem [shape: f32[2,8,128], index: 4, kind: output, shape index: {1}]
  %5 = xla_tuple %s3, %s4
  %s6 = sld [smem:[#allocation0]]
  $region57: #{_lambda_.3} parent=0
    _
  %s8 = ssub.s32 1, %s6
  %s9 = scalar_select 0, %s8, %s6
  loop: start=0, step=1, limit=4
  $region2: #{_lambda_.3} parent=0 // loop_pre_header
    _
  $region3: #{_lambda_.3} parent=0 // loop_header
    %s11 = sphi 0, %s15
    %p12 = scmp.ge.s32.totalorder %s11, 4
    %s18 = sphi 0, %s30
    %s19 = sphi 0, %s26
    %s20 = sphi 0, %s18
    %s21 = sphi 0, %s19
    %s22 = sphi 0, %s20
    %s23 = sphi 0, %s21
    %s35 = sphi 0, %s37
    %s38 = sphi 0, %s35
    %s39 = sphi 0, %s38
    %s55 = sphi 0, %s39
    %s67 = sphi 0, %s69
    %s70 = sphi 0, %s67
    %s71 = sphi 0, %s70
    %s87 = sphi 0, %s71
    %s91 = sphi 0, %s91
    %s93 = sphi 0, %s91
    %s94 = sphi 0, %s93
    %s108 = sphi 0, %s94
    %s116 = sphi 0, %s118
    %s119 = sphi 0, %s116
    %s120 = sphi 0, %s119
    %s136 = sphi 0, %s120
    %s142 = sphi 0, %s144
    %s145 = sphi 0, %s142
    %s146 = sphi 0, %s145
    %s162 = sphi 0, %s146
  $region4: #{_lambda_.3} parent=0 // loop_header_branch
    %14 = sbr.rel (%p12) target = $region8
  $region5: #{_lambda_.3} parent=0 // loop_body
    %s16 = ssub.s32 %s11, 1
    %s17 = ssub.s32 %s11, 2
    %s24 = sadd.s32 1, %s19
    %p25 = scmp.ge.s32.totalorder %s24, 1
    %s26 = scalar_select %p25, 0, %s24
    %s27 = sadd.s32 1, %s18
    %s28 = scalar_select %p25, %s27, %s18
    %p29 = scmp.ge.s32.totalorder %s28, 2
    %s30 = scalar_select %p29, 0, %s28
    %s31 = ssub.s32 %s18, %s30
    %s32 = ssub.s32 %s19, %s26
    %s33 = sor.u32 %s31, %s32
    %p34 = scmp.eq.s32.totalorder %s33, 0
    %s36 = sadd.s32 %s35, 1
    %s37 = scalar_select %p34, %s35, %s36
    %p40 = pneg %p34
    %p41 = scmp.eq.s32.totalorder %s11, 1
    %p42 = por %p40, %p41
    %p43 = scmp.ne.s32.totalorder %s35, %s38
    %p44 = scmp.eq.s32.totalorder %s11, 0
    %p45 = por %p43, %p44
    %p46 = scmp.ne.s32.totalorder %s35, %s38
    %p47 = scmp.eq.s32.totalorder %s16, 1
    %p48 = por %p46, %p47
    %p49 = scmp.ne.s32.totalorder %s38, %s39
    %p50 = scmp.eq.s32.totalorder %s16, 0
    %p51 = por %p49, %p50
    %p52 = scmp.ne.s32.totalorder %s38, %s39
    %p53 = scmp.eq.s32.totalorder %s17, 1
    %p54 = por %p52, %p53
    %p56 = scmp.ne.s32.totalorder %s39, %s55
    %p57 = scmp.eq.s32.totalorder %s17, 0
    %p58 = por %p56, %p57
    %s59 = sadd.s32 %s19, 1
    %s60 = smul.u32 %s59, 16
    %s61 = sadd.s32 %s26, 1
    %s62 = smul.u32 %s61, 16
    %s63 = ssub.s32 %s18, %s30
    %s64 = ssub.s32 %s60, %s62
    %s65 = sor.u32 %s63, %s64
    %p66 = scmp.eq.s32.totalorder %s65, 0
    %s68 = sadd.s32 %s67, 1
    %s69 = scalar_select %p66, %s67, %s68
    %p72 = pneg %p66
    %p73 = scmp.eq.s32.totalorder %s11, 1
    %p74 = por %p72, %p73
    %p75 = scmp.ne.s32.totalorder %s67, %s70
    %p76 = scmp.eq.s32.totalorder %s11, 0
    %p77 = por %p75, %p76
    %p78 = scmp.ne.s32.totalorder %s67, %s70
    %p79 = scmp.eq.s32.totalorder %s16, 1
    %p80 = por %p78, %p79
    %p81 = scmp.ne.s32.totalorder %s70, %s71
    %p82 = scmp.eq.s32.totalorder %s16, 0
    %p83 = por %p81, %p82
    %p84 = scmp.ne.s32.totalorder %s70, %s71
    %p85 = scmp.eq.s32.totalorder %s17, 1
    %p86 = por %p84, %p85
    %p88 = scmp.ne.s32.totalorder %s71, %s87
    %p89 = scmp.eq.s32.totalorder %s17, 0
    %p90 = por %p88, %p89
    %s92 = sadd.s32 %s91, 1
    %p95 = scmp.eq.s32.totalorder %s11, 1
    %p96 = scmp.ne.s32.totalorder %s91, %s93
    %p97 = scmp.eq.s32.totalorder %s11, 0
    %p98 = por %p96, %p97
    %p99 = scmp.ne.s32.totalorder %s91, %s93
    %p100 = scmp.eq.s32.totalorder %s16, 1
    %p101 = por %p99, %p100
    %p102 = scmp.ne.s32.totalorder %s93, %s94
    %p103 = scmp.eq.s32.totalorder %s16, 0
    %p104 = por %p102, %p103
    %p105 = scmp.ne.s32.totalorder %s93, %s94
    %p106 = scmp.eq.s32.totalorder %s17, 1
    %p107 = por %p105, %p106
    %p109 = scmp.ne.s32.totalorder %s94, %s108
    %p110 = scmp.eq.s32.totalorder %s17, 0
    %p111 = por %p109, %p110
    %s112 = ssub.s32 %s18, %s30
    %s113 = ssub.s32 %s19, %s26
    %s114 = sor.u32 %s112, %s113
    %p115 = scmp.eq.s32.totalorder %s114, 0
    %s117 = sadd.s32 %s116, 1
    %s118 = scalar_select %p115, %s116, %s117
    %p121 = pneg %p115
    %p122 = scmp.eq.s32.totalorder %s11, 1
    %p123 = por %p121, %p122
    %p124 = scmp.ne.s32.totalorder %s116, %s119
    %p125 = scmp.eq.s32.totalorder %s11, 0
    %p126 = por %p124, %p125
    %p127 = scmp.ne.s32.totalorder %s116, %s119
    %p128 = scmp.eq.s32.totalorder %s16, 1
    %p129 = por %p127, %p128
    %p130 = scmp.ne.s32.totalorder %s119, %s120
    %p131 = scmp.eq.s32.totalorder %s16, 0
    %p132 = por %p130, %p131
    %p133 = scmp.ne.s32.totalorder %s119, %s120
    %p134 = scmp.eq.s32.totalorder %s17, 1
    %p135 = por %p133, %p134
    %p137 = scmp.ne.s32.totalorder %s120, %s136
    %p138 = scmp.eq.s32.totalorder %s17, 0
    %p139 = por %p137, %p138
    %s140 = ssub.s32 %s18, %s30
    %p141 = scmp.eq.s32.totalorder %s140, 0
    %s143 = sadd.s32 %s142, 1
    %s144 = scalar_select %p141, %s142, %s143
    %p147 = pneg %p141
    %p148 = scmp.eq.s32.totalorder %s11, 1
    %p149 = por %p147, %p148
    %p150 = scmp.ne.s32.totalorder %s142, %s145
    %p151 = scmp.eq.s32.totalorder %s11, 0
    %p152 = por %p150, %p151
    %p153 = scmp.ne.s32.totalorder %s142, %s145
    %p154 = scmp.eq.s32.totalorder %s16, 1
    %p155 = por %p153, %p154
    %p156 = scmp.ne.s32.totalorder %s145, %s146
    %p157 = scmp.eq.s32.totalorder %s16, 0
    %p158 = por %p156, %p157
    %p159 = scmp.ne.s32.totalorder %s145, %s146
    %p160 = scmp.eq.s32.totalorder %s17, 1
    %p161 = por %p159, %p160
    %p163 = scmp.ne.s32.totalorder %s146, %s162
    %p164 = scmp.eq.s32.totalorder %s17, 0
    %p165 = por %p163, %p164
    %p166 = scmp.le.s32.totalorder 1, %s11
    %p167 = scmp.lt.s32.totalorder %s11, 3
    %p168 = pnand %p166, %p167
    %p169 = pneg %p168
    // Predicated region
    $region9: #{_lambda_.3} parent=5 // pred_check
      _
    $region10: #{_lambda_.3} parent=5 // pred_check_branch
      %171 = sbr.rel (%p168) target = $region12
    $region11: #{_lambda_.3} parent=5 // pred_region
      %s172 = ssub.s32 %s11, 1
      // Predicated region
      $region13: #{_lambda_.3} parent=11 // pred_check
        %p173 = pneg %p104
      $region14: #{_lambda_.3} parent=11 // pred_check_branch
        %175 = sbr.rel (%p173) target = $region16
      $region15: #{_lambda_.3} parent=11 // pred_region
        _
      $region16: #{_lambda_.3} parent=11 // pred_fallthru
        _
    $region12: #{_lambda_.3} parent=5 // pred_fallthru
      _
    %p176 = scmp.lt.s32.totalorder %s11, 2
    // Predicated region
    $region17: #{_lambda_.3} parent=5 // pred_check
      %p177 = pneg %p176
    $region18: #{_lambda_.3} parent=5 // pred_check_branch
      %179 = sbr.rel (%p177) target = $region20
    $region19: #{_lambda_.3} parent=5 // pred_region
      // Predicated region
      $region21: #{_lambda_.3} parent=19 // pred_check
        %p180 = pneg %p45
      $region22: #{_lambda_.3} parent=19 // pred_check_branch
        %182 = sbr.rel (%p180) target = $region24
      $region23: #{_lambda_.3} parent=19 // pred_region
        %s183 = smul.u32 16, %s19
        %s184 = ssub.s32 18, %s183
        %p185 = scmp.lt.s32.totalorder %s184, 16
        %s186 = scalar_select %p185, %s184, 16
        %s187 = smul.u32 8, %s186
        %s188 = smul.u32 %s187, 2
        %s189 = smul.u32 %s188, 2
        %p190 = scmp.lt.s32.totalorder %s18, 1
        %s191 = scalar_select %p190, %s18, 1
        %p192 = scmp.lt.s32.totalorder %s183, 17
        %s193 = scalar_select %p192, %s183, 17
        %s194 = smul.addr %s193, 4
        %s195 = smul.addr %s191, 72
        %s196 = sadd.s32 %s194, %s195
        %s197 = smul.addr %s196, 8
        %s198 = scalar_lea.vmem %s0, %s197
        %s199 = smul.u32 16, %s19
        %s200 = ssub.s32 18, %s199
        %p201 = scmp.lt.s32.totalorder %s200, 16
        %s202 = scalar_select %p201, %s200, 16
        %s203 = smul.u32 8, %s202
        %s204 = smul.u32 %s203, 2
        %s205 = smul.u32 %s204, 2
      $region24: #{_lambda_.3} parent=19 // pred_fallthru
        _
      // Predicated region
      $region25: #{_lambda_.3} parent=19 // pred_check
        %p206 = pneg %p77
      $region26: #{_lambda_.3} parent=19 // pred_check_branch
        %208 = sbr.rel (%p206) target = $region28
      $region27: #{_lambda_.3} parent=19 // pred_region
        %s209 = sadd.s32 %s19, 1
        %s210 = smul.u32 %s209, 16
        %p211 = scmp.lt.s32.totalorder %s18, 1
        %s212 = scalar_select %p211, %s18, 1
        %p213 = scmp.lt.s32.totalorder %s210, 17
        %s214 = scalar_select %p213, %s210, 17
        %s215 = smul.addr %s214, 4
        %s216 = smul.addr %s212, 72
        %s217 = sadd.s32 %s215, %s216
        %s218 = smul.addr %s217, 8
        %s219 = scalar_lea.vmem %s1, %s218
        %s220 = sadd.s32 %s19, 1
        %s221 = smul.u32 %s220, 16
      $region28: #{_lambda_.3} parent=19 // pred_fallthru
        _
    $region20: #{_lambda_.3} parent=5 // pred_fallthru
      _
    %p222 = scmp.le.s32.totalorder 1, %s11
    %p223 = scmp.lt.s32.totalorder %s11, 3
    %p224 = pnand %p222, %p223
    %p225 = pneg %p224
    // Predicated region
    $region29: #{_lambda_.3} parent=5 // pred_check
      _
    $region30: #{_lambda_.3} parent=5 // pred_check_branch
      %227 = sbr.rel (%p224) target = $region32
    $region31: #{_lambda_.3} parent=5 // pred_region
      %s228 = ssub.s32 %s11, 1
      %s229 = smul.u32 16, %s21
      %s230 = ssub.s32 18, %s229
      %p231 = scmp.lt.s32.totalorder %s230, 16
      %s232 = scalar_select %p231, %s230, 16
      %s233 = smul.u32 8, %s232
      %s234 = smul.u32 %s233, 2
      %s235 = smul.u32 %s234, 2
      %p236 = scmp.lt.s32.totalorder %s20, 1
      %s237 = scalar_select %p236, %s20, 1
      %p238 = scmp.lt.s32.totalorder %s229, 17
      %s239 = scalar_select %p238, %s229, 17
      %s240 = smul.addr %s239, 4
      %s241 = smul.addr %s237, 72
      %s242 = sadd.s32 %s240, %s241
      %s243 = smul.addr %s242, 8
      %s244 = scalar_lea.vmem %s0, %s243
      %p245 = pneg %p51
      %p246 = pneg %p48
      %s247 = sadd.s32 %s21, 1
      %s248 = smul.u32 %s247, 16
      %p249 = scmp.lt.s32.totalorder %s20, 1
      %s250 = scalar_select %p249, %s20, 1
      %p251 = scmp.lt.s32.totalorder %s248, 17
      %s252 = scalar_select %p251, %s248, 17
      %s253 = smul.addr %s252, 4
      %s254 = smul.addr %s250, 72
      %s255 = sadd.s32 %s253, %s254
      %s256 = smul.addr %s255, 8
      %s257 = scalar_lea.vmem %s1, %s256
      %p258 = pneg %p83
      %p259 = pneg %p80
      %p260 = pneg %p104
      %p261 = pneg %p101
      %p262 = pneg %p132
      %p263 = pneg %p129
      %s264 = smul.u32 8, %s21
      %p265 = scmp.lt.s32.totalorder %s20, 1
      %s266 = scalar_select %p265, %s20, 1
      %p267 = scmp.lt.s32.totalorder %s264, 7
      %s268 = scalar_select %p267, %s264, 7
      %s269 = smul.addr %s266, 8
      %s270 = sadd.s32 %s268, %s269
      %s271 = smul.addr %s270, 8
      %s272 = scalar_lea.vmem %s3, %s271
      %p273 = pneg %p158
      %p274 = pneg %p155
      %p275 = scmp.lt.s32.totalorder %s20, 1
      %s276 = scalar_select %p275, %s20, 1
      %s277 = smul.addr %s276, 8
      %s278 = scalar_lea.vmem %s4, %s277
      %s279 = smul.u32 16, %s21
      %s280 = ssub.s32 18, %s279
      %p281 = scmp.lt.s32.totalorder %s280, 16
      %s282 = scalar_select %p281, %s280, 16
      %s283 = smul.u32 8, %s282
      %s284 = smul.u32 %s283, 2
      %s285 = smul.u32 %s284, 2
      %p286 = scmp.lt.s32.totalorder %s20, 1
      %s287 = scalar_select %p286, %s20, 1
      %p288 = scmp.lt.s32.totalorder %s279, 17
      %s289 = scalar_select %p288, %s279, 17
      %s290 = smul.addr %s289, 4
      %s291 = smul.addr %s287, 72
      %s292 = sadd.s32 %s290, %s291
      %s293 = smul.addr %s292, 8
      %s294 = scalar_lea.vmem %s0, %s293
      %s295 = smul.u32 16, %s21
      %s296 = ssub.s32 18, %s295
      %p297 = scmp.lt.s32.totalorder %s296, 16
      %s298 = scalar_select %p297, %s296, 16
      %s299 = smul.u32 8, %s298
      %s300 = smul.u32 %s299, 2
      %s301 = smul.u32 %s300, 2
      %s302 = sadd.s32 %s21, 1
      %s303 = smul.u32 %s302, 16
      %p304 = scmp.lt.s32.totalorder %s20, 1
      %s305 = scalar_select %p304, %s20, 1
      %p306 = scmp.lt.s32.totalorder %s303, 17
      %s307 = scalar_select %p306, %s303, 17
      %s308 = smul.addr %s307, 4
      %s309 = smul.addr %s305, 72
      %s310 = sadd.s32 %s308, %s309
      %s311 = smul.addr %s310, 8
      %s312 = scalar_lea.vmem %s1, %s311
      %s313 = sadd.s32 %s21, 1
      %s314 = smul.u32 %s313, 16
      %s315 = smul.u32 8, %s21
      %p316 = scmp.lt.s32.totalorder %s20, 1
      %s317 = scalar_select %p316, %s20, 1
      %p318 = scmp.lt.s32.totalorder %s315, 7
      %s319 = scalar_select %p318, %s315, 7
      %s320 = smul.addr %s317, 8
      %s321 = sadd.s32 %s319, %s320
      %s322 = smul.addr %s321, 8
      %s323 = scalar_lea.vmem %s3, %s322
      %s324 = smul.u32 8, %s21
      %p325 = scmp.lt.s32.totalorder %s20, 1
      %s326 = scalar_select %p325, %s20, 1
      %s327 = smul.addr %s326, 8
      %s328 = scalar_lea.vmem %s4, %s327
      %p329 = scmp.eq.s32.totalorder %s21, 0
      // Predicated region
      $region33: #{_lambda_.3} parent=31 // pred_check
        %p330 = pneg %p329
      $region34: #{_lambda_.3} parent=31 // pred_check_branch
        %332 = sbr.rel (%p330) target = $region36
      $region35: #{_lambda_.3} parent=31 // pred_region
        %333 = vst [vmem:[%s328] sm:$0xff] 0.0
      $region36: #{_lambda_.3} parent=31 // pred_fallthru
        _
      %v334 = vld [vmem:[%s2] sm:$0x1]
      %v335 = vld [vmem:[%s2 + $0x1] sm:$0x1]
      %v336 = vld [vmem:[%s2 + $0x2] sm:$0x1]
      %v337 = vld [vmem:[%s2 + $0x3] sm:$0x1]
      %v338 = vld [vmem:[%s2 + $0x4] sm:$0x1]
      %v339 = vld [vmem:[%s2 + $0x5] sm:$0x1]
      %v340 = vld [vmem:[%s2 + $0x6] sm:$0x1]
      %v341 = vld [vmem:[%s2 + $0x7] sm:$0x1]
      %v342 = vld [vmem:[%s2 + $0x8] sm:$0x1]
      %v343 = vld [vmem:[%s294] sm:$0xff]
      %v344 = vld [vmem:[%s294 + $0x8] sm:$0xff]
      %v345 = vld [vmem:[%s294 + $0x10] sm:$0x1]
      %s346 = scalar_lea.vmem %s294, 32
      %v347 = vld [vmem:[%s346] sm:$0xff]
      %v348 = vld [vmem:[%s346 + $0x8] sm:$0xff]
      %v349 = vld [vmem:[%s346 + $0x10] sm:$0x1]
      %s350 = scalar_lea.vmem %s294, 64
      %v351 = vld [vmem:[%s350] sm:$0xff]
      %v352 = vld [vmem:[%s350 + $0x8] sm:$0xff]
      %v353 = vld [vmem:[%s350 + $0x10] sm:$0x1]
      %v355 = vperm.slane %v334, 0
      %v357 = vmul.f32 %v343, %v355
      %v358 = vadd.f32 %v357, 0.0
      %v360 = vperm.slane %v335, 0
      %v362 = vmul.f32 %v344, %v360
      %v363 = vadd.f32 %v358, %v362
      %v365 = vperm.slane %v336, 0
      %v367 = vmul.f32 %v343, %v365
      %v368 = vmul.f32 %v345, %v365
      %vm371 = vcmask 1046528
      %v372 = vrot.slane %v367, 1
      %v373 = vrot.slane %v368, 1
      %v374 = vsel %vm371, %v372, %v373
      %v376 = vadd.f32 %v363, %v374
      %v378 = vperm.slane %v337, 0
      %v380 = vmul.f32 %v347, %v378
      %v381 = vadd.f32 %v376, %v380
      %v383 = vperm.slane %v338, 0
      %v385 = vmul.f32 %v348, %v383
      %v386 = vadd.f32 %v381, %v385
      %v388 = vperm.slane %v339, 0
      %v390 = vmul.f32 %v347, %v388
      %v391 = vmul.f32 %v349, %v388
      %v394 = vrot.slane %v390, 1
      %v395 = vrot.slane %v391, 1
      %v396 = vsel %vm371, %v394, %v395
      %v398 = vadd.f32 %v386, %v396
      %v400 = vperm.slane %v340, 0
      %v402 = vmul.f32 %v351, %v400
      %v403 = vadd.f32 %v398, %v402
      %v405 = vperm.slane %v341, 0
      %v407 = vmul.f32 %v352, %v405
      %v408 = vadd.f32 %v403, %v407
      %v410 = vperm.slane %v342, 0
      %v412 = vmul.f32 %v351, %v410
      %v413 = vmul.f32 %v353, %v410
      %v416 = vrot.slane %v412, 1
      %v417 = vrot.slane %v413, 1
      %v418 = vsel %vm371, %v416, %v417
      %v420 = vadd.f32 %v408, %v418
      %421 = vst [vmem:[%s323] sm:$0xff] %v420
      %v422 = vrot.slane %v420, 4
      %v423 = vadd.f32 %v420, %v422
      %v424 = vrot.slane %v423, 2
      %v425 = vadd.f32 %v423, %v424
      %v426 = vrot.slane %v425, 1
      %v427 = vadd.f32 %v425, %v426
      %v428 = vadd.f32 %v427, 0.0
      %v429 = vmul.f32 %v420, %v420
      %v430 = vrot.slane %v429, 4
      %v431 = vadd.f32 %v429, %v430
      %v432 = vrot.slane %v431, 2
      %v433 = vadd.f32 %v431, %v432
      %v434 = vrot.slane %v433, 1
      %v435 = vadd.f32 %v433, %v434
      %v436 = vadd.f32 %v435, 0.0
      %v437 = vld [vmem:[%s350] sm:$0xff]
      %v438 = vld [vmem:[%s350 + $0x8] sm:$0xff]
      %v439 = vld [vmem:[%s350 + $0x10] sm:$0x1]
      %s440 = scalar_lea.vmem %s294, 96
      %v441 = vld [vmem:[%s440] sm:$0xff]
      %v442 = vld [vmem:[%s440 + $0x8] sm:$0xff]
      %v443 = vld [vmem:[%s440 + $0x10] sm:$0x1]
      %s444 = scalar_lea.vmem %s294, 128
      %v445 = vld [vmem:[%s444] sm:$0xff]
      %v446 = vld [vmem:[%s444 + $0x8] sm:$0xff]
      %v447 = vld [vmem:[%s444 + $0x10] sm:$0x1]
      %v448 = vmul.f32 %v437, %v355
      %v449 = vadd.f32 %v448, 0.0
      %v450 = vmul.f32 %v438, %v360
      %v451 = vadd.f32 %v449, %v450
      %v452 = vmul.f32 %v437, %v365
      %v453 = vmul.f32 %v439, %v365
      %v456 = vrot.slane %v452, 1
      %v457 = vrot.slane %v453, 1
      %v458 = vsel %vm371, %v456, %v457
      %v460 = vadd.f32 %v451, %v458
      %v461 = vmul.f32 %v441, %v378
      %v462 = vadd.f32 %v460, %v461
      %v463 = vmul.f32 %v442, %v383
      %v464 = vadd.f32 %v462, %v463
      %v465 = vmul.f32 %v441, %v388
      %v466 = vmul.f32 %v443, %v388
      %v469 = vrot.slane %v465, 1
      %v470 = vrot.slane %v466, 1
      %v471 = vsel %vm371, %v469, %v470
      %v473 = vadd.f32 %v464, %v471
      %v474 = vmul.f32 %v445, %v400
      %v475 = vadd.f32 %v473, %v474
      %v476 = vmul.f32 %v446, %v405
      %v477 = vadd.f32 %v475, %v476
      %v478 = vmul.f32 %v445, %v410
      %v479 = vmul.f32 %v447, %v410
      %v482 = vrot.slane %v478, 1
      %v483 = vrot.slane %v479, 1
      %v484 = vsel %vm371, %v482, %v483
      %v486 = vadd.f32 %v477, %v484
      %s487 = scalar_lea.vmem %s323, 8
      %488 = vst [vmem:[%s487] sm:$0xff] %v486
      %v489 = vrot.slane %v486, 4
      %v490 = vadd.f32 %v486, %v489
      %v491 = vrot.slane %v490, 2
      %v492 = vadd.f32 %v490, %v491
      %v493 = vrot.slane %v492, 1
      %v494 = vadd.f32 %v492, %v493
      %v495 = vadd.f32 %v428, %v494
      %v496 = vmul.f32 %v486, %v486
      %v497 = vrot.slane %v496, 4
      %v498 = vadd.f32 %v496, %v497
      %v499 = vrot.slane %v498, 2
      %v500 = vadd.f32 %v498, %v499
      %v501 = vrot.slane %v500, 1
      %v502 = vadd.f32 %v500, %v501
      %v503 = vadd.f32 %v436, %v502
      %v504 = vld [vmem:[%s444] sm:$0xff]
      %v505 = vld [vmem:[%s444 + $0x8] sm:$0xff]
      %v506 = vld [vmem:[%s444 + $0x10] sm:$0x1]
      %s507 = scalar_lea.vmem %s294, 160
      %v508 = vld [vmem:[%s507] sm:$0xff]
      %v509 = vld [vmem:[%s507 + $0x8] sm:$0xff]
      %v510 = vld [vmem:[%s507 + $0x10] sm:$0x1]
      %s511 = scalar_lea.vmem %s294, 192
      %v512 = vld [vmem:[%s511] sm:$0xff]
      %v513 = vld [vmem:[%s511 + $0x8] sm:$0xff]
      %v514 = vld [vmem:[%s511 + $0x10] sm:$0x1]
      %v515 = vmul.f32 %v504, %v355
      %v516 = vadd.f32 %v515, 0.0
      %v517 = vmul.f32 %v505, %v360
      %v518 = vadd.f32 %v516, %v517
      %v519 = vmul.f32 %v504, %v365
      %v520 = vmul.f32 %v506, %v365
      %v523 = vrot.slane %v519, 1
      %v524 = vrot.slane %v520, 1
      %v525 = vsel %vm371, %v523, %v524
      %v527 = vadd.f32 %v518, %v525
      %v528 = vmul.f32 %v508, %v378
      %v529 = vadd.f32 %v527, %v528
      %v530 = vmul.f32 %v509, %v383
      %v531 = vadd.f32 %v529, %v530
      %v532 = vmul.f32 %v508, %v388
      %v533 = vmul.f32 %v510, %v388
      %v536 = vrot.slane %v532, 1
      %v537 = vrot.slane %v533, 1
      %v538 = vsel %vm371, %v536, %v537
      %v540 = vadd.f32 %v531, %v538
      %v541 = vmul.f32 %v512, %v400
      %v542 = vadd.f32 %v540, %v541
      %v543 = vmul.f32 %v513, %v405
      %v544 = vadd.f32 %v542, %v543
      %v545 = vmul.f32 %v512, %v410
      %v546 = vmul.f32 %v514, %v410
      %v549 = vrot.slane %v545, 1
      %v550 = vrot.slane %v546, 1
      %v551 = vsel %vm371, %v549, %v550
      %v553 = vadd.f32 %v544, %v551
      %s554 = scalar_lea.vmem %s323, 16
      %555 = vst [vmem:[%s554] sm:$0xff] %v553
      %v556 = vrot.slane %v553, 4
      %v557 = vadd.f32 %v553, %v556
      %v558 = vrot.slane %v557, 2
      %v559 = vadd.f32 %v557, %v558
      %v560 = vrot.slane %v559, 1
      %v561 = vadd.f32 %v559, %v560
      %v562 = vadd.f32 %v495, %v561
      %v563 = vmul.f32 %v553, %v553
      %v564 = vrot.slane %v563, 4
      %v565 = vadd.f32 %v563, %v564
      %v566 = vrot.slane %v565, 2
      %v567 = vadd.f32 %v565, %v566
      %v568 = vrot.slane %v567, 1
      %v569 = vadd.f32 %v567, %v568
      %v570 = vadd.f32 %v503, %v569
      %v571 = vld [vmem:[%s511] sm:$0xff]
      %v572 = vld [vmem:[%s511 + $0x8] sm:$0xff]
      %v573 = vld [vmem:[%s511 + $0x10] sm:$0x1]
      %s574 = scalar_lea.vmem %s294, 224
      %v575 = vld [vmem:[%s574] sm:$0xff]
      %v576 = vld [vmem:[%s574 + $0x8] sm:$0xff]
      %v577 = vld [vmem:[%s574 + $0x10] sm:$0x1]
      %s578 = scalar_lea.vmem %s294, 256
      %v579 = vld [vmem:[%s578] sm:$0xff]
      %v580 = vld [vmem:[%s578 + $0x8] sm:$0xff]
      %v581 = vld [vmem:[%s578 + $0x10] sm:$0x1]
      %v582 = vmul.f32 %v571, %v355
      %v583 = vadd.f32 %v582, 0.0
      %v584 = vmul.f32 %v572, %v360
      %v585 = vadd.f32 %v583, %v584
      %v586 = vmul.f32 %v571, %v365
      %v587 = vmul.f32 %v573, %v365
      %v590 = vrot.slane %v586, 1
      %v591 = vrot.slane %v587, 1
      %v592 = vsel %vm371, %v590, %v591
      %v594 = vadd.f32 %v585, %v592
      %v595 = vmul.f32 %v575, %v378
      %v596 = vadd.f32 %v594, %v595
      %v597 = vmul.f32 %v576, %v383
      %v598 = vadd.f32 %v596, %v597
      %v599 = vmul.f32 %v575, %v388
      %v600 = vmul.f32 %v577, %v388
      %v603 = vrot.slane %v599, 1
      %v604 = vrot.slane %v600, 1
      %v605 = vsel %vm371, %v603, %v604
      %v607 = vadd.f32 %v598, %v605
      %v608 = vmul.f32 %v579, %v400
      %v609 = vadd.f32 %v607, %v608
      %v610 = vmul.f32 %v580, %v405
      %v611 = vadd.f32 %v609, %v610
      %v612 = vmul.f32 %v579, %v410
      %v613 = vmul.f32 %v581, %v410
      %v616 = vrot.slane %v612, 1
      %v617 = vrot.slane %v613, 1
      %v618 = vsel %vm371, %v616, %v617
      %v620 = vadd.f32 %v611, %v618
      %s621 = scalar_lea.vmem %s323, 24
      %622 = vst [vmem:[%s621] sm:$0xff] %v620
      %v623 = vrot.slane %v620, 4
      %v624 = vadd.f32 %v620, %v623
      %v625 = vrot.slane %v624, 2
      %v626 = vadd.f32 %v624, %v625
      %v627 = vrot.slane %v626, 1
      %v628 = vadd.f32 %v626, %v627
      %v629 = vadd.f32 %v562, %v628
      %v630 = vmul.f32 %v620, %v620
      %v631 = vrot.slane %v630, 4
      %v632 = vadd.f32 %v630, %v631
      %v633 = vrot.slane %v632, 2
      %v634 = vadd.f32 %v632, %v633
      %v635 = vrot.slane %v634, 1
      %v636 = vadd.f32 %v634, %v635
      %v637 = vadd.f32 %v570, %v636
      %v638 = vld [vmem:[%s578] sm:$0xff]
      %v639 = vld [vmem:[%s578 + $0x8] sm:$0xff]
      %v640 = vld [vmem:[%s578 + $0x10] sm:$0x1]
      %s641 = scalar_lea.vmem %s294, 288
      %v642 = vld [vmem:[%s641] sm:$0xff]
      %v643 = vld [vmem:[%s641 + $0x8] sm:$0xff]
      %v644 = vld [vmem:[%s641 + $0x10] sm:$0x1]
      %s645 = scalar_lea.vmem %s294, 320
      %v646 = vld [vmem:[%s645] sm:$0xff]
      %v647 = vld [vmem:[%s645 + $0x8] sm:$0xff]
      %v648 = vld [vmem:[%s645 + $0x10] sm:$0x1]
      %v649 = vmul.f32 %v638, %v355
      %v650 = vadd.f32 %v649, 0.0
      %v651 = vmul.f32 %v639, %v360
      %v652 = vadd.f32 %v650, %v651
      %v653 = vmul.f32 %v638, %v365
      %v654 = vmul.f32 %v640, %v365
      %v657 = vrot.slane %v653, 1
      %v658 = vrot.slane %v654, 1
      %v659 = vsel %vm371, %v657, %v658
      %v661 = vadd.f32 %v652, %v659
      %v662 = vmul.f32 %v642, %v378
      %v663 = vadd.f32 %v661, %v662
      %v664 = vmul.f32 %v643, %v383
      %v665 = vadd.f32 %v663, %v664
      %v666 = vmul.f32 %v642, %v388
      %v667 = vmul.f32 %v644, %v388
      %v670 = vrot.slane %v666, 1
      %v671 = vrot.slane %v667, 1
      %v672 = vsel %vm371, %v670, %v671
      %v674 = vadd.f32 %v665, %v672
      %v675 = vmul.f32 %v646, %v400
      %v676 = vadd.f32 %v674, %v675
      %v677 = vmul.f32 %v647, %v405
      %v678 = vadd.f32 %v676, %v677
      %v679 = vmul.f32 %v646, %v410
      %v680 = vmul.f32 %v648, %v410
      %v683 = vrot.slane %v679, 1
      %v684 = vrot.slane %v680, 1
      %v685 = vsel %vm371, %v683, %v684
      %v687 = vadd.f32 %v678, %v685
      %s688 = scalar_lea.vmem %s323, 32
      %689 = vst [vmem:[%s688] sm:$0xff] %v687
      %v690 = vrot.slane %v687, 4
      %v691 = vadd.f32 %v687, %v690
      %v692 = vrot.slane %v691, 2
      %v693 = vadd.f32 %v691, %v692
      %v694 = vrot.slane %v693, 1
      %v695 = vadd.f32 %v693, %v694
      %v696 = vadd.f32 %v629, %v695
      %v697 = vmul.f32 %v687, %v687
      %v698 = vrot.slane %v697, 4
      %v699 = vadd.f32 %v697, %v698
      %v700 = vrot.slane %v699, 2
      %v701 = vadd.f32 %v699, %v700
      %v702 = vrot.slane %v701, 1
      %v703 = vadd.f32 %v701, %v702
      %v704 = vadd.f32 %v637, %v703
      %v705 = vld [vmem:[%s645] sm:$0xff]
      %v706 = vld [vmem:[%s645 + $0x8] sm:$0xff]
      %v707 = vld [vmem:[%s645 + $0x10] sm:$0x1]
      %s708 = scalar_lea.vmem %s294, 352
      %v709 = vld [vmem:[%s708] sm:$0xff]
      %v710 = vld [vmem:[%s708 + $0x8] sm:$0xff]
      %v711 = vld [vmem:[%s708 + $0x10] sm:$0x1]
      %s712 = scalar_lea.vmem %s294, 384
      %v713 = vld [vmem:[%s712] sm:$0xff]
      %v714 = vld [vmem:[%s712 + $0x8] sm:$0xff]
      %v715 = vld [vmem:[%s712 + $0x10] sm:$0x1]
      %v716 = vmul.f32 %v705, %v355
      %v717 = vadd.f32 %v716, 0.0
      %v718 = vmul.f32 %v706, %v360
      %v719 = vadd.f32 %v717, %v718
      %v720 = vmul.f32 %v705, %v365
      %v721 = vmul.f32 %v707, %v365
      %v724 = vrot.slane %v720, 1
      %v725 = vrot.slane %v721, 1
      %v726 = vsel %vm371, %v724, %v725
      %v728 = vadd.f32 %v719, %v726
      %v729 = vmul.f32 %v709, %v378
      %v730 = vadd.f32 %v728, %v729
      %v731 = vmul.f32 %v710, %v383
      %v732 = vadd.f32 %v730, %v731
      %v733 = vmul.f32 %v709, %v388
      %v734 = vmul.f32 %v711, %v388
      %v737 = vrot.slane %v733, 1
      %v738 = vrot.slane %v734, 1
      %v739 = vsel %vm371, %v737, %v738
      %v741 = vadd.f32 %v732, %v739
      %v742 = vmul.f32 %v713, %v400
      %v743 = vadd.f32 %v741, %v742
      %v744 = vmul.f32 %v714, %v405
      %v745 = vadd.f32 %v743, %v744
      %v746 = vmul.f32 %v713, %v410
      %v747 = vmul.f32 %v715, %v410
      %v750 = vrot.slane %v746, 1
      %v751 = vrot.slane %v747, 1
      %v752 = vsel %vm371, %v750, %v751
      %v754 = vadd.f32 %v745, %v752
      %s755 = scalar_lea.vmem %s323, 40
      %756 = vst [vmem:[%s755] sm:$0xff] %v754
      %v757 = vrot.slane %v754, 4
      %v758 = vadd.f32 %v754, %v757
      %v759 = vrot.slane %v758, 2
      %v760 = vadd.f32 %v758, %v759
      %v761 = vrot.slane %v760, 1
      %v762 = vadd.f32 %v760, %v761
      %v763 = vadd.f32 %v696, %v762
      %v764 = vmul.f32 %v754, %v754
      %v765 = vrot.slane %v764, 4
      %v766 = vadd.f32 %v764, %v765
      %v767 = vrot.slane %v766, 2
      %v768 = vadd.f32 %v766, %v767
      %v769 = vrot.slane %v768, 1
      %v770 = vadd.f32 %v768, %v769
      %v771 = vadd.f32 %v704, %v770
      %v772 = vld [vmem:[%s712] sm:$0xff]
      %v773 = vld [vmem:[%s712 + $0x8] sm:$0xff]
      %v774 = vld [vmem:[%s712 + $0x10] sm:$0x1]
      %s775 = scalar_lea.vmem %s294, 416
      %v776 = vld [vmem:[%s775] sm:$0xff]
      %v777 = vld [vmem:[%s775 + $0x8] sm:$0xff]
      %v778 = vld [vmem:[%s775 + $0x10] sm:$0x1]
      %s779 = scalar_lea.vmem %s294, 448
      %v780 = vld [vmem:[%s779] sm:$0xff]
      %v781 = vld [vmem:[%s779 + $0x8] sm:$0xff]
      %v782 = vld [vmem:[%s779 + $0x10] sm:$0x1]
      %v783 = vmul.f32 %v772, %v355
      %v784 = vadd.f32 %v783, 0.0
      %v785 = vmul.f32 %v773, %v360
      %v786 = vadd.f32 %v784, %v785
      %v787 = vmul.f32 %v772, %v365
      %v788 = vmul.f32 %v774, %v365
      %v791 = vrot.slane %v787, 1
      %v792 = vrot.slane %v788, 1
      %v793 = vsel %vm371, %v791, %v792
      %v795 = vadd.f32 %v786, %v793
      %v796 = vmul.f32 %v776, %v378
      %v797 = vadd.f32 %v795, %v796
      %v798 = vmul.f32 %v777, %v383
      %v799 = vadd.f32 %v797, %v798
      %v800 = vmul.f32 %v776, %v388
      %v801 = vmul.f32 %v778, %v388
      %v804 = vrot.slane %v800, 1
      %v805 = vrot.slane %v801, 1
      %v806 = vsel %vm371, %v804, %v805
      %v808 = vadd.f32 %v799, %v806
      %v809 = vmul.f32 %v780, %v400
      %v810 = vadd.f32 %v808, %v809
      %v811 = vmul.f32 %v781, %v405
      %v812 = vadd.f32 %v810, %v811
      %v813 = vmul.f32 %v780, %v410
      %v814 = vmul.f32 %v782, %v410
      %v817 = vrot.slane %v813, 1
      %v818 = vrot.slane %v814, 1
      %v819 = vsel %vm371, %v817, %v818
      %v821 = vadd.f32 %v812, %v819
      %s822 = scalar_lea.vmem %s323, 48
      %823 = vst [vmem:[%s822] sm:$0xff] %v821
      %v824 = vrot.slane %v821, 4
      %v825 = vadd.f32 %v821, %v824
      %v826 = vrot.slane %v825, 2
      %v827 = vadd.f32 %v825, %v826
      %v828 = vrot.slane %v827, 1
      %v829 = vadd.f32 %v827, %v828
      %v830 = vadd.f32 %v763, %v829
      %v831 = vmul.f32 %v821, %v821
      %v832 = vrot.slane %v831, 4
      %v833 = vadd.f32 %v831, %v832
      %v834 = vrot.slane %v833, 2
      %v835 = vadd.f32 %v833, %v834
      %v836 = vrot.slane %v835, 1
      %v837 = vadd.f32 %v835, %v836
      %v838 = vadd.f32 %v771, %v837
      %v839 = vld [vmem:[%s779] sm:$0xff]
      %v840 = vld [vmem:[%s779 + $0x8] sm:$0xff]
      %v841 = vld [vmem:[%s779 + $0x10] sm:$0x1]
      %s842 = scalar_lea.vmem %s294, 480
      %v843 = vld [vmem:[%s842] sm:$0xff]
      %v844 = vld [vmem:[%s842 + $0x8] sm:$0xff]
      %v845 = vld [vmem:[%s842 + $0x10] sm:$0x1]
      %v846 = vld [vmem:[%s312] sm:$0xff]
      %v847 = vld [vmem:[%s312 + $0x8] sm:$0xff]
      %v848 = vld [vmem:[%s312 + $0x10] sm:$0x1]
      %v849 = vmul.f32 %v839, %v355
      %v850 = vadd.f32 %v849, 0.0
      %v851 = vmul.f32 %v840, %v360
      %v852 = vadd.f32 %v850, %v851
      %v853 = vmul.f32 %v839, %v365
      %v854 = vmul.f32 %v841, %v365
      %v857 = vrot.slane %v853, 1
      %v858 = vrot.slane %v854, 1
      %v859 = vsel %vm371, %v857, %v858
      %v861 = vadd.f32 %v852, %v859
      %v862 = vmul.f32 %v843, %v378
      %v863 = vadd.f32 %v861, %v862
      %v864 = vmul.f32 %v844, %v383
      %v865 = vadd.f32 %v863, %v864
      %v866 = vmul.f32 %v843, %v388
      %v867 = vmul.f32 %v845, %v388
      %v870 = vrot.slane %v866, 1
      %v871 = vrot.slane %v867, 1
      %v872 = vsel %vm371, %v870, %v871
      %v874 = vadd.f32 %v865, %v872
      %v875 = vmul.f32 %v846, %v400
      %v876 = vadd.f32 %v874, %v875
      %v877 = vmul.f32 %v847, %v405
      %v878 = vadd.f32 %v876, %v877
      %v879 = vmul.f32 %v846, %v410
      %v880 = vmul.f32 %v848, %v410
      %v883 = vrot.slane %v879, 1
      %v884 = vrot.slane %v880, 1
      %v885 = vsel %vm371, %v883, %v884
      %v887 = vadd.f32 %v878, %v885
      %s888 = scalar_lea.vmem %s323, 56
      %889 = vst [vmem:[%s888] sm:$0xff] %v887
      %v890 = vrot.slane %v887, 4
      %v891 = vadd.f32 %v887, %v890
      %v892 = vrot.slane %v891, 2
      %v893 = vadd.f32 %v891, %v892
      %v894 = vrot.slane %v893, 1
      %v895 = vadd.f32 %v893, %v894
      %v896 = vadd.f32 %v830, %v895
      %v897 = vmul.f32 %v887, %v887
      %v898 = vrot.slane %v897, 4
      %v899 = vadd.f32 %v897, %v898
      %v900 = vrot.slane %v899, 2
      %v901 = vadd.f32 %v899, %v900
      %v902 = vrot.slane %v901, 1
      %v903 = vadd.f32 %v901, %v902
      %v904 = vadd.f32 %v838, %v903
      %v905 = vld [vmem:[%s328] sm:$0xff]
      %vm906 = vcmask 1040384
      %v907 = vsel %vm906, %v896, %v904
      %vm908 = vcmask 1041408
      %v909 = vsel %vm908, %v907, 0.0
      %v910 = vadd.f32 %v905, %v909
      %911 = vst [vmem:[%s328] sm:$0xff] %v910
      %s912 = smul.u32 8, %s21
      %p913 = scmp.lt.s32.totalorder %s20, 1
      %s914 = scalar_select %p913, %s20, 1
      %p915 = scmp.lt.s32.totalorder %s912, 7
      %s916 = scalar_select %p915, %s912, 7
      %s917 = smul.addr %s914, 8
      %s918 = sadd.s32 %s916, %s917
      %s919 = smul.addr %s918, 8
      %s920 = scalar_lea.vmem %s3, %s919
      %p921 = scmp.lt.s32.totalorder %s20, 1
      %s922 = scalar_select %p921, %s20, 1
      %s923 = smul.addr %s922, 8
      %s924 = scalar_lea.vmem %s4, %s923
      // Predicated region
      $region37: #{_lambda_.3} parent=31 // pred_check
        %p925 = pneg %p129
      $region38: #{_lambda_.3} parent=31 // pred_check_branch
        %927 = sbr.rel (%p925) target = $region40
      $region39: #{_lambda_.3} parent=31 // pred_region
        %s928 = smul.u32 8, %s21
      $region40: #{_lambda_.3} parent=31 // pred_fallthru
        _
      // Predicated region
      $region41: #{_lambda_.3} parent=31 // pred_check
        %p929 = pneg %p155
      $region42: #{_lambda_.3} parent=31 // pred_check_branch
        %931 = sbr.rel (%p929) target = $region44
      $region43: #{_lambda_.3} parent=31 // pred_region
        _
      $region44: #{_lambda_.3} parent=31 // pred_fallthru
        _
    $region32: #{_lambda_.3} parent=5 // pred_fallthru
      _
    %p932 = scmp.le.s32.totalorder 2, %s11
    // Predicated region
    $region45: #{_lambda_.3} parent=5 // pred_check
      %p933 = pneg %p932
    $region46: #{_lambda_.3} parent=5 // pred_check_branch
      %935 = sbr.rel (%p933) target = $region48
    $region47: #{_lambda_.3} parent=5 // pred_region
      %s936 = ssub.s32 %s11, 2
      // Predicated region
      $region49: #{_lambda_.3} parent=47 // pred_check
        %p937 = pneg %p135
      $region50: #{_lambda_.3} parent=47 // pred_check_branch
        %939 = sbr.rel (%p937) target = $region52
      $region51: #{_lambda_.3} parent=47 // pred_region
        %s940 = smul.u32 8, %s23
        %p941 = scmp.lt.s32.totalorder %s22, 1
        %s942 = scalar_select %p941, %s22, 1
        %p943 = scmp.lt.s32.totalorder %s940, 7
        %s944 = scalar_select %p943, %s940, 7
        %s945 = smul.addr %s942, 8
        %s946 = sadd.s32 %s944, %s945
        %s947 = smul.addr %s946, 8
        %s948 = scalar_lea.vmem %s3, %s947
      $region52: #{_lambda_.3} parent=47 // pred_fallthru
        _
      // Predicated region
      $region53: #{_lambda_.3} parent=47 // pred_check
        %p949 = pneg %p161
      $region54: #{_lambda_.3} parent=47 // pred_check_branch
        %951 = sbr.rel (%p949) target = $region56
      $region55: #{_lambda_.3} parent=47 // pred_region
        %p952 = scmp.lt.s32.totalorder %s22, 1
        %s953 = scalar_select %p952, %s22, 1
        %s954 = smul.addr %s953, 8
        %s955 = scalar_lea.vmem %s4, %s954
      $region56: #{_lambda_.3} parent=47 // pred_fallthru
        _
    $region48: #{_lambda_.3} parent=5 // pred_fallthru
      _
  $region6: #{_lambda_.3} parent=0 // loop_footer
    %s15 = sadd.s32 1, %s11
  $region7: #{_lambda_.3} parent=0 // loop_footer_branch
    %10 = sbr.rel target = $region3
  $region8: #{_lambda_.3} parent=0 // loop_exit
    _

</llo_original>
